<compile_context>
chip_gen: v7x
topology: tpu7x:2x2x1
jax: 0.10.0
libtpu: 0.0.40
codegen_flags: <defaults>
</compile_context>

<pallas_src>
import math
import functools

import jax
import jax.numpy as jnp
from jax.experimental import pallas as pl
from jax.experimental.pallas import tpu as pltpu

LN_EPS = 1e-5
_VMEM_LIMIT = 40 * 1024 * 1024   # safe headroom on v7x (64 MiB physical VMEM)
_APPROX_RECIP = True             # EUP reciprocal for softmax denom (~1e-3 rel err)


def _round_up(x, m):
    return (x + m - 1) // m * m


def _pick_block_b(B, S):
    """Largest batch block that keeps >=2 grid steps (v7x 2 TCs) when possible,
    preferring >=128 MXU rows per step when that is also achievable."""
    divs = [d for d in range(1, B + 1) if B % d == 0]
    cands = [d for d in divs if B // d >= 2] or divs
    good = [d for d in cands if d * S >= 128]
    return min(good) if good else max(cands)


def _layernorm(x, w, b):
    # f32 math (x is f32); w, b are (1, D).
    mu = jnp.mean(x, axis=-1, keepdims=True)
    var = jnp.mean((x - mu) ** 2, axis=-1, keepdims=True)
    return (x - mu) * jax.lax.rsqrt(var + LN_EPS) * w + b


def _softmax_lastdim(s):
    s = s - jnp.max(s, axis=-1, keepdims=True)
    p = jnp.exp(s)
    denom = jnp.sum(p, axis=-1, keepdims=True)
    if _APPROX_RECIP:
        return p * pl.reciprocal(denom, approx=True)
    return p / denom


def _fused_forward_kernel(n_layers, n_head,
                          x_ref, pe_ref, mask_ref,
                          wqkv_ref, bqkv_ref, wo_ref, bo_ref,
                          ln1w_ref, ln1b_ref,
                          w1_ref, b1_ref, w2_ref, b2_ref,
                          ln2w_ref, ln2b_ref,
                          dec_w_ref, dec_b_ref,
                          o_ref):
    bt, seq, d_model = x_ref.shape
    d_head = d_model // n_head
    rows = bt * seq

    # Positional encoding added in-kernel (saves an HBM pass over activations).
    mask = mask_ref[...]                                       # (S, S) f32 additive
    h = (x_ref[...] + pe_ref[...]).reshape(rows, d_model)      # (rows, D) f32

    for lp in range(n_layers):
        # --- fused QKV projection (1/sqrt(d_head) pre-folded into Q cols) ---
        qkv = jnp.dot(h.astype(jnp.bfloat16), wqkv_ref[lp],
                      preferred_element_type=jnp.float32) + bqkv_ref[lp]
        qkv3 = qkv.reshape(bt, seq, 3 * d_model)               # leading-dim split

        # --- multi-head self attention (post-norm TransformerEncoderLayer) ---
        # Per-head context is folded straight into the output projection
        # (accumulate ctx_h @ Wo[h*dh:(h+1)*dh, :]) so there is no sub-128-lane
        # scatter store and no concat; score/attend matmuls are batched over bt.
        wo = wo_ref[lp]
        attn = jnp.zeros((rows, d_model), jnp.float32)
        for hd in range(n_head):
            q = qkv3[:, :, hd * d_head:(hd + 1) * d_head].astype(jnp.bfloat16)
            k = qkv3[:, :, d_model + hd * d_head:
                     d_model + (hd + 1) * d_head].astype(jnp.bfloat16)
            v = qkv3[:, :, 2 * d_model + hd * d_head:
                     2 * d_model + (hd + 1) * d_head].astype(jnp.bfloat16)

            s = jnp.einsum('bqd,bkd->bqk', q, k,
                           preferred_element_type=jnp.float32)   # (bt, S, S) f32
            s = s + mask                                         # mask add stays f32
            p = _softmax_lastdim(s)

            ctx = jnp.einsum('bqk,bkd->bqd', p.astype(jnp.bfloat16), v,
                             preferred_element_type=jnp.float32)  # (bt, S, d_head)
            attn = attn + jnp.dot(
                ctx.reshape(rows, d_head).astype(jnp.bfloat16),
                wo[hd * d_head:(hd + 1) * d_head, :],
                preferred_element_type=jnp.float32)
        attn = attn + bo_ref[lp]

        h1 = _layernorm(h + attn, ln1w_ref[lp], ln1b_ref[lp])

        # --- feed-forward (ReLU), bf16 matmul operands, f32 elementwise ---
        ff = jnp.dot(h1.astype(jnp.bfloat16), w1_ref[lp],
                     preferred_element_type=jnp.float32) + b1_ref[lp]
        ff = jnp.maximum(ff, 0.0)
        ff = jnp.dot(ff.astype(jnp.bfloat16), w2_ref[lp],
                     preferred_element_type=jnp.float32) + b2_ref[lp]

        h = _layernorm(h1 + ff, ln2w_ref[lp], ln2b_ref[lp])

    # --- decoder (d_model -> padded vocab), lane-dense output ---
    logits = jnp.dot(h.astype(jnp.bfloat16), dec_w_ref[...],
                     preferred_element_type=jnp.float32) + dec_b_ref[...]
    o_ref[...] = logits.reshape(bt, seq, -1).astype(o_ref.dtype)


def _full_spec(arr):
    zeros = (0,) * arr.ndim
    return pl.BlockSpec(arr.shape, lambda b, _z=zeros: _z)


def fused_forward(x_bsd, pe, mask, prep, n_head):
    """x_bsd: (B, S, D) f32 embeddings (scale folded); pe: (S, D); mask: (S, S)."""
    B, S, D = x_bsd.shape
    V_pad = prep["dec_w"].shape[1]
    n_layers = prep["n_layers"]
    block_b = _pick_block_b(B, S)

    weights = (prep["wqkv"], prep["bqkv"], prep["wo"], prep["bo"],
               prep["ln1w"], prep["ln1b"],
               prep["w1"], prep["b1"], prep["w2"], prep["b2"],
               prep["ln2w"], prep["ln2b"],
               prep["dec_w"], prep["dec_b"])

    in_specs = ([pl.BlockSpec((block_b, S, D), lambda b: (b, 0, 0)),
                 _full_spec(pe), _full_spec(mask)]
                + [_full_spec(w) for w in weights])

    return pl.pallas_call(
        functools.partial(_fused_forward_kernel, n_layers, n_head),
        out_shape=jax.ShapeDtypeStruct((B, S, V_pad), jnp.float32),
        grid=(B // block_b,),
        in_specs=in_specs,
        out_specs=pl.BlockSpec((block_b, S, V_pad), lambda b: (b, 0, 0)),
        compiler_params=pltpu.CompilerParams(
            dimension_semantics=("parallel",),
            vmem_limit_bytes=_VMEM_LIMIT),
    )(x_bsd, pe, mask, *weights)


def make_positional_encoding(max_len, d_model):
    position = jnp.arange(max_len, dtype=jnp.float32)[:, None]
    div_term = jnp.exp(jnp.arange(0, d_model, 2, dtype=jnp.float32)
                       * (-math.log(10000.0) / d_model))
    pe = jnp.zeros((max_len, d_model), jnp.float32)
    pe = pe.at[:, 0::2].set(jnp.sin(position * div_term))
    pe = pe.at[:, 1::2].set(jnp.cos(position * div_term))
    return pe


def init_params(key, n_token, d_model, n_head, d_hid, n_layers, max_len=128):
    def uni(k, shape, scale=0.1):
        return jax.random.uniform(k, shape, jnp.float32, -scale, scale)

    keys = jax.random.split(key, 2 + n_layers)
    params = {
        "emb": uni(keys[0], (n_token, d_model)),          # encoder.weight
        "pe": make_positional_encoding(max_len, d_model),
        "dec_w": uni(keys[1], (d_model, n_token)),        # decoder.weight (pre-T)
        "dec_b": jnp.zeros((1, n_token), jnp.float32),    # decoder.bias zeroed
        "layers": [],
    }
    for li in range(n_layers):
        lk = jax.random.split(keys[2 + li], 6)
        params["layers"].append({
            # fused in-projection, pre-transposed: qkv = x @ Wqkv, cols = [Wq|Wk|Wv]
            "wqkv": uni(lk[0], (d_model, 3 * d_model)),
            "bqkv": uni(lk[1], (1, 3 * d_model)),
            "wo": uni(lk[2], (d_model, d_model)),
            "bo": jnp.zeros((1, d_model), jnp.float32),
            "w1": uni(lk[3], (d_model, d_hid)),
            "b1": uni(lk[4], (1, d_hid)),
            "w2": uni(lk[5], (d_hid, d_model)),
            "b2": jnp.zeros((1, d_model), jnp.float32),
            "ln1w": jnp.ones((1, d_model), jnp.float32),
            "ln1b": jnp.zeros((1, d_model), jnp.float32),
            "ln2w": jnp.ones((1, d_model), jnp.float32),
            "ln2b": jnp.zeros((1, d_model), jnp.float32),
        })
    return params


def prepare_params(params, n_head):
    """One-time kernel-ready param prep: stack layers, fold scales, cast bf16,
    pad the vocab to a lane-dense multiple of 128."""
    d_model = params["emb"].shape[1]
    d_head = d_model // n_head
    n_token = params["dec_w"].shape[1]
    v_pad = _round_up(n_token, 128)

    def stack(name):
        return jnp.stack([lp[name] for lp in params["layers"]])

    # Fold 1/sqrt(d_head) into the Q columns of the fused QKV projection.
    col_scale = jnp.concatenate([
        jnp.full((d_model,), 1.0 / math.sqrt(d_head), jnp.float32),
        jnp.ones((2 * d_model,), jnp.float32)])
    wqkv = (stack("wqkv") * col_scale).astype(jnp.bfloat16)
    bqkv = stack("bqkv") * col_scale

    prep = {
        "n_layers": len(params["layers"]),
        "n_token": n_token,
        # sqrt(d_model) embedding scale folded into the table.
        "emb_scaled": params["emb"] * math.sqrt(d_model),
        "pe": params["pe"],
        "wqkv": wqkv, "bqkv": bqkv,
        "wo": stack("wo").astype(jnp.bfloat16), "bo": stack("bo"),
        "ln1w": stack("ln1w"), "ln1b": stack("ln1b"),
        "w1": stack("w1").astype(jnp.bfloat16), "b1": stack("b1"),
        "w2": stack("w2").astype(jnp.bfloat16), "b2": stack("b2"),
        "ln2w": stack("ln2w"), "ln2b": stack("ln2b"),
        "dec_w": jnp.pad(params["dec_w"],
                         ((0, 0), (0, v_pad - n_token))).astype(jnp.bfloat16),
        "dec_b": jnp.pad(params["dec_b"], ((0, 0), (0, v_pad - n_token))),
    }
    return prep


def transformer_forward(src, src_mask, prep, n_head):
    """src: (S, B) int32 token ids; src_mask: (S, S) additive float mask.
    Returns (S, B, n_token) float32."""
    S, B = src.shape
    n_token = prep["n_token"]
    # Embedding gather directly in batch-major order: only the tiny int32 id
    # matrix is transposed, never the (S, B, D) activations.
    # TODO(synk): embedding lookup stays in plain JAX (gather).
    x = prep["emb_scaled"][src.T]                 # (B, S, D), sqrt(d_model) folded
    pe = prep["pe"][:S]                           # (S, D); added inside the kernel
    logits = fused_forward(x, pe, src_mask, prep, n_head)   # (B, S, V_pad)
    # Module contract: [seq_len, batch, n_token].
    return jnp.transpose(logits[:, :, :n_token], (1, 0, 2))


if __name__ == "__main__":
    # Small, TPU-friendly shapes (d_model lane-aligned to 128).
    n_token, d_model, n_head, d_hid, n_layers = 50, 128, 4, 256, 2
    S, B = 8, 2

    key = jax.random.PRNGKey(0)
    pkey, skey = jax.random.split(key)
    params = init_params(pkey, n_token, d_model, n_head, d_hid, n_layers, max_len=64)
    prep = prepare_params(params, n_head)

    src = jax.random.randint(skey, (S, B), 0, n_token, dtype=jnp.int32)
    # Causal mask like torch's generate_square_subsequent_mask (-1e9 instead of
    # -inf; the mask add stays in f32 inside the kernel).
    src_mask = jnp.where(jnp.triu(jnp.ones((S, S), jnp.bool_), k=1),
                         jnp.float32(-1e9), jnp.float32(0.0))

    out = transformer_forward(src, src_mask, prep, n_head)
    out = jax.block_until_ready(out)
    assert out.shape == (S, B, n_token)
    assert bool(jnp.all(jnp.isfinite(out)))
    print("KERNEL_OK")
</pallas_src>

<mosaic_0001>
module attributes {stable_mosaic.version = 11 : i64} {
  func.func @_fused_forward_kernel(%arg0: i32, %arg1: memref<1x8x128xf32, #tpu.memory_space<vmem>>, %arg2: memref<8x128xf32, #tpu.memory_space<vmem>>, %arg3: memref<8x8xf32, #tpu.memory_space<vmem>>, %arg4: memref<2x128x384xbf16, #tpu.memory_space<vmem>>, %arg5: memref<2x1x384xf32, #tpu.memory_space<vmem>>, %arg6: memref<2x128x128xbf16, #tpu.memory_space<vmem>>, %arg7: memref<2x1x128xf32, #tpu.memory_space<vmem>>, %arg8: memref<2x1x128xf32, #tpu.memory_space<vmem>>, %arg9: memref<2x1x128xf32, #tpu.memory_space<vmem>>, %arg10: memref<2x128x256xbf16, #tpu.memory_space<vmem>>, %arg11: memref<2x1x256xf32, #tpu.memory_space<vmem>>, %arg12: memref<2x256x128xbf16, #tpu.memory_space<vmem>>, %arg13: memref<2x1x128xf32, #tpu.memory_space<vmem>>, %arg14: memref<2x1x128xf32, #tpu.memory_space<vmem>>, %arg15: memref<2x1x128xf32, #tpu.memory_space<vmem>>, %arg16: memref<128x128xbf16, #tpu.memory_space<vmem>>, %arg17: memref<1x128xf32, #tpu.memory_space<vmem>>, %arg18: memref<1x8x128xf32, #tpu.memory_space<vmem>>) attributes {dimension_semantics = [#tpu.dimension_semantics<parallel>], iteration_bounds = array<i64: 2>, scalar_prefetch = 0 : i64, scratch_operands = 0 : i64, tpu.core_type = #tpu.core_type<tc>, window_params = [{transform_indices = @transform_0, window_bounds = array<i64: 1, 8, 128>}, {pipeline_mode = #tpu.pipeline_mode<synchronous>, transform_indices = @transform_1, window_bounds = array<i64: 8, 128>}, {pipeline_mode = #tpu.pipeline_mode<synchronous>, transform_indices = @transform_2, window_bounds = array<i64: 8, 8>}, {pipeline_mode = #tpu.pipeline_mode<synchronous>, transform_indices = @transform_3, window_bounds = array<i64: 2, 128, 384>}, {pipeline_mode = #tpu.pipeline_mode<synchronous>, transform_indices = @transform_4, window_bounds = array<i64: 2, 1, 384>}, {pipeline_mode = #tpu.pipeline_mode<synchronous>, transform_indices = @transform_5, window_bounds = array<i64: 2, 128, 128>}, {pipeline_mode = #tpu.pipeline_mode<synchronous>, transform_indices = @transform_6, window_bounds = array<i64: 2, 1, 128>}, {pipeline_mode = #tpu.pipeline_mode<synchronous>, transform_indices = @transform_7, window_bounds = array<i64: 2, 1, 128>}, {pipeline_mode = #tpu.pipeline_mode<synchronous>, transform_indices = @transform_8, window_bounds = array<i64: 2, 1, 128>}, {pipeline_mode = #tpu.pipeline_mode<synchronous>, transform_indices = @transform_9, window_bounds = array<i64: 2, 128, 256>}, {pipeline_mode = #tpu.pipeline_mode<synchronous>, transform_indices = @transform_10, window_bounds = array<i64: 2, 1, 256>}, {pipeline_mode = #tpu.pipeline_mode<synchronous>, transform_indices = @transform_11, window_bounds = array<i64: 2, 256, 128>}, {pipeline_mode = #tpu.pipeline_mode<synchronous>, transform_indices = @transform_12, window_bounds = array<i64: 2, 1, 128>}, {pipeline_mode = #tpu.pipeline_mode<synchronous>, transform_indices = @transform_13, window_bounds = array<i64: 2, 1, 128>}, {pipeline_mode = #tpu.pipeline_mode<synchronous>, transform_indices = @transform_14, window_bounds = array<i64: 2, 1, 128>}, {pipeline_mode = #tpu.pipeline_mode<synchronous>, transform_indices = @transform_15, window_bounds = array<i64: 128, 128>}, {pipeline_mode = #tpu.pipeline_mode<synchronous>, transform_indices = @transform_16, window_bounds = array<i64: 1, 128>}, {transform_indices = @transform_17, window_bounds = array<i64: 1, 8, 128>}]} {
    %c0 = arith.constant 0 : index
    %c0_0 = arith.constant 0 : index
    %0 = vector.load %arg3[%c0, %c0_0] : memref<8x8xf32, #tpu.memory_space<vmem>>, vector<8x8xf32>
    %c0_1 = arith.constant 0 : index
    %c0_2 = arith.constant 0 : index
    %c0_3 = arith.constant 0 : index
    %1 = vector.load %arg1[%c0_1, %c0_2, %c0_3] : memref<1x8x128xf32, #tpu.memory_space<vmem>>, vector<1x8x128xf32>
    %c0_4 = arith.constant 0 : index
    %c0_5 = arith.constant 0 : index
    %2 = vector.load %arg2[%c0_4, %c0_5] : memref<8x128xf32, #tpu.memory_space<vmem>>, vector<8x128xf32>
    %3 = vector.shape_cast %2 : vector<8x128xf32> to vector<1x8x128xf32>
    %4 = arith.addf %1, %3 : vector<1x8x128xf32>
    %5 = vector.shape_cast %4 : vector<1x8x128xf32> to vector<8x128xf32>
    %6 = arith.truncf %5 : vector<8x128xf32> to vector<8x128xbf16>
    %c0_6 = arith.constant 0 : index
    %c0_7 = arith.constant 0 : index
    %c0_8 = arith.constant 0 : index
    %7 = vector.load %arg4[%c0_6, %c0_7, %c0_8] : memref<2x128x384xbf16, #tpu.memory_space<vmem>>, vector<1x128x384xbf16>
    %8 = vector.shape_cast %7 : vector<1x128x384xbf16> to vector<128x384xbf16>
    %cst = arith.constant dense<0.000000e+00> : vector<8x384xf32>
    %9 = tpu.matmul %6, %8, %cst {dimension_numbers = #tpu.dot_dimension_numbers<[1], [0], [0], [1], [0, 0, 1, 1], [], []>} : vector<8x128xbf16>, vector<128x384xbf16>, vector<8x384xf32> -> vector<8x384xf32>
    %c0_9 = arith.constant 0 : index
    %c0_10 = arith.constant 0 : index
    %c0_11 = arith.constant 0 : index
    %10 = vector.load %arg5[%c0_9, %c0_10, %c0_11] : memref<2x1x384xf32, #tpu.memory_space<vmem>>, vector<1x1x384xf32>
    %11 = vector.shape_cast %10 : vector<1x1x384xf32> to vector<1x384xf32>
    %12 = vector.broadcast %11 : vector<1x384xf32> to vector<8x384xf32>
    %13 = arith.addf %9, %12 : vector<8x384xf32>
    %14 = vector.shape_cast %13 : vector<8x384xf32> to vector<1x8x384xf32>
    %c0_12 = arith.constant 0 : index
    %c0_13 = arith.constant 0 : index
    %c0_14 = arith.constant 0 : index
    %15 = vector.load %arg6[%c0_12, %c0_13, %c0_14] : memref<2x128x128xbf16, #tpu.memory_space<vmem>>, vector<1x128x128xbf16>
    %16 = vector.shape_cast %15 : vector<1x128x128xbf16> to vector<128x128xbf16>
    %cst_15 = arith.constant 0.000000e+00 : f32
    %17 = vector.broadcast %cst_15 : f32 to vector<8x128xf32>
    %18 = vector.extract_strided_slice %14 {offsets = [0, 0, 0], sizes = [1, 8, 32], strides = [1, 1, 1]} : vector<1x8x384xf32> to vector<1x8x32xf32>
    %19 = arith.truncf %18 : vector<1x8x32xf32> to vector<1x8x32xbf16>
    %20 = vector.extract_strided_slice %14 {offsets = [0, 0, 128], sizes = [1, 8, 32], strides = [1, 1, 1]} : vector<1x8x384xf32> to vector<1x8x32xf32>
    %21 = arith.truncf %20 : vector<1x8x32xf32> to vector<1x8x32xbf16>
    %22 = vector.extract_strided_slice %14 {offsets = [0, 0, 256], sizes = [1, 8, 32], strides = [1, 1, 1]} : vector<1x8x384xf32> to vector<1x8x32xf32>
    %23 = arith.truncf %22 : vector<1x8x32xf32> to vector<1x8x32xbf16>
    "tpu.trace_start"() <{level = 10 : i32, message = "bqd,bkd->bqk"}> : () -> ()
    %cst_16 = arith.constant dense<0.000000e+00> : vector<1x8x8xf32>
    %24 = tpu.matmul %19, %21, %cst_16 {dimension_numbers = #tpu.dot_dimension_numbers<[2], [2], [1], [1], [0, 0, 0, 1, 1, 1], [0], [0]>} : vector<1x8x32xbf16>, vector<1x8x32xbf16>, vector<1x8x8xf32> -> vector<1x8x8xf32>
    "tpu.trace_stop"() : () -> ()
    %25 = vector.shape_cast %0 : vector<8x8xf32> to vector<1x8x8xf32>
    %26 = arith.addf %24, %25 : vector<1x8x8xf32>
    %cst_17 = arith.constant dense<0xFF800000> : vector<1x8xf32>
    %27 = vector.multi_reduction <maximumf>, %26, %cst_17 [2] : vector<1x8x8xf32> to vector<1x8xf32>
    %28 = vector.shape_cast %27 : vector<1x8xf32> to vector<1x8x1xf32>
    %29 = vector.broadcast %28 : vector<1x8x1xf32> to vector<1x8x8xf32>
    %30 = arith.subf %26, %29 : vector<1x8x8xf32>
    %31 = math.exp %30 : vector<1x8x8xf32>
    %cst_18 = arith.constant dense<0.000000e+00> : vector<1x8xf32>
    %32 = vector.multi_reduction <add>, %31, %cst_18 [2] : vector<1x8x8xf32> to vector<1x8xf32>
    %33 = vector.shape_cast %32 : vector<1x8xf32> to vector<1x8x1xf32>
    %34 = tpu.reciprocal %33 {approx = true} : vector<1x8x1xf32> -> vector<1x8x1xf32>
    %35 = vector.broadcast %34 : vector<1x8x1xf32> to vector<1x8x8xf32>
    %36 = arith.mulf %31, %35 : vector<1x8x8xf32>
    %37 = arith.truncf %36 : vector<1x8x8xf32> to vector<1x8x8xbf16>
    "tpu.trace_start"() <{level = 10 : i32, message = "bqk,bkd->bqd"}> : () -> ()
    %cst_19 = arith.constant dense<0.000000e+00> : vector<1x8x32xf32>
    %38 = tpu.matmul %37, %23, %cst_19 {dimension_numbers = #tpu.dot_dimension_numbers<[2], [1], [1], [2], [0, 0, 0, 1, 1, 2], [0], [0]>} : vector<1x8x8xbf16>, vector<1x8x32xbf16>, vector<1x8x32xf32> -> vector<1x8x32xf32>
    "tpu.trace_stop"() : () -> ()
    %39 = vector.shape_cast %38 : vector<1x8x32xf32> to vector<8x32xf32>
    %40 = arith.truncf %39 : vector<8x32xf32> to vector<8x32xbf16>
    %41 = vector.extract_strided_slice %16 {offsets = [0, 0], sizes = [32, 128], strides = [1, 1]} : vector<128x128xbf16> to vector<32x128xbf16>
    %cst_20 = arith.constant dense<0.000000e+00> : vector<8x128xf32>
    %42 = tpu.matmul %40, %41, %cst_20 {dimension_numbers = #tpu.dot_dimension_numbers<[1], [0], [0], [1], [0, 0, 1, 1], [], []>} : vector<8x32xbf16>, vector<32x128xbf16>, vector<8x128xf32> -> vector<8x128xf32>
    %43 = arith.addf %17, %42 : vector<8x128xf32>
    %44 = vector.extract_strided_slice %14 {offsets = [0, 0, 32], sizes = [1, 8, 32], strides = [1, 1, 1]} : vector<1x8x384xf32> to vector<1x8x32xf32>
    %45 = arith.truncf %44 : vector<1x8x32xf32> to vector<1x8x32xbf16>
    %46 = vector.extract_strided_slice %14 {offsets = [0, 0, 160], sizes = [1, 8, 32], strides = [1, 1, 1]} : vector<1x8x384xf32> to vector<1x8x32xf32>
    %47 = arith.truncf %46 : vector<1x8x32xf32> to vector<1x8x32xbf16>
    %48 = vector.extract_strided_slice %14 {offsets = [0, 0, 288], sizes = [1, 8, 32], strides = [1, 1, 1]} : vector<1x8x384xf32> to vector<1x8x32xf32>
    %49 = arith.truncf %48 : vector<1x8x32xf32> to vector<1x8x32xbf16>
    "tpu.trace_start"() <{level = 10 : i32, message = "bqd,bkd->bqk"}> : () -> ()
    %cst_21 = arith.constant dense<0.000000e+00> : vector<1x8x8xf32>
    %50 = tpu.matmul %45, %47, %cst_21 {dimension_numbers = #tpu.dot_dimension_numbers<[2], [2], [1], [1], [0, 0, 0, 1, 1, 1], [0], [0]>} : vector<1x8x32xbf16>, vector<1x8x32xbf16>, vector<1x8x8xf32> -> vector<1x8x8xf32>
    "tpu.trace_stop"() : () -> ()
    %51 = vector.shape_cast %0 : vector<8x8xf32> to vector<1x8x8xf32>
    %52 = arith.addf %50, %51 : vector<1x8x8xf32>
    %cst_22 = arith.constant dense<0xFF800000> : vector<1x8xf32>
    %53 = vector.multi_reduction <maximumf>, %52, %cst_22 [2] : vector<1x8x8xf32> to vector<1x8xf32>
    %54 = vector.shape_cast %53 : vector<1x8xf32> to vector<1x8x1xf32>
    %55 = vector.broadcast %54 : vector<1x8x1xf32> to vector<1x8x8xf32>
    %56 = arith.subf %52, %55 : vector<1x8x8xf32>
    %57 = math.exp %56 : vector<1x8x8xf32>
    %cst_23 = arith.constant dense<0.000000e+00> : vector<1x8xf32>
    %58 = vector.multi_reduction <add>, %57, %cst_23 [2] : vector<1x8x8xf32> to vector<1x8xf32>
    %59 = vector.shape_cast %58 : vector<1x8xf32> to vector<1x8x1xf32>
    %60 = tpu.reciprocal %59 {approx = true} : vector<1x8x1xf32> -> vector<1x8x1xf32>
    %61 = vector.broadcast %60 : vector<1x8x1xf32> to vector<1x8x8xf32>
    %62 = arith.mulf %57, %61 : vector<1x8x8xf32>
    %63 = arith.truncf %62 : vector<1x8x8xf32> to vector<1x8x8xbf16>
    "tpu.trace_start"() <{level = 10 : i32, message = "bqk,bkd->bqd"}> : () -> ()
    %cst_24 = arith.constant dense<0.000000e+00> : vector<1x8x32xf32>
    %64 = tpu.matmul %63, %49, %cst_24 {dimension_numbers = #tpu.dot_dimension_numbers<[2], [1], [1], [2], [0, 0, 0, 1, 1, 2], [0], [0]>} : vector<1x8x8xbf16>, vector<1x8x32xbf16>, vector<1x8x32xf32> -> vector<1x8x32xf32>
    "tpu.trace_stop"() : () -> ()
    %65 = vector.shape_cast %64 : vector<1x8x32xf32> to vector<8x32xf32>
    %66 = arith.truncf %65 : vector<8x32xf32> to vector<8x32xbf16>
    %67 = vector.extract_strided_slice %16 {offsets = [32, 0], sizes = [32, 128], strides = [1, 1]} : vector<128x128xbf16> to vector<32x128xbf16>
    %cst_25 = arith.constant dense<0.000000e+00> : vector<8x128xf32>
    %68 = tpu.matmul %66, %67, %cst_25 {dimension_numbers = #tpu.dot_dimension_numbers<[1], [0], [0], [1], [0, 0, 1, 1], [], []>} : vector<8x32xbf16>, vector<32x128xbf16>, vector<8x128xf32> -> vector<8x128xf32>
    %69 = arith.addf %43, %68 : vector<8x128xf32>
    %70 = vector.extract_strided_slice %14 {offsets = [0, 0, 64], sizes = [1, 8, 32], strides = [1, 1, 1]} : vector<1x8x384xf32> to vector<1x8x32xf32>
    %71 = arith.truncf %70 : vector<1x8x32xf32> to vector<1x8x32xbf16>
    %72 = vector.extract_strided_slice %14 {offsets = [0, 0, 192], sizes = [1, 8, 32], strides = [1, 1, 1]} : vector<1x8x384xf32> to vector<1x8x32xf32>
    %73 = arith.truncf %72 : vector<1x8x32xf32> to vector<1x8x32xbf16>
    %74 = vector.extract_strided_slice %14 {offsets = [0, 0, 320], sizes = [1, 8, 32], strides = [1, 1, 1]} : vector<1x8x384xf32> to vector<1x8x32xf32>
    %75 = arith.truncf %74 : vector<1x8x32xf32> to vector<1x8x32xbf16>
    "tpu.trace_start"() <{level = 10 : i32, message = "bqd,bkd->bqk"}> : () -> ()
    %cst_26 = arith.constant dense<0.000000e+00> : vector<1x8x8xf32>
    %76 = tpu.matmul %71, %73, %cst_26 {dimension_numbers = #tpu.dot_dimension_numbers<[2], [2], [1], [1], [0, 0, 0, 1, 1, 1], [0], [0]>} : vector<1x8x32xbf16>, vector<1x8x32xbf16>, vector<1x8x8xf32> -> vector<1x8x8xf32>
    "tpu.trace_stop"() : () -> ()
    %77 = vector.shape_cast %0 : vector<8x8xf32> to vector<1x8x8xf32>
    %78 = arith.addf %76, %77 : vector<1x8x8xf32>
    %cst_27 = arith.constant dense<0xFF800000> : vector<1x8xf32>
    %79 = vector.multi_reduction <maximumf>, %78, %cst_27 [2] : vector<1x8x8xf32> to vector<1x8xf32>
    %80 = vector.shape_cast %79 : vector<1x8xf32> to vector<1x8x1xf32>
    %81 = vector.broadcast %80 : vector<1x8x1xf32> to vector<1x8x8xf32>
    %82 = arith.subf %78, %81 : vector<1x8x8xf32>
    %83 = math.exp %82 : vector<1x8x8xf32>
    %cst_28 = arith.constant dense<0.000000e+00> : vector<1x8xf32>
    %84 = vector.multi_reduction <add>, %83, %cst_28 [2] : vector<1x8x8xf32> to vector<1x8xf32>
    %85 = vector.shape_cast %84 : vector<1x8xf32> to vector<1x8x1xf32>
    %86 = tpu.reciprocal %85 {approx = true} : vector<1x8x1xf32> -> vector<1x8x1xf32>
    %87 = vector.broadcast %86 : vector<1x8x1xf32> to vector<1x8x8xf32>
    %88 = arith.mulf %83, %87 : vector<1x8x8xf32>
    %89 = arith.truncf %88 : vector<1x8x8xf32> to vector<1x8x8xbf16>
    "tpu.trace_start"() <{level = 10 : i32, message = "bqk,bkd->bqd"}> : () -> ()
    %cst_29 = arith.constant dense<0.000000e+00> : vector<1x8x32xf32>
    %90 = tpu.matmul %89, %75, %cst_29 {dimension_numbers = #tpu.dot_dimension_numbers<[2], [1], [1], [2], [0, 0, 0, 1, 1, 2], [0], [0]>} : vector<1x8x8xbf16>, vector<1x8x32xbf16>, vector<1x8x32xf32> -> vector<1x8x32xf32>
    "tpu.trace_stop"() : () -> ()
    %91 = vector.shape_cast %90 : vector<1x8x32xf32> to vector<8x32xf32>
    %92 = arith.truncf %91 : vector<8x32xf32> to vector<8x32xbf16>
    %93 = vector.extract_strided_slice %16 {offsets = [64, 0], sizes = [32, 128], strides = [1, 1]} : vector<128x128xbf16> to vector<32x128xbf16>
    %cst_30 = arith.constant dense<0.000000e+00> : vector<8x128xf32>
    %94 = tpu.matmul %92, %93, %cst_30 {dimension_numbers = #tpu.dot_dimension_numbers<[1], [0], [0], [1], [0, 0, 1, 1], [], []>} : vector<8x32xbf16>, vector<32x128xbf16>, vector<8x128xf32> -> vector<8x128xf32>
    %95 = arith.addf %69, %94 : vector<8x128xf32>
    %96 = vector.extract_strided_slice %14 {offsets = [0, 0, 96], sizes = [1, 8, 32], strides = [1, 1, 1]} : vector<1x8x384xf32> to vector<1x8x32xf32>
    %97 = arith.truncf %96 : vector<1x8x32xf32> to vector<1x8x32xbf16>
    %98 = vector.extract_strided_slice %14 {offsets = [0, 0, 224], sizes = [1, 8, 32], strides = [1, 1, 1]} : vector<1x8x384xf32> to vector<1x8x32xf32>
    %99 = arith.truncf %98 : vector<1x8x32xf32> to vector<1x8x32xbf16>
    %100 = vector.extract_strided_slice %14 {offsets = [0, 0, 352], sizes = [1, 8, 32], strides = [1, 1, 1]} : vector<1x8x384xf32> to vector<1x8x32xf32>
    %101 = arith.truncf %100 : vector<1x8x32xf32> to vector<1x8x32xbf16>
    "tpu.trace_start"() <{level = 10 : i32, message = "bqd,bkd->bqk"}> : () -> ()
    %cst_31 = arith.constant dense<0.000000e+00> : vector<1x8x8xf32>
    %102 = tpu.matmul %97, %99, %cst_31 {dimension_numbers = #tpu.dot_dimension_numbers<[2], [2], [1], [1], [0, 0, 0, 1, 1, 1], [0], [0]>} : vector<1x8x32xbf16>, vector<1x8x32xbf16>, vector<1x8x8xf32> -> vector<1x8x8xf32>
    "tpu.trace_stop"() : () -> ()
    %103 = vector.shape_cast %0 : vector<8x8xf32> to vector<1x8x8xf32>
    %104 = arith.addf %102, %103 : vector<1x8x8xf32>
    %cst_32 = arith.constant dense<0xFF800000> : vector<1x8xf32>
    %105 = vector.multi_reduction <maximumf>, %104, %cst_32 [2] : vector<1x8x8xf32> to vector<1x8xf32>
    %106 = vector.shape_cast %105 : vector<1x8xf32> to vector<1x8x1xf32>
    %107 = vector.broadcast %106 : vector<1x8x1xf32> to vector<1x8x8xf32>
    %108 = arith.subf %104, %107 : vector<1x8x8xf32>
    %109 = math.exp %108 : vector<1x8x8xf32>
    %cst_33 = arith.constant dense<0.000000e+00> : vector<1x8xf32>
    %110 = vector.multi_reduction <add>, %109, %cst_33 [2] : vector<1x8x8xf32> to vector<1x8xf32>
    %111 = vector.shape_cast %110 : vector<1x8xf32> to vector<1x8x1xf32>
    %112 = tpu.reciprocal %111 {approx = true} : vector<1x8x1xf32> -> vector<1x8x1xf32>
    %113 = vector.broadcast %112 : vector<1x8x1xf32> to vector<1x8x8xf32>
    %114 = arith.mulf %109, %113 : vector<1x8x8xf32>
    %115 = arith.truncf %114 : vector<1x8x8xf32> to vector<1x8x8xbf16>
    "tpu.trace_start"() <{level = 10 : i32, message = "bqk,bkd->bqd"}> : () -> ()
    %cst_34 = arith.constant dense<0.000000e+00> : vector<1x8x32xf32>
    %116 = tpu.matmul %115, %101, %cst_34 {dimension_numbers = #tpu.dot_dimension_numbers<[2], [1], [1], [2], [0, 0, 0, 1, 1, 2], [0], [0]>} : vector<1x8x8xbf16>, vector<1x8x32xbf16>, vector<1x8x32xf32> -> vector<1x8x32xf32>
    "tpu.trace_stop"() : () -> ()
    %117 = vector.shape_cast %116 : vector<1x8x32xf32> to vector<8x32xf32>
    %118 = arith.truncf %117 : vector<8x32xf32> to vector<8x32xbf16>
    %119 = vector.extract_strided_slice %16 {offsets = [96, 0], sizes = [32, 128], strides = [1, 1]} : vector<128x128xbf16> to vector<32x128xbf16>
    %cst_35 = arith.constant dense<0.000000e+00> : vector<8x128xf32>
    %120 = tpu.matmul %118, %119, %cst_35 {dimension_numbers = #tpu.dot_dimension_numbers<[1], [0], [0], [1], [0, 0, 1, 1], [], []>} : vector<8x32xbf16>, vector<32x128xbf16>, vector<8x128xf32> -> vector<8x128xf32>
    %121 = arith.addf %95, %120 : vector<8x128xf32>
    %c0_36 = arith.constant 0 : index
    %c0_37 = arith.constant 0 : index
    %c0_38 = arith.constant 0 : index
    %122 = vector.load %arg7[%c0_36, %c0_37, %c0_38] : memref<2x1x128xf32, #tpu.memory_space<vmem>>, vector<1x1x128xf32>
    %123 = vector.shape_cast %122 : vector<1x1x128xf32> to vector<1x128xf32>
    %124 = vector.broadcast %123 : vector<1x128xf32> to vector<8x128xf32>
    %125 = arith.addf %121, %124 : vector<8x128xf32>
    %126 = arith.addf %5, %125 : vector<8x128xf32>
    %c0_39 = arith.constant 0 : index
    %c0_40 = arith.constant 0 : index
    %c0_41 = arith.constant 0 : index
    %127 = vector.load %arg8[%c0_39, %c0_40, %c0_41] : memref<2x1x128xf32, #tpu.memory_space<vmem>>, vector<1x1x128xf32>
    %128 = vector.shape_cast %127 : vector<1x1x128xf32> to vector<1x128xf32>
    %c0_42 = arith.constant 0 : index
    %c0_43 = arith.constant 0 : index
    %c0_44 = arith.constant 0 : index
    %129 = vector.load %arg9[%c0_42, %c0_43, %c0_44] : memref<2x1x128xf32, #tpu.memory_space<vmem>>, vector<1x1x128xf32>
    %130 = vector.shape_cast %129 : vector<1x1x128xf32> to vector<1x128xf32>
    %cst_45 = arith.constant dense<0.000000e+00> : vector<8xf32>
    %131 = vector.multi_reduction <add>, %126, %cst_45 [1] : vector<8x128xf32> to vector<8xf32>
    %132 = vector.shape_cast %131 : vector<8xf32> to vector<8x1xf32>
    %cst_46 = arith.constant 1.280000e+02 : f32
    %133 = vector.broadcast %cst_46 : f32 to vector<8x1xf32>
    %134 = arith.divf %132, %133 : vector<8x1xf32>
    %135 = vector.broadcast %134 : vector<8x1xf32> to vector<8x128xf32>
    %136 = arith.subf %126, %135 : vector<8x128xf32>
    %137 = arith.mulf %136, %136 : vector<8x128xf32>
    %cst_47 = arith.constant dense<0.000000e+00> : vector<8xf32>
    %138 = vector.multi_reduction <add>, %137, %cst_47 [1] : vector<8x128xf32> to vector<8xf32>
    %139 = vector.shape_cast %138 : vector<8xf32> to vector<8x1xf32>
    %cst_48 = arith.constant 1.280000e+02 : f32
    %140 = vector.broadcast %cst_48 : f32 to vector<8x1xf32>
    %141 = arith.divf %139, %140 : vector<8x1xf32>
    %142 = vector.broadcast %134 : vector<8x1xf32> to vector<8x128xf32>
    %143 = arith.subf %126, %142 : vector<8x128xf32>
    %cst_49 = arith.constant 9.99999974E-6 : f32
    %144 = vector.broadcast %cst_49 : f32 to vector<8x1xf32>
    %145 = arith.addf %141, %144 : vector<8x1xf32>
    %146 = math.rsqrt %145 : vector<8x1xf32>
    %147 = vector.broadcast %146 : vector<8x1xf32> to vector<8x128xf32>
    %148 = arith.mulf %143, %147 : vector<8x128xf32>
    %149 = vector.broadcast %128 : vector<1x128xf32> to vector<8x128xf32>
    %150 = arith.mulf %148, %149 : vector<8x128xf32>
    %151 = vector.broadcast %130 : vector<1x128xf32> to vector<8x128xf32>
    %152 = arith.addf %150, %151 : vector<8x128xf32>
    %153 = arith.truncf %152 : vector<8x128xf32> to vector<8x128xbf16>
    %c0_50 = arith.constant 0 : index
    %c0_51 = arith.constant 0 : index
    %c0_52 = arith.constant 0 : index
    %154 = vector.load %arg10[%c0_50, %c0_51, %c0_52] : memref<2x128x256xbf16, #tpu.memory_space<vmem>>, vector<1x128x256xbf16>
    %155 = vector.shape_cast %154 : vector<1x128x256xbf16> to vector<128x256xbf16>
    %cst_53 = arith.constant dense<0.000000e+00> : vector<8x256xf32>
    %156 = tpu.matmul %153, %155, %cst_53 {dimension_numbers = #tpu.dot_dimension_numbers<[1], [0], [0], [1], [0, 0, 1, 1], [], []>} : vector<8x128xbf16>, vector<128x256xbf16>, vector<8x256xf32> -> vector<8x256xf32>
    %c0_54 = arith.constant 0 : index
    %c0_55 = arith.constant 0 : index
    %c0_56 = arith.constant 0 : index
    %157 = vector.load %arg11[%c0_54, %c0_55, %c0_56] : memref<2x1x256xf32, #tpu.memory_space<vmem>>, vector<1x1x256xf32>
    %158 = vector.shape_cast %157 : vector<1x1x256xf32> to vector<1x256xf32>
    %159 = vector.broadcast %158 : vector<1x256xf32> to vector<8x256xf32>
    %160 = arith.addf %156, %159 : vector<8x256xf32>
    %cst_57 = arith.constant 0.000000e+00 : f32
    %161 = vector.broadcast %cst_57 : f32 to vector<8x256xf32>
    %162 = arith.maximumf %160, %161 : vector<8x256xf32>
    %163 = arith.truncf %162 : vector<8x256xf32> to vector<8x256xbf16>
    %c0_58 = arith.constant 0 : index
    %c0_59 = arith.constant 0 : index
    %c0_60 = arith.constant 0 : index
    %164 = vector.load %arg12[%c0_58, %c0_59, %c0_60] : memref<2x256x128xbf16, #tpu.memory_space<vmem>>, vector<1x256x128xbf16>
    %165 = vector.shape_cast %164 : vector<1x256x128xbf16> to vector<256x128xbf16>
    %cst_61 = arith.constant dense<0.000000e+00> : vector<8x128xf32>
    %166 = tpu.matmul %163, %165, %cst_61 {dimension_numbers = #tpu.dot_dimension_numbers<[1], [0], [0], [1], [0, 0, 1, 1], [], []>} : vector<8x256xbf16>, vector<256x128xbf16>, vector<8x128xf32> -> vector<8x128xf32>
    %c0_62 = arith.constant 0 : index
    %c0_63 = arith.constant 0 : index
    %c0_64 = arith.constant 0 : index
    %167 = vector.load %arg13[%c0_62, %c0_63, %c0_64] : memref<2x1x128xf32, #tpu.memory_space<vmem>>, vector<1x1x128xf32>
    %168 = vector.shape_cast %167 : vector<1x1x128xf32> to vector<1x128xf32>
    %169 = vector.broadcast %168 : vector<1x128xf32> to vector<8x128xf32>
    %170 = arith.addf %166, %169 : vector<8x128xf32>
    %171 = arith.addf %152, %170 : vector<8x128xf32>
    %c0_65 = arith.constant 0 : index
    %c0_66 = arith.constant 0 : index
    %c0_67 = arith.constant 0 : index
    %172 = vector.load %arg14[%c0_65, %c0_66, %c0_67] : memref<2x1x128xf32, #tpu.memory_space<vmem>>, vector<1x1x128xf32>
    %173 = vector.shape_cast %172 : vector<1x1x128xf32> to vector<1x128xf32>
    %c0_68 = arith.constant 0 : index
    %c0_69 = arith.constant 0 : index
    %c0_70 = arith.constant 0 : index
    %174 = vector.load %arg15[%c0_68, %c0_69, %c0_70] : memref<2x1x128xf32, #tpu.memory_space<vmem>>, vector<1x1x128xf32>
    %175 = vector.shape_cast %174 : vector<1x1x128xf32> to vector<1x128xf32>
    %cst_71 = arith.constant dense<0.000000e+00> : vector<8xf32>
    %176 = vector.multi_reduction <add>, %171, %cst_71 [1] : vector<8x128xf32> to vector<8xf32>
    %177 = vector.shape_cast %176 : vector<8xf32> to vector<8x1xf32>
    %cst_72 = arith.constant 1.280000e+02 : f32
    %178 = vector.broadcast %cst_72 : f32 to vector<8x1xf32>
    %179 = arith.divf %177, %178 : vector<8x1xf32>
    %180 = vector.broadcast %179 : vector<8x1xf32> to vector<8x128xf32>
    %181 = arith.subf %171, %180 : vector<8x128xf32>
    %182 = arith.mulf %181, %181 : vector<8x128xf32>
    %cst_73 = arith.constant dense<0.000000e+00> : vector<8xf32>
    %183 = vector.multi_reduction <add>, %182, %cst_73 [1] : vector<8x128xf32> to vector<8xf32>
    %184 = vector.shape_cast %183 : vector<8xf32> to vector<8x1xf32>
    %cst_74 = arith.constant 1.280000e+02 : f32
    %185 = vector.broadcast %cst_74 : f32 to vector<8x1xf32>
    %186 = arith.divf %184, %185 : vector<8x1xf32>
    %187 = vector.broadcast %179 : vector<8x1xf32> to vector<8x128xf32>
    %188 = arith.subf %171, %187 : vector<8x128xf32>
    %cst_75 = arith.constant 9.99999974E-6 : f32
    %189 = vector.broadcast %cst_75 : f32 to vector<8x1xf32>
    %190 = arith.addf %186, %189 : vector<8x1xf32>
    %191 = math.rsqrt %190 : vector<8x1xf32>
    %192 = vector.broadcast %191 : vector<8x1xf32> to vector<8x128xf32>
    %193 = arith.mulf %188, %192 : vector<8x128xf32>
    %194 = vector.broadcast %173 : vector<1x128xf32> to vector<8x128xf32>
    %195 = arith.mulf %193, %194 : vector<8x128xf32>
    %196 = vector.broadcast %175 : vector<1x128xf32> to vector<8x128xf32>
    %197 = arith.addf %195, %196 : vector<8x128xf32>
    %198 = arith.truncf %197 : vector<8x128xf32> to vector<8x128xbf16>
    %c1 = arith.constant 1 : index
    %c0_76 = arith.constant 0 : index
    %c0_77 = arith.constant 0 : index
    %199 = vector.load %arg4[%c1, %c0_76, %c0_77] : memref<2x128x384xbf16, #tpu.memory_space<vmem>>, vector<1x128x384xbf16>
    %200 = vector.shape_cast %199 : vector<1x128x384xbf16> to vector<128x384xbf16>
    %cst_78 = arith.constant dense<0.000000e+00> : vector<8x384xf32>
    %201 = tpu.matmul %198, %200, %cst_78 {dimension_numbers = #tpu.dot_dimension_numbers<[1], [0], [0], [1], [0, 0, 1, 1], [], []>} : vector<8x128xbf16>, vector<128x384xbf16>, vector<8x384xf32> -> vector<8x384xf32>
    %c1_79 = arith.constant 1 : index
    %c0_80 = arith.constant 0 : index
    %c0_81 = arith.constant 0 : index
    %202 = vector.load %arg5[%c1_79, %c0_80, %c0_81] : memref<2x1x384xf32, #tpu.memory_space<vmem>>, vector<1x1x384xf32>
    %203 = vector.shape_cast %202 : vector<1x1x384xf32> to vector<1x384xf32>
    %204 = vector.broadcast %203 : vector<1x384xf32> to vector<8x384xf32>
    %205 = arith.addf %201, %204 : vector<8x384xf32>
    %206 = vector.shape_cast %205 : vector<8x384xf32> to vector<1x8x384xf32>
    %c1_82 = arith.constant 1 : index
    %c0_83 = arith.constant 0 : index
    %c0_84 = arith.constant 0 : index
    %207 = vector.load %arg6[%c1_82, %c0_83, %c0_84] : memref<2x128x128xbf16, #tpu.memory_space<vmem>>, vector<1x128x128xbf16>
    %208 = vector.shape_cast %207 : vector<1x128x128xbf16> to vector<128x128xbf16>
    %cst_85 = arith.constant 0.000000e+00 : f32
    %209 = vector.broadcast %cst_85 : f32 to vector<8x128xf32>
    %210 = vector.extract_strided_slice %206 {offsets = [0, 0, 0], sizes = [1, 8, 32], strides = [1, 1, 1]} : vector<1x8x384xf32> to vector<1x8x32xf32>
    %211 = arith.truncf %210 : vector<1x8x32xf32> to vector<1x8x32xbf16>
    %212 = vector.extract_strided_slice %206 {offsets = [0, 0, 128], sizes = [1, 8, 32], strides = [1, 1, 1]} : vector<1x8x384xf32> to vector<1x8x32xf32>
    %213 = arith.truncf %212 : vector<1x8x32xf32> to vector<1x8x32xbf16>
    %214 = vector.extract_strided_slice %206 {offsets = [0, 0, 256], sizes = [1, 8, 32], strides = [1, 1, 1]} : vector<1x8x384xf32> to vector<1x8x32xf32>
    %215 = arith.truncf %214 : vector<1x8x32xf32> to vector<1x8x32xbf16>
    "tpu.trace_start"() <{level = 10 : i32, message = "bqd,bkd->bqk"}> : () -> ()
    %cst_86 = arith.constant dense<0.000000e+00> : vector<1x8x8xf32>
    %216 = tpu.matmul %211, %213, %cst_86 {dimension_numbers = #tpu.dot_dimension_numbers<[2], [2], [1], [1], [0, 0, 0, 1, 1, 1], [0], [0]>} : vector<1x8x32xbf16>, vector<1x8x32xbf16>, vector<1x8x8xf32> -> vector<1x8x8xf32>
    "tpu.trace_stop"() : () -> ()
    %217 = vector.shape_cast %0 : vector<8x8xf32> to vector<1x8x8xf32>
    %218 = arith.addf %216, %217 : vector<1x8x8xf32>
    %cst_87 = arith.constant dense<0xFF800000> : vector<1x8xf32>
    %219 = vector.multi_reduction <maximumf>, %218, %cst_87 [2] : vector<1x8x8xf32> to vector<1x8xf32>
    %220 = vector.shape_cast %219 : vector<1x8xf32> to vector<1x8x1xf32>
    %221 = vector.broadcast %220 : vector<1x8x1xf32> to vector<1x8x8xf32>
    %222 = arith.subf %218, %221 : vector<1x8x8xf32>
    %223 = math.exp %222 : vector<1x8x8xf32>
    %cst_88 = arith.constant dense<0.000000e+00> : vector<1x8xf32>
    %224 = vector.multi_reduction <add>, %223, %cst_88 [2] : vector<1x8x8xf32> to vector<1x8xf32>
    %225 = vector.shape_cast %224 : vector<1x8xf32> to vector<1x8x1xf32>
    %226 = tpu.reciprocal %225 {approx = true} : vector<1x8x1xf32> -> vector<1x8x1xf32>
    %227 = vector.broadcast %226 : vector<1x8x1xf32> to vector<1x8x8xf32>
    %228 = arith.mulf %223, %227 : vector<1x8x8xf32>
    %229 = arith.truncf %228 : vector<1x8x8xf32> to vector<1x8x8xbf16>
    "tpu.trace_start"() <{level = 10 : i32, message = "bqk,bkd->bqd"}> : () -> ()
    %cst_89 = arith.constant dense<0.000000e+00> : vector<1x8x32xf32>
    %230 = tpu.matmul %229, %215, %cst_89 {dimension_numbers = #tpu.dot_dimension_numbers<[2], [1], [1], [2], [0, 0, 0, 1, 1, 2], [0], [0]>} : vector<1x8x8xbf16>, vector<1x8x32xbf16>, vector<1x8x32xf32> -> vector<1x8x32xf32>
    "tpu.trace_stop"() : () -> ()
    %231 = vector.shape_cast %230 : vector<1x8x32xf32> to vector<8x32xf32>
    %232 = arith.truncf %231 : vector<8x32xf32> to vector<8x32xbf16>
    %233 = vector.extract_strided_slice %208 {offsets = [0, 0], sizes = [32, 128], strides = [1, 1]} : vector<128x128xbf16> to vector<32x128xbf16>
    %cst_90 = arith.constant dense<0.000000e+00> : vector<8x128xf32>
    %234 = tpu.matmul %232, %233, %cst_90 {dimension_numbers = #tpu.dot_dimension_numbers<[1], [0], [0], [1], [0, 0, 1, 1], [], []>} : vector<8x32xbf16>, vector<32x128xbf16>, vector<8x128xf32> -> vector<8x128xf32>
    %235 = arith.addf %209, %234 : vector<8x128xf32>
    %236 = vector.extract_strided_slice %206 {offsets = [0, 0, 32], sizes = [1, 8, 32], strides = [1, 1, 1]} : vector<1x8x384xf32> to vector<1x8x32xf32>
    %237 = arith.truncf %236 : vector<1x8x32xf32> to vector<1x8x32xbf16>
    %238 = vector.extract_strided_slice %206 {offsets = [0, 0, 160], sizes = [1, 8, 32], strides = [1, 1, 1]} : vector<1x8x384xf32> to vector<1x8x32xf32>
    %239 = arith.truncf %238 : vector<1x8x32xf32> to vector<1x8x32xbf16>
    %240 = vector.extract_strided_slice %206 {offsets = [0, 0, 288], sizes = [1, 8, 32], strides = [1, 1, 1]} : vector<1x8x384xf32> to vector<1x8x32xf32>
    %241 = arith.truncf %240 : vector<1x8x32xf32> to vector<1x8x32xbf16>
    "tpu.trace_start"() <{level = 10 : i32, message = "bqd,bkd->bqk"}> : () -> ()
    %cst_91 = arith.constant dense<0.000000e+00> : vector<1x8x8xf32>
    %242 = tpu.matmul %237, %239, %cst_91 {dimension_numbers = #tpu.dot_dimension_numbers<[2], [2], [1], [1], [0, 0, 0, 1, 1, 1], [0], [0]>} : vector<1x8x32xbf16>, vector<1x8x32xbf16>, vector<1x8x8xf32> -> vector<1x8x8xf32>
    "tpu.trace_stop"() : () -> ()
    %243 = vector.shape_cast %0 : vector<8x8xf32> to vector<1x8x8xf32>
    %244 = arith.addf %242, %243 : vector<1x8x8xf32>
    %cst_92 = arith.constant dense<0xFF800000> : vector<1x8xf32>
    %245 = vector.multi_reduction <maximumf>, %244, %cst_92 [2] : vector<1x8x8xf32> to vector<1x8xf32>
    %246 = vector.shape_cast %245 : vector<1x8xf32> to vector<1x8x1xf32>
    %247 = vector.broadcast %246 : vector<1x8x1xf32> to vector<1x8x8xf32>
    %248 = arith.subf %244, %247 : vector<1x8x8xf32>
    %249 = math.exp %248 : vector<1x8x8xf32>
    %cst_93 = arith.constant dense<0.000000e+00> : vector<1x8xf32>
    %250 = vector.multi_reduction <add>, %249, %cst_93 [2] : vector<1x8x8xf32> to vector<1x8xf32>
    %251 = vector.shape_cast %250 : vector<1x8xf32> to vector<1x8x1xf32>
    %252 = tpu.reciprocal %251 {approx = true} : vector<1x8x1xf32> -> vector<1x8x1xf32>
    %253 = vector.broadcast %252 : vector<1x8x1xf32> to vector<1x8x8xf32>
    %254 = arith.mulf %249, %253 : vector<1x8x8xf32>
    %255 = arith.truncf %254 : vector<1x8x8xf32> to vector<1x8x8xbf16>
    "tpu.trace_start"() <{level = 10 : i32, message = "bqk,bkd->bqd"}> : () -> ()
    %cst_94 = arith.constant dense<0.000000e+00> : vector<1x8x32xf32>
    %256 = tpu.matmul %255, %241, %cst_94 {dimension_numbers = #tpu.dot_dimension_numbers<[2], [1], [1], [2], [0, 0, 0, 1, 1, 2], [0], [0]>} : vector<1x8x8xbf16>, vector<1x8x32xbf16>, vector<1x8x32xf32> -> vector<1x8x32xf32>
    "tpu.trace_stop"() : () -> ()
    %257 = vector.shape_cast %256 : vector<1x8x32xf32> to vector<8x32xf32>
    %258 = arith.truncf %257 : vector<8x32xf32> to vector<8x32xbf16>
    %259 = vector.extract_strided_slice %208 {offsets = [32, 0], sizes = [32, 128], strides = [1, 1]} : vector<128x128xbf16> to vector<32x128xbf16>
    %cst_95 = arith.constant dense<0.000000e+00> : vector<8x128xf32>
    %260 = tpu.matmul %258, %259, %cst_95 {dimension_numbers = #tpu.dot_dimension_numbers<[1], [0], [0], [1], [0, 0, 1, 1], [], []>} : vector<8x32xbf16>, vector<32x128xbf16>, vector<8x128xf32> -> vector<8x128xf32>
    %261 = arith.addf %235, %260 : vector<8x128xf32>
    %262 = vector.extract_strided_slice %206 {offsets = [0, 0, 64], sizes = [1, 8, 32], strides = [1, 1, 1]} : vector<1x8x384xf32> to vector<1x8x32xf32>
    %263 = arith.truncf %262 : vector<1x8x32xf32> to vector<1x8x32xbf16>
    %264 = vector.extract_strided_slice %206 {offsets = [0, 0, 192], sizes = [1, 8, 32], strides = [1, 1, 1]} : vector<1x8x384xf32> to vector<1x8x32xf32>
    %265 = arith.truncf %264 : vector<1x8x32xf32> to vector<1x8x32xbf16>
    %266 = vector.extract_strided_slice %206 {offsets = [0, 0, 320], sizes = [1, 8, 32], strides = [1, 1, 1]} : vector<1x8x384xf32> to vector<1x8x32xf32>
    %267 = arith.truncf %266 : vector<1x8x32xf32> to vector<1x8x32xbf16>
    "tpu.trace_start"() <{level = 10 : i32, message = "bqd,bkd->bqk"}> : () -> ()
    %cst_96 = arith.constant dense<0.000000e+00> : vector<1x8x8xf32>
    %268 = tpu.matmul %263, %265, %cst_96 {dimension_numbers = #tpu.dot_dimension_numbers<[2], [2], [1], [1], [0, 0, 0, 1, 1, 1], [0], [0]>} : vector<1x8x32xbf16>, vector<1x8x32xbf16>, vector<1x8x8xf32> -> vector<1x8x8xf32>
    "tpu.trace_stop"() : () -> ()
    %269 = vector.shape_cast %0 : vector<8x8xf32> to vector<1x8x8xf32>
    %270 = arith.addf %268, %269 : vector<1x8x8xf32>
    %cst_97 = arith.constant dense<0xFF800000> : vector<1x8xf32>
    %271 = vector.multi_reduction <maximumf>, %270, %cst_97 [2] : vector<1x8x8xf32> to vector<1x8xf32>
    %272 = vector.shape_cast %271 : vector<1x8xf32> to vector<1x8x1xf32>
    %273 = vector.broadcast %272 : vector<1x8x1xf32> to vector<1x8x8xf32>
    %274 = arith.subf %270, %273 : vector<1x8x8xf32>
    %275 = math.exp %274 : vector<1x8x8xf32>
    %cst_98 = arith.constant dense<0.000000e+00> : vector<1x8xf32>
    %276 = vector.multi_reduction <add>, %275, %cst_98 [2] : vector<1x8x8xf32> to vector<1x8xf32>
    %277 = vector.shape_cast %276 : vector<1x8xf32> to vector<1x8x1xf32>
    %278 = tpu.reciprocal %277 {approx = true} : vector<1x8x1xf32> -> vector<1x8x1xf32>
    %279 = vector.broadcast %278 : vector<1x8x1xf32> to vector<1x8x8xf32>
    %280 = arith.mulf %275, %279 : vector<1x8x8xf32>
    %281 = arith.truncf %280 : vector<1x8x8xf32> to vector<1x8x8xbf16>
    "tpu.trace_start"() <{level = 10 : i32, message = "bqk,bkd->bqd"}> : () -> ()
    %cst_99 = arith.constant dense<0.000000e+00> : vector<1x8x32xf32>
    %282 = tpu.matmul %281, %267, %cst_99 {dimension_numbers = #tpu.dot_dimension_numbers<[2], [1], [1], [2], [0, 0, 0, 1, 1, 2], [0], [0]>} : vector<1x8x8xbf16>, vector<1x8x32xbf16>, vector<1x8x32xf32> -> vector<1x8x32xf32>
    "tpu.trace_stop"() : () -> ()
    %283 = vector.shape_cast %282 : vector<1x8x32xf32> to vector<8x32xf32>
    %284 = arith.truncf %283 : vector<8x32xf32> to vector<8x32xbf16>
    %285 = vector.extract_strided_slice %208 {offsets = [64, 0], sizes = [32, 128], strides = [1, 1]} : vector<128x128xbf16> to vector<32x128xbf16>
    %cst_100 = arith.constant dense<0.000000e+00> : vector<8x128xf32>
    %286 = tpu.matmul %284, %285, %cst_100 {dimension_numbers = #tpu.dot_dimension_numbers<[1], [0], [0], [1], [0, 0, 1, 1], [], []>} : vector<8x32xbf16>, vector<32x128xbf16>, vector<8x128xf32> -> vector<8x128xf32>
    %287 = arith.addf %261, %286 : vector<8x128xf32>
    %288 = vector.extract_strided_slice %206 {offsets = [0, 0, 96], sizes = [1, 8, 32], strides = [1, 1, 1]} : vector<1x8x384xf32> to vector<1x8x32xf32>
    %289 = arith.truncf %288 : vector<1x8x32xf32> to vector<1x8x32xbf16>
    %290 = vector.extract_strided_slice %206 {offsets = [0, 0, 224], sizes = [1, 8, 32], strides = [1, 1, 1]} : vector<1x8x384xf32> to vector<1x8x32xf32>
    %291 = arith.truncf %290 : vector<1x8x32xf32> to vector<1x8x32xbf16>
    %292 = vector.extract_strided_slice %206 {offsets = [0, 0, 352], sizes = [1, 8, 32], strides = [1, 1, 1]} : vector<1x8x384xf32> to vector<1x8x32xf32>
    %293 = arith.truncf %292 : vector<1x8x32xf32> to vector<1x8x32xbf16>
    "tpu.trace_start"() <{level = 10 : i32, message = "bqd,bkd->bqk"}> : () -> ()
    %cst_101 = arith.constant dense<0.000000e+00> : vector<1x8x8xf32>
    %294 = tpu.matmul %289, %291, %cst_101 {dimension_numbers = #tpu.dot_dimension_numbers<[2], [2], [1], [1], [0, 0, 0, 1, 1, 1], [0], [0]>} : vector<1x8x32xbf16>, vector<1x8x32xbf16>, vector<1x8x8xf32> -> vector<1x8x8xf32>
    "tpu.trace_stop"() : () -> ()
    %295 = vector.shape_cast %0 : vector<8x8xf32> to vector<1x8x8xf32>
    %296 = arith.addf %294, %295 : vector<1x8x8xf32>
    %cst_102 = arith.constant dense<0xFF800000> : vector<1x8xf32>
    %297 = vector.multi_reduction <maximumf>, %296, %cst_102 [2] : vector<1x8x8xf32> to vector<1x8xf32>
    %298 = vector.shape_cast %297 : vector<1x8xf32> to vector<1x8x1xf32>
    %299 = vector.broadcast %298 : vector<1x8x1xf32> to vector<1x8x8xf32>
    %300 = arith.subf %296, %299 : vector<1x8x8xf32>
    %301 = math.exp %300 : vector<1x8x8xf32>
    %cst_103 = arith.constant dense<0.000000e+00> : vector<1x8xf32>
    %302 = vector.multi_reduction <add>, %301, %cst_103 [2] : vector<1x8x8xf32> to vector<1x8xf32>
    %303 = vector.shape_cast %302 : vector<1x8xf32> to vector<1x8x1xf32>
    %304 = tpu.reciprocal %303 {approx = true} : vector<1x8x1xf32> -> vector<1x8x1xf32>
    %305 = vector.broadcast %304 : vector<1x8x1xf32> to vector<1x8x8xf32>
    %306 = arith.mulf %301, %305 : vector<1x8x8xf32>
    %307 = arith.truncf %306 : vector<1x8x8xf32> to vector<1x8x8xbf16>
    "tpu.trace_start"() <{level = 10 : i32, message = "bqk,bkd->bqd"}> : () -> ()
    %cst_104 = arith.constant dense<0.000000e+00> : vector<1x8x32xf32>
    %308 = tpu.matmul %307, %293, %cst_104 {dimension_numbers = #tpu.dot_dimension_numbers<[2], [1], [1], [2], [0, 0, 0, 1, 1, 2], [0], [0]>} : vector<1x8x8xbf16>, vector<1x8x32xbf16>, vector<1x8x32xf32> -> vector<1x8x32xf32>
    "tpu.trace_stop"() : () -> ()
    %309 = vector.shape_cast %308 : vector<1x8x32xf32> to vector<8x32xf32>
    %310 = arith.truncf %309 : vector<8x32xf32> to vector<8x32xbf16>
    %311 = vector.extract_strided_slice %208 {offsets = [96, 0], sizes = [32, 128], strides = [1, 1]} : vector<128x128xbf16> to vector<32x128xbf16>
    %cst_105 = arith.constant dense<0.000000e+00> : vector<8x128xf32>
    %312 = tpu.matmul %310, %311, %cst_105 {dimension_numbers = #tpu.dot_dimension_numbers<[1], [0], [0], [1], [0, 0, 1, 1], [], []>} : vector<8x32xbf16>, vector<32x128xbf16>, vector<8x128xf32> -> vector<8x128xf32>
    %313 = arith.addf %287, %312 : vector<8x128xf32>
    %c1_106 = arith.constant 1 : index
    %c0_107 = arith.constant 0 : index
    %c0_108 = arith.constant 0 : index
    %314 = vector.load %arg7[%c1_106, %c0_107, %c0_108] : memref<2x1x128xf32, #tpu.memory_space<vmem>>, vector<1x1x128xf32>
    %315 = vector.shape_cast %314 : vector<1x1x128xf32> to vector<1x128xf32>
    %316 = vector.broadcast %315 : vector<1x128xf32> to vector<8x128xf32>
    %317 = arith.addf %313, %316 : vector<8x128xf32>
    %318 = arith.addf %197, %317 : vector<8x128xf32>
    %c1_109 = arith.constant 1 : index
    %c0_110 = arith.constant 0 : index
    %c0_111 = arith.constant 0 : index
    %319 = vector.load %arg8[%c1_109, %c0_110, %c0_111] : memref<2x1x128xf32, #tpu.memory_space<vmem>>, vector<1x1x128xf32>
    %320 = vector.shape_cast %319 : vector<1x1x128xf32> to vector<1x128xf32>
    %c1_112 = arith.constant 1 : index
    %c0_113 = arith.constant 0 : index
    %c0_114 = arith.constant 0 : index
    %321 = vector.load %arg9[%c1_112, %c0_113, %c0_114] : memref<2x1x128xf32, #tpu.memory_space<vmem>>, vector<1x1x128xf32>
    %322 = vector.shape_cast %321 : vector<1x1x128xf32> to vector<1x128xf32>
    %cst_115 = arith.constant dense<0.000000e+00> : vector<8xf32>
    %323 = vector.multi_reduction <add>, %318, %cst_115 [1] : vector<8x128xf32> to vector<8xf32>
    %324 = vector.shape_cast %323 : vector<8xf32> to vector<8x1xf32>
    %cst_116 = arith.constant 1.280000e+02 : f32
    %325 = vector.broadcast %cst_116 : f32 to vector<8x1xf32>
    %326 = arith.divf %324, %325 : vector<8x1xf32>
    %327 = vector.broadcast %326 : vector<8x1xf32> to vector<8x128xf32>
    %328 = arith.subf %318, %327 : vector<8x128xf32>
    %329 = arith.mulf %328, %328 : vector<8x128xf32>
    %cst_117 = arith.constant dense<0.000000e+00> : vector<8xf32>
    %330 = vector.multi_reduction <add>, %329, %cst_117 [1] : vector<8x128xf32> to vector<8xf32>
    %331 = vector.shape_cast %330 : vector<8xf32> to vector<8x1xf32>
    %cst_118 = arith.constant 1.280000e+02 : f32
    %332 = vector.broadcast %cst_118 : f32 to vector<8x1xf32>
    %333 = arith.divf %331, %332 : vector<8x1xf32>
    %334 = vector.broadcast %326 : vector<8x1xf32> to vector<8x128xf32>
    %335 = arith.subf %318, %334 : vector<8x128xf32>
    %cst_119 = arith.constant 9.99999974E-6 : f32
    %336 = vector.broadcast %cst_119 : f32 to vector<8x1xf32>
    %337 = arith.addf %333, %336 : vector<8x1xf32>
    %338 = math.rsqrt %337 : vector<8x1xf32>
    %339 = vector.broadcast %338 : vector<8x1xf32> to vector<8x128xf32>
    %340 = arith.mulf %335, %339 : vector<8x128xf32>
    %341 = vector.broadcast %320 : vector<1x128xf32> to vector<8x128xf32>
    %342 = arith.mulf %340, %341 : vector<8x128xf32>
    %343 = vector.broadcast %322 : vector<1x128xf32> to vector<8x128xf32>
    %344 = arith.addf %342, %343 : vector<8x128xf32>
    %345 = arith.truncf %344 : vector<8x128xf32> to vector<8x128xbf16>
    %c1_120 = arith.constant 1 : index
    %c0_121 = arith.constant 0 : index
    %c0_122 = arith.constant 0 : index
    %346 = vector.load %arg10[%c1_120, %c0_121, %c0_122] : memref<2x128x256xbf16, #tpu.memory_space<vmem>>, vector<1x128x256xbf16>
    %347 = vector.shape_cast %346 : vector<1x128x256xbf16> to vector<128x256xbf16>
    %cst_123 = arith.constant dense<0.000000e+00> : vector<8x256xf32>
    %348 = tpu.matmul %345, %347, %cst_123 {dimension_numbers = #tpu.dot_dimension_numbers<[1], [0], [0], [1], [0, 0, 1, 1], [], []>} : vector<8x128xbf16>, vector<128x256xbf16>, vector<8x256xf32> -> vector<8x256xf32>
    %c1_124 = arith.constant 1 : index
    %c0_125 = arith.constant 0 : index
    %c0_126 = arith.constant 0 : index
    %349 = vector.load %arg11[%c1_124, %c0_125, %c0_126] : memref<2x1x256xf32, #tpu.memory_space<vmem>>, vector<1x1x256xf32>
    %350 = vector.shape_cast %349 : vector<1x1x256xf32> to vector<1x256xf32>
    %351 = vector.broadcast %350 : vector<1x256xf32> to vector<8x256xf32>
    %352 = arith.addf %348, %351 : vector<8x256xf32>
    %cst_127 = arith.constant 0.000000e+00 : f32
    %353 = vector.broadcast %cst_127 : f32 to vector<8x256xf32>
    %354 = arith.maximumf %352, %353 : vector<8x256xf32>
    %355 = arith.truncf %354 : vector<8x256xf32> to vector<8x256xbf16>
    %c1_128 = arith.constant 1 : index
    %c0_129 = arith.constant 0 : index
    %c0_130 = arith.constant 0 : index
    %356 = vector.load %arg12[%c1_128, %c0_129, %c0_130] : memref<2x256x128xbf16, #tpu.memory_space<vmem>>, vector<1x256x128xbf16>
    %357 = vector.shape_cast %356 : vector<1x256x128xbf16> to vector<256x128xbf16>
    %cst_131 = arith.constant dense<0.000000e+00> : vector<8x128xf32>
    %358 = tpu.matmul %355, %357, %cst_131 {dimension_numbers = #tpu.dot_dimension_numbers<[1], [0], [0], [1], [0, 0, 1, 1], [], []>} : vector<8x256xbf16>, vector<256x128xbf16>, vector<8x128xf32> -> vector<8x128xf32>
    %c1_132 = arith.constant 1 : index
    %c0_133 = arith.constant 0 : index
    %c0_134 = arith.constant 0 : index
    %359 = vector.load %arg13[%c1_132, %c0_133, %c0_134] : memref<2x1x128xf32, #tpu.memory_space<vmem>>, vector<1x1x128xf32>
    %360 = vector.shape_cast %359 : vector<1x1x128xf32> to vector<1x128xf32>
    %361 = vector.broadcast %360 : vector<1x128xf32> to vector<8x128xf32>
    %362 = arith.addf %358, %361 : vector<8x128xf32>
    %363 = arith.addf %344, %362 : vector<8x128xf32>
    %c1_135 = arith.constant 1 : index
    %c0_136 = arith.constant 0 : index
    %c0_137 = arith.constant 0 : index
    %364 = vector.load %arg14[%c1_135, %c0_136, %c0_137] : memref<2x1x128xf32, #tpu.memory_space<vmem>>, vector<1x1x128xf32>
    %365 = vector.shape_cast %364 : vector<1x1x128xf32> to vector<1x128xf32>
    %c1_138 = arith.constant 1 : index
    %c0_139 = arith.constant 0 : index
    %c0_140 = arith.constant 0 : index
    %366 = vector.load %arg15[%c1_138, %c0_139, %c0_140] : memref<2x1x128xf32, #tpu.memory_space<vmem>>, vector<1x1x128xf32>
    %367 = vector.shape_cast %366 : vector<1x1x128xf32> to vector<1x128xf32>
    %cst_141 = arith.constant dense<0.000000e+00> : vector<8xf32>
    %368 = vector.multi_reduction <add>, %363, %cst_141 [1] : vector<8x128xf32> to vector<8xf32>
    %369 = vector.shape_cast %368 : vector<8xf32> to vector<8x1xf32>
    %cst_142 = arith.constant 1.280000e+02 : f32
    %370 = vector.broadcast %cst_142 : f32 to vector<8x1xf32>
    %371 = arith.divf %369, %370 : vector<8x1xf32>
    %372 = vector.broadcast %371 : vector<8x1xf32> to vector<8x128xf32>
    %373 = arith.subf %363, %372 : vector<8x128xf32>
    %374 = arith.mulf %373, %373 : vector<8x128xf32>
    %cst_143 = arith.constant dense<0.000000e+00> : vector<8xf32>
    %375 = vector.multi_reduction <add>, %374, %cst_143 [1] : vector<8x128xf32> to vector<8xf32>
    %376 = vector.shape_cast %375 : vector<8xf32> to vector<8x1xf32>
    %cst_144 = arith.constant 1.280000e+02 : f32
    %377 = vector.broadcast %cst_144 : f32 to vector<8x1xf32>
    %378 = arith.divf %376, %377 : vector<8x1xf32>
    %379 = vector.broadcast %371 : vector<8x1xf32> to vector<8x128xf32>
    %380 = arith.subf %363, %379 : vector<8x128xf32>
    %cst_145 = arith.constant 9.99999974E-6 : f32
    %381 = vector.broadcast %cst_145 : f32 to vector<8x1xf32>
    %382 = arith.addf %378, %381 : vector<8x1xf32>
    %383 = math.rsqrt %382 : vector<8x1xf32>
    %384 = vector.broadcast %383 : vector<8x1xf32> to vector<8x128xf32>
    %385 = arith.mulf %380, %384 : vector<8x128xf32>
    %386 = vector.broadcast %365 : vector<1x128xf32> to vector<8x128xf32>
    %387 = arith.mulf %385, %386 : vector<8x128xf32>
    %388 = vector.broadcast %367 : vector<1x128xf32> to vector<8x128xf32>
    %389 = arith.addf %387, %388 : vector<8x128xf32>
    %390 = arith.truncf %389 : vector<8x128xf32> to vector<8x128xbf16>
    %c0_146 = arith.constant 0 : index
    %c0_147 = arith.constant 0 : index
    %391 = vector.load %arg16[%c0_146, %c0_147] : memref<128x128xbf16, #tpu.memory_space<vmem>>, vector<128x128xbf16>
    %cst_148 = arith.constant dense<0.000000e+00> : vector<8x128xf32>
    %392 = tpu.matmul %390, %391, %cst_148 {dimension_numbers = #tpu.dot_dimension_numbers<[1], [0], [0], [1], [0, 0, 1, 1], [], []>} : vector<8x128xbf16>, vector<128x128xbf16>, vector<8x128xf32> -> vector<8x128xf32>
    %c0_149 = arith.constant 0 : index
    %c0_150 = arith.constant 0 : index
    %393 = vector.load %arg17[%c0_149, %c0_150] : memref<1x128xf32, #tpu.memory_space<vmem>>, vector<1x128xf32>
    %394 = vector.broadcast %393 : vector<1x128xf32> to vector<8x128xf32>
    %395 = arith.addf %392, %394 : vector<8x128xf32>
    %396 = vector.shape_cast %395 : vector<8x128xf32> to vector<1x8x128xf32>
    %c0_151 = arith.constant 0 : index
    %c0_152 = arith.constant 0 : index
    %c0_153 = arith.constant 0 : index
    %397 = vector.load %arg18[%c0_151, %c0_152, %c0_153] : memref<1x8x128xf32, #tpu.memory_space<vmem>>, vector<1x8x128xf32>
    tpu.vector_store %arg18[%c0_151, %c0_152, %c0_153], %396 {strides = array<i32>} : memref<1x8x128xf32, #tpu.memory_space<vmem>>, vector<1x8x128xf32>,
    return
  }
  func.func @transform_0(%arg0: i32) -> (i32, i32, i32) {
    %c0_i32 = arith.constant 0 : i32
    %c0_i32_0 = arith.constant 0 : i32
    %c0_i32_1 = arith.constant 0 : i32
    return %arg0, %c0_i32, %c0_i32_0 : i32, i32, i32
  }
  func.func @transform_1(%arg0: i32) -> (i32, i32) {
    %c0_i32 = arith.constant 0 : i32
    %c0_i32_0 = arith.constant 0 : i32
    %c0_i32_1 = arith.constant 0 : i32
    return %c0_i32, %c0_i32_0 : i32, i32
  }
  func.func @transform_2(%arg0: i32) -> (i32, i32) {
    %c0_i32 = arith.constant 0 : i32
    %c0_i32_0 = arith.constant 0 : i32
    %c0_i32_1 = arith.constant 0 : i32
    return %c0_i32, %c0_i32_0 : i32, i32
  }
  func.func @transform_3(%arg0: i32) -> (i32, i32, i32) {
    %c0_i32 = arith.constant 0 : i32
    %c0_i32_0 = arith.constant 0 : i32
    %c0_i32_1 = arith.constant 0 : i32
    %c0_i32_2 = arith.constant 0 : i32
    return %c0_i32, %c0_i32_0, %c0_i32_1 : i32, i32, i32
  }
  func.func @transform_4(%arg0: i32) -> (i32, i32, i32) {
    %c0_i32 = arith.constant 0 : i32
    %c0_i32_0 = arith.constant 0 : i32
    %c0_i32_1 = arith.constant 0 : i32
    %c0_i32_2 = arith.constant 0 : i32
    return %c0_i32, %c0_i32_0, %c0_i32_1 : i32, i32, i32
  }
  func.func @transform_5(%arg0: i32) -> (i32, i32, i32) {
    %c0_i32 = arith.constant 0 : i32
    %c0_i32_0 = arith.constant 0 : i32
    %c0_i32_1 = arith.constant 0 : i32
    %c0_i32_2 = arith.constant 0 : i32
    return %c0_i32, %c0_i32_0, %c0_i32_1 : i32, i32, i32
  }
  func.func @transform_6(%arg0: i32) -> (i32, i32, i32) {
    %c0_i32 = arith.constant 0 : i32
    %c0_i32_0 = arith.constant 0 : i32
    %c0_i32_1 = arith.constant 0 : i32
    %c0_i32_2 = arith.constant 0 : i32
    return %c0_i32, %c0_i32_0, %c0_i32_1 : i32, i32, i32
  }
  func.func @transform_7(%arg0: i32) -> (i32, i32, i32) {
    %c0_i32 = arith.constant 0 : i32
    %c0_i32_0 = arith.constant 0 : i32
    %c0_i32_1 = arith.constant 0 : i32
    %c0_i32_2 = arith.constant 0 : i32
    return %c0_i32, %c0_i32_0, %c0_i32_1 : i32, i32, i32
  }
  func.func @transform_8(%arg0: i32) -> (i32, i32, i32) {
    %c0_i32 = arith.constant 0 : i32
    %c0_i32_0 = arith.constant 0 : i32
    %c0_i32_1 = arith.constant 0 : i32
    %c0_i32_2 = arith.constant 0 : i32
    return %c0_i32, %c0_i32_0, %c0_i32_1 : i32, i32, i32
  }
  func.func @transform_9(%arg0: i32) -> (i32, i32, i32) {
    %c0_i32 = arith.constant 0 : i32
    %c0_i32_0 = arith.constant 0 : i32
    %c0_i32_1 = arith.constant 0 : i32
    %c0_i32_2 = arith.constant 0 : i32
    return %c0_i32, %c0_i32_0, %c0_i32_1 : i32, i32, i32
  }
  func.func @transform_10(%arg0: i32) -> (i32, i32, i32) {
    %c0_i32 = arith.constant 0 : i32
    %c0_i32_0 = arith.constant 0 : i32
    %c0_i32_1 = arith.constant 0 : i32
    %c0_i32_2 = arith.constant 0 : i32
    return %c0_i32, %c0_i32_0, %c0_i32_1 : i32, i32, i32
  }
  func.func @transform_11(%arg0: i32) -> (i32, i32, i32) {
    %c0_i32 = arith.constant 0 : i32
    %c0_i32_0 = arith.constant 0 : i32
    %c0_i32_1 = arith.constant 0 : i32
    %c0_i32_2 = arith.constant 0 : i32
    return %c0_i32, %c0_i32_0, %c0_i32_1 : i32, i32, i32
  }
  func.func @transform_12(%arg0: i32) -> (i32, i32, i32) {
    %c0_i32 = arith.constant 0 : i32
    %c0_i32_0 = arith.constant 0 : i32
    %c0_i32_1 = arith.constant 0 : i32
    %c0_i32_2 = arith.constant 0 : i32
    return %c0_i32, %c0_i32_0, %c0_i32_1 : i32, i32, i32
  }
  func.func @transform_13(%arg0: i32) -> (i32, i32, i32) {
    %c0_i32 = arith.constant 0 : i32
    %c0_i32_0 = arith.constant 0 : i32
    %c0_i32_1 = arith.constant 0 : i32
    %c0_i32_2 = arith.constant 0 : i32
    return %c0_i32, %c0_i32_0, %c0_i32_1 : i32, i32, i32
  }
  func.func @transform_14(%arg0: i32) -> (i32, i32, i32) {
    %c0_i32 = arith.constant 0 : i32
    %c0_i32_0 = arith.constant 0 : i32
    %c0_i32_1 = arith.constant 0 : i32
    %c0_i32_2 = arith.constant 0 : i32
    return %c0_i32, %c0_i32_0, %c0_i32_1 : i32, i32, i32
  }
  func.func @transform_15(%arg0: i32) -> (i32, i32) {
    %c0_i32 = arith.constant 0 : i32
    %c0_i32_0 = arith.constant 0 : i32
    %c0_i32_1 = arith.constant 0 : i32
    return %c0_i32, %c0_i32_0 : i32, i32
  }
  func.func @transform_16(%arg0: i32) -> (i32, i32) {
    %c0_i32 = arith.constant 0 : i32
    %c0_i32_0 = arith.constant 0 : i32
    %c0_i32_1 = arith.constant 0 : i32
    return %c0_i32, %c0_i32_0 : i32, i32
  }
  func.func @transform_17(%arg0: i32) -> (i32, i32, i32) {
    %c0_i32 = arith.constant 0 : i32
    %c0_i32_0 = arith.constant 0 : i32
    %c0_i32_1 = arith.constant 0 : i32
    return %arg0, %c0_i32, %c0_i32_0 : i32, i32, i32
  }
}

</mosaic_0001>

<llo_original>
// kernel: tpu_custom_call.1
$region0: #{tpu_custom_call.1}
  #allocation0 [shape = 'u32[]', space=smem, size = 0x4, offset = 0x4, fixed_abs, tag = 'smem constant byte address 0x4 - core index']
  #allocation1 [shape = 'u32[144,128]{1,0:T(1,128)}', space=vmem, size = 0x12000, scoped, tag = 'internal scratch']
  %s0 = inlined_call_operand.hbm [shape: f32[2,8,128], index: 0, kind: input, shape index: {}]
  %s1 = inlined_call_operand.hbm [shape: f32[8,128], index: 1, kind: input, shape index: {}]
  %s2 = inlined_call_operand.hbm [shape: f32[8,8], index: 2, kind: input, shape index: {}]
  %s3 = inlined_call_operand.hbm [shape: bf16[2,128,384], index: 3, kind: input, shape index: {}]
  %s4 = inlined_call_operand.vmem [shape: f32[2,1,384], index: 4, kind: input, shape index: {}]
  %s5 = inlined_call_operand.hbm [shape: bf16[2,128,128], index: 5, kind: input, shape index: {}]
  %s6 = inlined_call_operand.vmem [shape: f32[2,1,128], index: 6, kind: input, shape index: {}]
  %s7 = inlined_call_operand.vmem [shape: f32[2,1,128], index: 7, kind: input, shape index: {}]
  %s8 = inlined_call_operand.vmem [shape: f32[2,1,128], index: 8, kind: input, shape index: {}]
  %s9 = inlined_call_operand.hbm [shape: bf16[2,128,256], index: 9, kind: input, shape index: {}]
  %s10 = inlined_call_operand.vmem [shape: f32[2,1,256], index: 10, kind: input, shape index: {}]
  %s11 = inlined_call_operand.hbm [shape: bf16[2,256,128], index: 11, kind: input, shape index: {}]
  %s12 = inlined_call_operand.vmem [shape: f32[2,1,128], index: 12, kind: input, shape index: {}]
  %s13 = inlined_call_operand.vmem [shape: f32[2,1,128], index: 13, kind: input, shape index: {}]
  %s14 = inlined_call_operand.vmem [shape: f32[2,1,128], index: 14, kind: input, shape index: {}]
  %s15 = inlined_call_operand.hbm [shape: bf16[128,128], index: 15, kind: input, shape index: {}]
  %s16 = inlined_call_operand.vmem [shape: f32[1,128], index: 16, kind: input, shape index: {}]
  %s17 = inlined_call_operand.hbm [shape: f32[2,8,128], index: 17, kind: output, shape index: {}]
  %s18 = sld [smem:[#allocation0]]
  $region133: #{tpu_custom_call.1} parent=0
    _
  %s20 = ssub.s32 1, %s18
  %s21 = scalar_select 0, %s20, %s18
  $region1: #{tpu_custom_call.1} parent=0
    #allocation2 [shape = 'u8[8192]{0}', space=vmem, size = 0x2000, scoped, tag = 'input window, operand 0']
    #allocation3 [shape = 's32[2]{0}', space=sflag, size = 0x8, scoped, tag = 'scoped memory for tpu_custom_call.1']
    #allocation4 [shape = 's32[2]{0}', space=sflag, size = 0x8, scoped, tag = 'scoped memory for tpu_custom_call.1']
    #allocation5 [shape = 'u8[4096]{0}', space=vmem, size = 0x1000, scoped, tag = 'input window, operand 1, single buffered']
    #allocation6 [shape = 's32[1]{0}', space=sflag, size = 0x4, scoped, tag = 'scoped memory for tpu_custom_call.1']
    #allocation7 [shape = 'u8[4096]{0}', space=vmem, size = 0x1000, scoped, tag = 'input window, operand 2, single buffered']
    #allocation8 [shape = 'u8[196608]{0}', space=vmem, size = 0x30000, scoped, tag = 'input window, operand 3, single buffered']
    #allocation9 [shape = 's32[1]{0}', space=sflag, size = 0x4, scoped, tag = 'scoped memory for tpu_custom_call.1']
    #allocation10 [shape = 'u8[65536]{0}', space=vmem, size = 0x10000, scoped, tag = 'input window, operand 5, single buffered']
    #allocation11 [shape = 'u8[131072]{0}', space=vmem, size = 0x20000, scoped, tag = 'input window, operand 9, single buffered']
    #allocation12 [shape = 's32[1]{0}', space=sflag, size = 0x4, scoped, tag = 'scoped memory for tpu_custom_call.1']
    #allocation13 [shape = 'u8[131072]{0}', space=vmem, size = 0x20000, scoped, tag = 'input window, operand 11, single buffered']
    #allocation14 [shape = 'u8[32768]{0}', space=vmem, size = 0x8000, scoped, tag = 'input window, operand 15, single buffered']
    #allocation15 [shape = 's32[1]{0}', space=sflag, size = 0x4, scoped, tag = 'scoped memory for tpu_custom_call.1']
    #allocation16 [shape = 'u8[8192]{0}', space=vmem, size = 0x2000, scoped, tag = 'output window, operand 0']
    %22 = vsyncpa [#allocation3], 0
    %s23 = scalar_lea.sflag [#allocation3], 1
    %24 = vsyncpa %s23, 0
    %25 = vsyncpa [#allocation6], 0
    %26 = vsyncpa [#allocation9], 0
    %27 = vsyncpa [#allocation12], 0
    %28 = vsyncpa [#allocation15], 0
    %29 = vsyncpa [#allocation4], 0
    %s30 = scalar_lea.sflag [#allocation4], 1
    %31 = vsyncpa %s30, 0
    loop: start=0, step=1, limit=4
    $region2: #{tpu_custom_call.1} parent=1 // loop_pre_header
      _
    $region3: #{tpu_custom_call.1} parent=1 // loop_header
      %s33 = sphi 0, %s37
      %p34 = scmp.ge.s32.totalorder %s33, 4
      %s43 = sphi 0, %s45
      %s46 = sphi 0, %s43
      %s47 = sphi 0, %s46
      %s63 = sphi 0, %s47
      %s67 = sphi 0, %s67
      %s69 = sphi 0, %s67
      %s70 = sphi 0, %s69
      %s84 = sphi 0, %s70
      %s88 = sphi 0, %s88
      %s90 = sphi 0, %s88
      %s91 = sphi 0, %s90
      %s105 = sphi 0, %s91
      %s109 = sphi 0, %s109
      %s111 = sphi 0, %s109
      %s112 = sphi 0, %s111
      %s126 = sphi 0, %s112
      %s130 = sphi 0, %s130
      %s132 = sphi 0, %s130
      %s133 = sphi 0, %s132
      %s147 = sphi 0, %s133
      %s151 = sphi 0, %s151
      %s153 = sphi 0, %s151
      %s154 = sphi 0, %s153
      %s168 = sphi 0, %s154
      %s172 = sphi 0, %s172
      %s174 = sphi 0, %s172
      %s175 = sphi 0, %s174
      %s189 = sphi 0, %s175
      %s193 = sphi 0, %s193
      %s195 = sphi 0, %s193
      %s196 = sphi 0, %s195
      %s210 = sphi 0, %s196
      %s214 = sphi 0, %s214
      %s216 = sphi 0, %s214
      %s217 = sphi 0, %s216
      %s231 = sphi 0, %s217
      %s235 = sphi 0, %s235
      %s237 = sphi 0, %s235
      %s238 = sphi 0, %s237
      %s252 = sphi 0, %s238
      %s256 = sphi 0, %s256
      %s258 = sphi 0, %s256
      %s259 = sphi 0, %s258
      %s273 = sphi 0, %s259
      %s277 = sphi 0, %s277
      %s279 = sphi 0, %s277
      %s280 = sphi 0, %s279
      %s294 = sphi 0, %s280
      %s298 = sphi 0, %s298
      %s300 = sphi 0, %s298
      %s301 = sphi 0, %s300
      %s315 = sphi 0, %s301
      %s319 = sphi 0, %s319
      %s321 = sphi 0, %s319
      %s322 = sphi 0, %s321
      %s336 = sphi 0, %s322
      %s340 = sphi 0, %s340
      %s342 = sphi 0, %s340
      %s343 = sphi 0, %s342
      %s357 = sphi 0, %s343
      %s361 = sphi 0, %s361
      %s363 = sphi 0, %s361
      %s364 = sphi 0, %s363
      %s378 = sphi 0, %s364
      %s382 = sphi 0, %s382
      %s384 = sphi 0, %s382
      %s385 = sphi 0, %s384
      %s399 = sphi 0, %s385
      %s405 = sphi 0, %s407
      %s408 = sphi 0, %s405
      %s409 = sphi 0, %s408
      %s425 = sphi 0, %s409
    $region4: #{tpu_custom_call.1} parent=1 // loop_header_branch
      %36 = sbr.rel (%p34) target = $region8
    $region5: #{tpu_custom_call.1} parent=1 // loop_body
      %s38 = ssub.s32 %s33, 1
      %s39 = ssub.s32 %s33, 2
      %s40 = sadd.s32 %s33, 1
      %s41 = ssub.s32 %s33, %s40
      %p42 = scmp.eq.s32.totalorder %s41, 0
      %s44 = sadd.s32 %s43, 1
      %s45 = scalar_select %p42, %s43, %s44
      %p48 = pneg %p42
      %p49 = scmp.eq.s32.totalorder %s33, 1
      %p50 = por %p48, %p49
      %p51 = scmp.ne.s32.totalorder %s43, %s46
      %p52 = scmp.eq.s32.totalorder %s33, 0
      %p53 = por %p51, %p52
      %p54 = scmp.ne.s32.totalorder %s43, %s46
      %p55 = scmp.eq.s32.totalorder %s38, 1
      %p56 = por %p54, %p55
      %p57 = scmp.ne.s32.totalorder %s46, %s47
      %p58 = scmp.eq.s32.totalorder %s38, 0
      %p59 = por %p57, %p58
      %p60 = scmp.ne.s32.totalorder %s46, %s47
      %p61 = scmp.eq.s32.totalorder %s39, 1
      %p62 = por %p60, %p61
      %p64 = scmp.ne.s32.totalorder %s47, %s63
      %p65 = scmp.eq.s32.totalorder %s39, 0
      %p66 = por %p64, %p65
      %s68 = sadd.s32 %s67, 1
      %p71 = scmp.eq.s32.totalorder %s33, 1
      %p72 = scmp.ne.s32.totalorder %s67, %s69
      %p73 = scmp.eq.s32.totalorder %s33, 0
      %p74 = por %p72, %p73
      %p75 = scmp.ne.s32.totalorder %s67, %s69
      %p76 = scmp.eq.s32.totalorder %s38, 1
      %p77 = por %p75, %p76
      %p78 = scmp.ne.s32.totalorder %s69, %s70
      %p79 = scmp.eq.s32.totalorder %s38, 0
      %p80 = por %p78, %p79
      %p81 = scmp.ne.s32.totalorder %s69, %s70
      %p82 = scmp.eq.s32.totalorder %s39, 1
      %p83 = por %p81, %p82
      %p85 = scmp.ne.s32.totalorder %s70, %s84
      %p86 = scmp.eq.s32.totalorder %s39, 0
      %p87 = por %p85, %p86
      %s89 = sadd.s32 %s88, 1
      %p92 = scmp.eq.s32.totalorder %s33, 1
      %p93 = scmp.ne.s32.totalorder %s88, %s90
      %p94 = scmp.eq.s32.totalorder %s33, 0
      %p95 = por %p93, %p94
      %p96 = scmp.ne.s32.totalorder %s88, %s90
      %p97 = scmp.eq.s32.totalorder %s38, 1
      %p98 = por %p96, %p97
      %p99 = scmp.ne.s32.totalorder %s90, %s91
      %p100 = scmp.eq.s32.totalorder %s38, 0
      %p101 = por %p99, %p100
      %p102 = scmp.ne.s32.totalorder %s90, %s91
      %p103 = scmp.eq.s32.totalorder %s39, 1
      %p104 = por %p102, %p103
      %p106 = scmp.ne.s32.totalorder %s91, %s105
      %p107 = scmp.eq.s32.totalorder %s39, 0
      %p108 = por %p106, %p107
      %s110 = sadd.s32 %s109, 1
      %p113 = scmp.eq.s32.totalorder %s33, 1
      %p114 = scmp.ne.s32.totalorder %s109, %s111
      %p115 = scmp.eq.s32.totalorder %s33, 0
      %p116 = por %p114, %p115
      %p117 = scmp.ne.s32.totalorder %s109, %s111
      %p118 = scmp.eq.s32.totalorder %s38, 1
      %p119 = por %p117, %p118
      %p120 = scmp.ne.s32.totalorder %s111, %s112
      %p121 = scmp.eq.s32.totalorder %s38, 0
      %p122 = por %p120, %p121
      %p123 = scmp.ne.s32.totalorder %s111, %s112
      %p124 = scmp.eq.s32.totalorder %s39, 1
      %p125 = por %p123, %p124
      %p127 = scmp.ne.s32.totalorder %s112, %s126
      %p128 = scmp.eq.s32.totalorder %s39, 0
      %p129 = por %p127, %p128
      %s131 = sadd.s32 %s130, 1
      %p134 = scmp.eq.s32.totalorder %s33, 1
      %p135 = scmp.ne.s32.totalorder %s130, %s132
      %p136 = scmp.eq.s32.totalorder %s33, 0
      %p137 = por %p135, %p136
      %p138 = scmp.ne.s32.totalorder %s130, %s132
      %p139 = scmp.eq.s32.totalorder %s38, 1
      %p140 = por %p138, %p139
      %p141 = scmp.ne.s32.totalorder %s132, %s133
      %p142 = scmp.eq.s32.totalorder %s38, 0
      %p143 = por %p141, %p142
      %p144 = scmp.ne.s32.totalorder %s132, %s133
      %p145 = scmp.eq.s32.totalorder %s39, 1
      %p146 = por %p144, %p145
      %p148 = scmp.ne.s32.totalorder %s133, %s147
      %p149 = scmp.eq.s32.totalorder %s39, 0
      %p150 = por %p148, %p149
      %s152 = sadd.s32 %s151, 1
      %p155 = scmp.eq.s32.totalorder %s33, 1
      %p156 = scmp.ne.s32.totalorder %s151, %s153
      %p157 = scmp.eq.s32.totalorder %s33, 0
      %p158 = por %p156, %p157
      %p159 = scmp.ne.s32.totalorder %s151, %s153
      %p160 = scmp.eq.s32.totalorder %s38, 1
      %p161 = por %p159, %p160
      %p162 = scmp.ne.s32.totalorder %s153, %s154
      %p163 = scmp.eq.s32.totalorder %s38, 0
      %p164 = por %p162, %p163
      %p165 = scmp.ne.s32.totalorder %s153, %s154
      %p166 = scmp.eq.s32.totalorder %s39, 1
      %p167 = por %p165, %p166
      %p169 = scmp.ne.s32.totalorder %s154, %s168
      %p170 = scmp.eq.s32.totalorder %s39, 0
      %p171 = por %p169, %p170
      %s173 = sadd.s32 %s172, 1
      %p176 = scmp.eq.s32.totalorder %s33, 1
      %p177 = scmp.ne.s32.totalorder %s172, %s174
      %p178 = scmp.eq.s32.totalorder %s33, 0
      %p179 = por %p177, %p178
      %p180 = scmp.ne.s32.totalorder %s172, %s174
      %p181 = scmp.eq.s32.totalorder %s38, 1
      %p182 = por %p180, %p181
      %p183 = scmp.ne.s32.totalorder %s174, %s175
      %p184 = scmp.eq.s32.totalorder %s38, 0
      %p185 = por %p183, %p184
      %p186 = scmp.ne.s32.totalorder %s174, %s175
      %p187 = scmp.eq.s32.totalorder %s39, 1
      %p188 = por %p186, %p187
      %p190 = scmp.ne.s32.totalorder %s175, %s189
      %p191 = scmp.eq.s32.totalorder %s39, 0
      %p192 = por %p190, %p191
      %s194 = sadd.s32 %s193, 1
      %p197 = scmp.eq.s32.totalorder %s33, 1
      %p198 = scmp.ne.s32.totalorder %s193, %s195
      %p199 = scmp.eq.s32.totalorder %s33, 0
      %p200 = por %p198, %p199
      %p201 = scmp.ne.s32.totalorder %s193, %s195
      %p202 = scmp.eq.s32.totalorder %s38, 1
      %p203 = por %p201, %p202
      %p204 = scmp.ne.s32.totalorder %s195, %s196
      %p205 = scmp.eq.s32.totalorder %s38, 0
      %p206 = por %p204, %p205
      %p207 = scmp.ne.s32.totalorder %s195, %s196
      %p208 = scmp.eq.s32.totalorder %s39, 1
      %p209 = por %p207, %p208
      %p211 = scmp.ne.s32.totalorder %s196, %s210
      %p212 = scmp.eq.s32.totalorder %s39, 0
      %p213 = por %p211, %p212
      %s215 = sadd.s32 %s214, 1
      %p218 = scmp.eq.s32.totalorder %s33, 1
      %p219 = scmp.ne.s32.totalorder %s214, %s216
      %p220 = scmp.eq.s32.totalorder %s33, 0
      %p221 = por %p219, %p220
      %p222 = scmp.ne.s32.totalorder %s214, %s216
      %p223 = scmp.eq.s32.totalorder %s38, 1
      %p224 = por %p222, %p223
      %p225 = scmp.ne.s32.totalorder %s216, %s217
      %p226 = scmp.eq.s32.totalorder %s38, 0
      %p227 = por %p225, %p226
      %p228 = scmp.ne.s32.totalorder %s216, %s217
      %p229 = scmp.eq.s32.totalorder %s39, 1
      %p230 = por %p228, %p229
      %p232 = scmp.ne.s32.totalorder %s217, %s231
      %p233 = scmp.eq.s32.totalorder %s39, 0
      %p234 = por %p232, %p233
      %s236 = sadd.s32 %s235, 1
      %p239 = scmp.eq.s32.totalorder %s33, 1
      %p240 = scmp.ne.s32.totalorder %s235, %s237
      %p241 = scmp.eq.s32.totalorder %s33, 0
      %p242 = por %p240, %p241
      %p243 = scmp.ne.s32.totalorder %s235, %s237
      %p244 = scmp.eq.s32.totalorder %s38, 1
      %p245 = por %p243, %p244
      %p246 = scmp.ne.s32.totalorder %s237, %s238
      %p247 = scmp.eq.s32.totalorder %s38, 0
      %p248 = por %p246, %p247
      %p249 = scmp.ne.s32.totalorder %s237, %s238
      %p250 = scmp.eq.s32.totalorder %s39, 1
      %p251 = por %p249, %p250
      %p253 = scmp.ne.s32.totalorder %s238, %s252
      %p254 = scmp.eq.s32.totalorder %s39, 0
      %p255 = por %p253, %p254
      %s257 = sadd.s32 %s256, 1
      %p260 = scmp.eq.s32.totalorder %s33, 1
      %p261 = scmp.ne.s32.totalorder %s256, %s258
      %p262 = scmp.eq.s32.totalorder %s33, 0
      %p263 = por %p261, %p262
      %p264 = scmp.ne.s32.totalorder %s256, %s258
      %p265 = scmp.eq.s32.totalorder %s38, 1
      %p266 = por %p264, %p265
      %p267 = scmp.ne.s32.totalorder %s258, %s259
      %p268 = scmp.eq.s32.totalorder %s38, 0
      %p269 = por %p267, %p268
      %p270 = scmp.ne.s32.totalorder %s258, %s259
      %p271 = scmp.eq.s32.totalorder %s39, 1
      %p272 = por %p270, %p271
      %p274 = scmp.ne.s32.totalorder %s259, %s273
      %p275 = scmp.eq.s32.totalorder %s39, 0
      %p276 = por %p274, %p275
      %s278 = sadd.s32 %s277, 1
      %p281 = scmp.eq.s32.totalorder %s33, 1
      %p282 = scmp.ne.s32.totalorder %s277, %s279
      %p283 = scmp.eq.s32.totalorder %s33, 0
      %p284 = por %p282, %p283
      %p285 = scmp.ne.s32.totalorder %s277, %s279
      %p286 = scmp.eq.s32.totalorder %s38, 1
      %p287 = por %p285, %p286
      %p288 = scmp.ne.s32.totalorder %s279, %s280
      %p289 = scmp.eq.s32.totalorder %s38, 0
      %p290 = por %p288, %p289
      %p291 = scmp.ne.s32.totalorder %s279, %s280
      %p292 = scmp.eq.s32.totalorder %s39, 1
      %p293 = por %p291, %p292
      %p295 = scmp.ne.s32.totalorder %s280, %s294
      %p296 = scmp.eq.s32.totalorder %s39, 0
      %p297 = por %p295, %p296
      %s299 = sadd.s32 %s298, 1
      %p302 = scmp.eq.s32.totalorder %s33, 1
      %p303 = scmp.ne.s32.totalorder %s298, %s300
      %p304 = scmp.eq.s32.totalorder %s33, 0
      %p305 = por %p303, %p304
      %p306 = scmp.ne.s32.totalorder %s298, %s300
      %p307 = scmp.eq.s32.totalorder %s38, 1
      %p308 = por %p306, %p307
      %p309 = scmp.ne.s32.totalorder %s300, %s301
      %p310 = scmp.eq.s32.totalorder %s38, 0
      %p311 = por %p309, %p310
      %p312 = scmp.ne.s32.totalorder %s300, %s301
      %p313 = scmp.eq.s32.totalorder %s39, 1
      %p314 = por %p312, %p313
      %p316 = scmp.ne.s32.totalorder %s301, %s315
      %p317 = scmp.eq.s32.totalorder %s39, 0
      %p318 = por %p316, %p317
      %s320 = sadd.s32 %s319, 1
      %p323 = scmp.eq.s32.totalorder %s33, 1
      %p324 = scmp.ne.s32.totalorder %s319, %s321
      %p325 = scmp.eq.s32.totalorder %s33, 0
      %p326 = por %p324, %p325
      %p327 = scmp.ne.s32.totalorder %s319, %s321
      %p328 = scmp.eq.s32.totalorder %s38, 1
      %p329 = por %p327, %p328
      %p330 = scmp.ne.s32.totalorder %s321, %s322
      %p331 = scmp.eq.s32.totalorder %s38, 0
      %p332 = por %p330, %p331
      %p333 = scmp.ne.s32.totalorder %s321, %s322
      %p334 = scmp.eq.s32.totalorder %s39, 1
      %p335 = por %p333, %p334
      %p337 = scmp.ne.s32.totalorder %s322, %s336
      %p338 = scmp.eq.s32.totalorder %s39, 0
      %p339 = por %p337, %p338
      %s341 = sadd.s32 %s340, 1
      %p344 = scmp.eq.s32.totalorder %s33, 1
      %p345 = scmp.ne.s32.totalorder %s340, %s342
      %p346 = scmp.eq.s32.totalorder %s33, 0
      %p347 = por %p345, %p346
      %p348 = scmp.ne.s32.totalorder %s340, %s342
      %p349 = scmp.eq.s32.totalorder %s38, 1
      %p350 = por %p348, %p349
      %p351 = scmp.ne.s32.totalorder %s342, %s343
      %p352 = scmp.eq.s32.totalorder %s38, 0
      %p353 = por %p351, %p352
      %p354 = scmp.ne.s32.totalorder %s342, %s343
      %p355 = scmp.eq.s32.totalorder %s39, 1
      %p356 = por %p354, %p355
      %p358 = scmp.ne.s32.totalorder %s343, %s357
      %p359 = scmp.eq.s32.totalorder %s39, 0
      %p360 = por %p358, %p359
      %s362 = sadd.s32 %s361, 1
      %p365 = scmp.eq.s32.totalorder %s33, 1
      %p366 = scmp.ne.s32.totalorder %s361, %s363
      %p367 = scmp.eq.s32.totalorder %s33, 0
      %p368 = por %p366, %p367
      %p369 = scmp.ne.s32.totalorder %s361, %s363
      %p370 = scmp.eq.s32.totalorder %s38, 1
      %p371 = por %p369, %p370
      %p372 = scmp.ne.s32.totalorder %s363, %s364
      %p373 = scmp.eq.s32.totalorder %s38, 0
      %p374 = por %p372, %p373
      %p375 = scmp.ne.s32.totalorder %s363, %s364
      %p376 = scmp.eq.s32.totalorder %s39, 1
      %p377 = por %p375, %p376
      %p379 = scmp.ne.s32.totalorder %s364, %s378
      %p380 = scmp.eq.s32.totalorder %s39, 0
      %p381 = por %p379, %p380
      %s383 = sadd.s32 %s382, 1
      %p386 = scmp.eq.s32.totalorder %s33, 1
      %p387 = scmp.ne.s32.totalorder %s382, %s384
      %p388 = scmp.eq.s32.totalorder %s33, 0
      %p389 = por %p387, %p388
      %p390 = scmp.ne.s32.totalorder %s382, %s384
      %p391 = scmp.eq.s32.totalorder %s38, 1
      %p392 = por %p390, %p391
      %p393 = scmp.ne.s32.totalorder %s384, %s385
      %p394 = scmp.eq.s32.totalorder %s38, 0
      %p395 = por %p393, %p394
      %p396 = scmp.ne.s32.totalorder %s384, %s385
      %p397 = scmp.eq.s32.totalorder %s39, 1
      %p398 = por %p396, %p397
      %p400 = scmp.ne.s32.totalorder %s385, %s399
      %p401 = scmp.eq.s32.totalorder %s39, 0
      %p402 = por %p400, %p401
      %s403 = ssub.s32 %s33, %s40
      %p404 = scmp.eq.s32.totalorder %s403, 0
      %s406 = sadd.s32 %s405, 1
      %s407 = scalar_select %p404, %s405, %s406
      %p410 = pneg %p404
      %p411 = scmp.eq.s32.totalorder %s33, 1
      %p412 = por %p410, %p411
      %p413 = scmp.ne.s32.totalorder %s405, %s408
      %p414 = scmp.eq.s32.totalorder %s33, 0
      %p415 = por %p413, %p414
      %p416 = scmp.ne.s32.totalorder %s405, %s408
      %p417 = scmp.eq.s32.totalorder %s38, 1
      %p418 = por %p416, %p417
      %p419 = scmp.ne.s32.totalorder %s408, %s409
      %p420 = scmp.eq.s32.totalorder %s38, 0
      %p421 = por %p419, %p420
      %p422 = scmp.ne.s32.totalorder %s408, %s409
      %p423 = scmp.eq.s32.totalorder %s39, 1
      %p424 = por %p422, %p423
      %p426 = scmp.ne.s32.totalorder %s409, %s425
      %p427 = scmp.eq.s32.totalorder %s39, 0
      %p428 = por %p426, %p427
      %p429 = scmp.le.s32.totalorder 1, %s33
      %p430 = scmp.lt.s32.totalorder %s33, 3
      %p431 = pnand %p429, %p430
      %p432 = pneg %p431
      // Predicated region
      $region9: #{tpu_custom_call.1} parent=5 // pred_check
        _
      $region10: #{tpu_custom_call.1} parent=5 // pred_check_branch
        %434 = sbr.rel (%p431) target = $region12
      $region11: #{tpu_custom_call.1} parent=5 // pred_region
        %s435 = ssub.s32 %s33, 1
        // Predicated region
        $region13: #{tpu_custom_call.1} parent=11 // pred_check
          %p436 = pneg %p80
        $region14: #{tpu_custom_call.1} parent=11 // pred_check_branch
          %438 = sbr.rel (%p436) target = $region16
        $region15: #{tpu_custom_call.1} parent=11 // pred_region
          %s440 = ssub.s32 128, 128
          %441 = vsyncadd [#allocation6], %s440
          %s443 = sshll.u32 [#allocation5], 4
          %s444 = int_to_ptr.vmem [resolvable:$true] %s443
          %446 = dma.hbm_to_vmem [thread:$0]  %s1, 128, %s444, [#allocation6]
        $region16: #{tpu_custom_call.1} parent=11 // pred_fallthru
          _
        // Predicated region
        $region17: #{tpu_custom_call.1} parent=11 // pred_check
          %p447 = pneg %p101
        $region18: #{tpu_custom_call.1} parent=11 // pred_check_branch
          %449 = sbr.rel (%p447) target = $region20
        $region19: #{tpu_custom_call.1} parent=11 // pred_region
          %s451 = ssub.s32 128, 128
          %452 = vsyncadd [#allocation6], %s451
          %s454 = sshll.u32 [#allocation7], 4
          %s455 = int_to_ptr.vmem [resolvable:$true] %s454
          %457 = dma.hbm_to_vmem [thread:$0]  %s2, 128, %s455, [#allocation6]
        $region20: #{tpu_custom_call.1} parent=11 // pred_fallthru
          _
        // Predicated region
        $region21: #{tpu_custom_call.1} parent=11 // pred_check
          %p458 = pneg %p122
        $region22: #{tpu_custom_call.1} parent=11 // pred_check_branch
          %460 = sbr.rel (%p458) target = $region24
        $region23: #{tpu_custom_call.1} parent=11 // pred_region
          %s462 = ssub.s32 6144, 6144
          %463 = vsyncadd [#allocation9], %s462
          %s464 = sshll.u32 [#allocation8], 4
          %s465 = int_to_ptr.vmem [resolvable:$true] %s464
          %470 = dma.hbm_to_vmem [thread:$0]  %s3, 6144, %s465, [#allocation9], 192, 192, 12
        $region24: #{tpu_custom_call.1} parent=11 // pred_fallthru
          _
        // Predicated region
        $region25: #{tpu_custom_call.1} parent=11 // pred_check
          %p471 = pneg %p143
        $region26: #{tpu_custom_call.1} parent=11 // pred_check_branch
          %473 = sbr.rel (%p471) target = $region28
        $region27: #{tpu_custom_call.1} parent=11 // pred_region
          _
        $region28: #{tpu_custom_call.1} parent=11 // pred_fallthru
          _
        // Predicated region
        $region29: #{tpu_custom_call.1} parent=11 // pred_check
          %p474 = pneg %p164
        $region30: #{tpu_custom_call.1} parent=11 // pred_check_branch
          %476 = sbr.rel (%p474) target = $region32
        $region31: #{tpu_custom_call.1} parent=11 // pred_region
          %s478 = ssub.s32 2048, 2048
          %479 = vsyncadd [#allocation9], %s478
          %s480 = sshll.u32 [#allocation10], 4
          %s481 = int_to_ptr.vmem [resolvable:$true] %s480
          %486 = dma.hbm_to_vmem [thread:$0]  %s5, 2048, %s481, [#allocation9], 64, 64, 4
        $region32: #{tpu_custom_call.1} parent=11 // pred_fallthru
          _
        // Predicated region
        $region33: #{tpu_custom_call.1} parent=11 // pred_check
          %p487 = pneg %p185
        $region34: #{tpu_custom_call.1} parent=11 // pred_check_branch
          %489 = sbr.rel (%p487) target = $region36
        $region35: #{tpu_custom_call.1} parent=11 // pred_region
          _
        $region36: #{tpu_custom_call.1} parent=11 // pred_fallthru
          _
        // Predicated region
        $region37: #{tpu_custom_call.1} parent=11 // pred_check
          %p490 = pneg %p206
        $region38: #{tpu_custom_call.1} parent=11 // pred_check_branch
          %492 = sbr.rel (%p490) target = $region40
        $region39: #{tpu_custom_call.1} parent=11 // pred_region
          _
        $region40: #{tpu_custom_call.1} parent=11 // pred_fallthru
          _
        // Predicated region
        $region41: #{tpu_custom_call.1} parent=11 // pred_check
          %p493 = pneg %p227
        $region42: #{tpu_custom_call.1} parent=11 // pred_check_branch
          %495 = sbr.rel (%p493) target = $region44
        $region43: #{tpu_custom_call.1} parent=11 // pred_region
          _
        $region44: #{tpu_custom_call.1} parent=11 // pred_fallthru
          _
        // Predicated region
        $region45: #{tpu_custom_call.1} parent=11 // pred_check
          %p496 = pneg %p248
        $region46: #{tpu_custom_call.1} parent=11 // pred_check_branch
          %498 = sbr.rel (%p496) target = $region48
        $region47: #{tpu_custom_call.1} parent=11 // pred_region
          %s500 = ssub.s32 4096, 4096
          %501 = vsyncadd [#allocation12], %s500
          %s502 = sshll.u32 [#allocation11], 4
          %s503 = int_to_ptr.vmem [resolvable:$true] %s502
          %508 = dma.hbm_to_vmem [thread:$0]  %s9, 4096, %s503, [#allocation12], 128, 128, 8
        $region48: #{tpu_custom_call.1} parent=11 // pred_fallthru
          _
        // Predicated region
        $region49: #{tpu_custom_call.1} parent=11 // pred_check
          %p509 = pneg %p269
        $region50: #{tpu_custom_call.1} parent=11 // pred_check_branch
          %511 = sbr.rel (%p509) target = $region52
        $region51: #{tpu_custom_call.1} parent=11 // pred_region
          _
        $region52: #{tpu_custom_call.1} parent=11 // pred_fallthru
          _
        // Predicated region
        $region53: #{tpu_custom_call.1} parent=11 // pred_check
          %p512 = pneg %p290
        $region54: #{tpu_custom_call.1} parent=11 // pred_check_branch
          %514 = sbr.rel (%p512) target = $region56
        $region55: #{tpu_custom_call.1} parent=11 // pred_region
          %s516 = ssub.s32 4096, 4096
          %517 = vsyncadd [#allocation12], %s516
          %s518 = sshll.u32 [#allocation13], 4
          %s519 = int_to_ptr.vmem [resolvable:$true] %s518
          %524 = dma.hbm_to_vmem [thread:$0]  %s11, 4096, %s519, [#allocation12], 64, 64, 4
        $region56: #{tpu_custom_call.1} parent=11 // pred_fallthru
          _
        // Predicated region
        $region57: #{tpu_custom_call.1} parent=11 // pred_check
          %p525 = pneg %p311
        $region58: #{tpu_custom_call.1} parent=11 // pred_check_branch
          %527 = sbr.rel (%p525) target = $region60
        $region59: #{tpu_custom_call.1} parent=11 // pred_region
          _
        $region60: #{tpu_custom_call.1} parent=11 // pred_fallthru
          _
        // Predicated region
        $region61: #{tpu_custom_call.1} parent=11 // pred_check
          %p528 = pneg %p332
        $region62: #{tpu_custom_call.1} parent=11 // pred_check_branch
          %530 = sbr.rel (%p528) target = $region64
        $region63: #{tpu_custom_call.1} parent=11 // pred_region
          _
        $region64: #{tpu_custom_call.1} parent=11 // pred_fallthru
          _
        // Predicated region
        $region65: #{tpu_custom_call.1} parent=11 // pred_check
          %p531 = pneg %p353
        $region66: #{tpu_custom_call.1} parent=11 // pred_check_branch
          %533 = sbr.rel (%p531) target = $region68
        $region67: #{tpu_custom_call.1} parent=11 // pred_region
          _
        $region68: #{tpu_custom_call.1} parent=11 // pred_fallthru
          _
        // Predicated region
        $region69: #{tpu_custom_call.1} parent=11 // pred_check
          %p534 = pneg %p374
        $region70: #{tpu_custom_call.1} parent=11 // pred_check_branch
          %536 = sbr.rel (%p534) target = $region72
        $region71: #{tpu_custom_call.1} parent=11 // pred_region
          %s538 = ssub.s32 1024, 1024
          %539 = vsyncadd [#allocation15], %s538
          %s540 = sshll.u32 [#allocation14], 4
          %s541 = int_to_ptr.vmem [resolvable:$true] %s540
          %546 = dma.hbm_to_vmem [thread:$0]  %s15, 1024, %s541, [#allocation15], 64, 64, 4
        $region72: #{tpu_custom_call.1} parent=11 // pred_fallthru
          _
        // Predicated region
        $region73: #{tpu_custom_call.1} parent=11 // pred_check
          %p547 = pneg %p395
        $region74: #{tpu_custom_call.1} parent=11 // pred_check_branch
          %549 = sbr.rel (%p547) target = $region76
        $region75: #{tpu_custom_call.1} parent=11 // pred_region
          _
        $region76: #{tpu_custom_call.1} parent=11 // pred_fallthru
          _
      $region12: #{tpu_custom_call.1} parent=5 // pred_fallthru
        _
      %p550 = scmp.lt.s32.totalorder %s33, 2
      // Predicated region
      $region77: #{tpu_custom_call.1} parent=5 // pred_check
        %p551 = pneg %p550
      $region78: #{tpu_custom_call.1} parent=5 // pred_check_branch
        %553 = sbr.rel (%p551) target = $region80
      $region79: #{tpu_custom_call.1} parent=5 // pred_region
        // Predicated region
        $region81: #{tpu_custom_call.1} parent=79 // pred_check
          %p554 = pneg %p53
        $region82: #{tpu_custom_call.1} parent=79 // pred_check_branch
          %556 = sbr.rel (%p554) target = $region84
        $region83: #{tpu_custom_call.1} parent=79 // pred_region
          %s557 = sand.u32 %s43, 1
          %s558 = scalar_lea.sflag [#allocation3], %s557
          %s559 = sand.u32 %s43, 1
          %s560 = smul.addr %s559, 8
          %s561 = scalar_lea.vmem [#allocation2], %s560
          %s563 = ssub.s32 128, 128
          %564 = vsyncadd %s558, %s563
          %s565 = smul.addr %s33, 128
          %s566 = scalar_lea.hbm %s0, %s565
          %s568 = sshll.u32 %s561, 4
          %s569 = int_to_ptr.vmem [resolvable:$true] %s568
          %571 = dma.hbm_to_vmem [thread:$0]  %s566, 128, %s569, %s558
        $region84: #{tpu_custom_call.1} parent=79 // pred_fallthru
          _
      $region80: #{tpu_custom_call.1} parent=5 // pred_fallthru
        _
      %p572 = scmp.le.s32.totalorder 1, %s33
      %p573 = scmp.lt.s32.totalorder %s33, 3
      %p574 = pnand %p572, %p573
      %p575 = pneg %p574
      // Predicated region
      $region85: #{tpu_custom_call.1} parent=5 // pred_check
        _
      $region86: #{tpu_custom_call.1} parent=5 // pred_check_branch
        %577 = sbr.rel (%p574) target = $region88
      $region87: #{tpu_custom_call.1} parent=5 // pred_region
        %s578 = ssub.s32 %s33, 1
        %s579 = sand.u32 %s46, 1
        %s580 = scalar_lea.sflag [#allocation3], %s579
        %s581 = sand.u32 %s46, 1
        %s582 = smul.addr %s581, 8
        %s583 = scalar_lea.vmem [#allocation2], %s582
        // Predicated region
        $region89: #{tpu_custom_call.1} parent=87 // pred_check
          %p584 = pneg %p59
        $region90: #{tpu_custom_call.1} parent=87 // pred_check_branch
          %586 = sbr.rel (%p584) target = $region92
        $region91: #{tpu_custom_call.1} parent=87 // pred_region
          %587 = dma.done %s580, 128
        $region92: #{tpu_custom_call.1} parent=87 // pred_fallthru
          _
        // Predicated region
        $region93: #{tpu_custom_call.1} parent=87 // pred_check
          %p588 = pneg %p80
        $region94: #{tpu_custom_call.1} parent=87 // pred_check_branch
          %590 = sbr.rel (%p588) target = $region96
        $region95: #{tpu_custom_call.1} parent=87 // pred_region
          %591 = dma.done [#allocation6], 128
        $region96: #{tpu_custom_call.1} parent=87 // pred_fallthru
          _
        // Predicated region
        $region97: #{tpu_custom_call.1} parent=87 // pred_check
          %p592 = pneg %p101
        $region98: #{tpu_custom_call.1} parent=87 // pred_check_branch
          %594 = sbr.rel (%p592) target = $region100
        $region99: #{tpu_custom_call.1} parent=87 // pred_region
          %595 = dma.done [#allocation6], 128
        $region100: #{tpu_custom_call.1} parent=87 // pred_fallthru
          _
        // Predicated region
        $region101: #{tpu_custom_call.1} parent=87 // pred_check
          %p596 = pneg %p122
        $region102: #{tpu_custom_call.1} parent=87 // pred_check_branch
          %598 = sbr.rel (%p596) target = $region104
        $region103: #{tpu_custom_call.1} parent=87 // pred_region
          %599 = dma.done [#allocation9], 6144
        $region104: #{tpu_custom_call.1} parent=87 // pred_fallthru
          _
        // Predicated region
        $region105: #{tpu_custom_call.1} parent=87 // pred_check
          %p600 = pneg %p164
        $region106: #{tpu_custom_call.1} parent=87 // pred_check_branch
          %602 = sbr.rel (%p600) target = $region108
        $region107: #{tpu_custom_call.1} parent=87 // pred_region
          %603 = dma.done [#allocation9], 2048
        $region108: #{tpu_custom_call.1} parent=87 // pred_fallthru
          _
        // Predicated region
        $region109: #{tpu_custom_call.1} parent=87 // pred_check
          %p604 = pneg %p248
        $region110: #{tpu_custom_call.1} parent=87 // pred_check_branch
          %606 = sbr.rel (%p604) target = $region112
        $region111: #{tpu_custom_call.1} parent=87 // pred_region
          %607 = dma.done [#allocation12], 4096
        $region112: #{tpu_custom_call.1} parent=87 // pred_fallthru
          _
        // Predicated region
        $region113: #{tpu_custom_call.1} parent=87 // pred_check
          %p608 = pneg %p290
        $region114: #{tpu_custom_call.1} parent=87 // pred_check_branch
          %610 = sbr.rel (%p608) target = $region116
        $region115: #{tpu_custom_call.1} parent=87 // pred_region
          %611 = dma.done [#allocation12], 4096
        $region116: #{tpu_custom_call.1} parent=87 // pred_fallthru
          _
        // Predicated region
        $region117: #{tpu_custom_call.1} parent=87 // pred_check
          %p612 = pneg %p374
        $region118: #{tpu_custom_call.1} parent=87 // pred_check_branch
          %614 = sbr.rel (%p612) target = $region120
        $region119: #{tpu_custom_call.1} parent=87 // pred_region
          %615 = dma.done [#allocation15], 1024
        $region120: #{tpu_custom_call.1} parent=87 // pred_fallthru
          _
        %s616 = sand.u32 %s46, 1
        %s617 = scalar_lea.sflag [#allocation3], %s616
        %s618 = sand.u32 %s46, 1
        %s619 = smul.addr %s618, 8
        %s620 = scalar_lea.vmem [#allocation2], %s619
        %p621 = pneg %p59
        %p622 = pneg %p56
        %p623 = pneg %p80
        %p624 = pneg %p77
        %p625 = pneg %p101
        %p626 = pneg %p98
        %p627 = pneg %p122
        %p628 = pneg %p119
        %p629 = pneg %p143
        %p630 = pneg %p140
        %p631 = pneg %p164
        %p632 = pneg %p161
        %p633 = pneg %p185
        %p634 = pneg %p182
        %p635 = pneg %p206
        %p636 = pneg %p203
        %p637 = pneg %p227
        %p638 = pneg %p224
        %p639 = pneg %p248
        %p640 = pneg %p245
        %p641 = pneg %p269
        %p642 = pneg %p266
        %p643 = pneg %p290
        %p644 = pneg %p287
        %p645 = pneg %p311
        %p646 = pneg %p308
        %p647 = pneg %p332
        %p648 = pneg %p329
        %p649 = pneg %p353
        %p650 = pneg %p350
        %p651 = pneg %p374
        %p652 = pneg %p371
        %p653 = pneg %p395
        %p654 = pneg %p392
        %p655 = pneg %p421
        %p656 = pneg %p418
        %s657 = sand.u32 %s408, 1
        %s658 = scalar_lea.sflag [#allocation4], %s657
        %s659 = sand.u32 %s408, 1
        %s660 = smul.addr %s659, 8
        %s661 = scalar_lea.vmem [#allocation16], %s660
        %v663 = vld [vmem:[#allocation7] sm:$0xff]
        %v664 = vld [vmem:[%s583] sm:$0xff]
        %v665 = vld [vmem:[#allocation5] sm:$0xff]
        %v666 = vadd.f32 %v664, %v665
        %v667 = vpack.c.bf16 %v666, %v666
        %v668 = vld [vmem:[#allocation8] sm:$0xff]
        %v669 = vld [vmem:[#allocation8 + $0x8] sm:$0xf]
        %v670 = vld [vmem:[#allocation8 + $0xc] sm:$0xff]
        %v671 = vld [vmem:[#allocation8 + $0x14] sm:$0xf]
        %v672 = vld [vmem:[#allocation8 + $0x18] sm:$0xff]
        %v673 = vld [vmem:[#allocation8 + $0x20] sm:$0xf]
        %v674 = vld [vmem:[#allocation8 + $0x24] sm:$0xff]
        %v675 = vld [vmem:[#allocation8 + $0x2c] sm:$0xf]
        %v676 = vld [vmem:[#allocation8 + $0x30] sm:$0xff]
        %v677 = vld [vmem:[#allocation8 + $0x38] sm:$0xf]
        %v678 = vld [vmem:[#allocation8 + $0x3c] sm:$0xff]
        %v679 = vld [vmem:[#allocation8 + $0x44] sm:$0xf]
        %v680 = vld [vmem:[#allocation8 + $0x48] sm:$0xff]
        %v681 = vld [vmem:[#allocation8 + $0x50] sm:$0xf]
        %v682 = vld [vmem:[#allocation8 + $0x54] sm:$0xff]
        %v683 = vld [vmem:[#allocation8 + $0x5c] sm:$0xf]
        %v684 = vld [vmem:[#allocation8 + $0x60] sm:$0xff]
        %v685 = vld [vmem:[#allocation8 + $0x68] sm:$0xf]
        %v686 = vld [vmem:[#allocation8 + $0x6c] sm:$0xff]
        %v687 = vld [vmem:[#allocation8 + $0x74] sm:$0xf]
        %v688 = vld [vmem:[#allocation8 + $0x78] sm:$0xff]
        %v689 = vld [vmem:[#allocation8 + $0x80] sm:$0xf]
        %v690 = vld [vmem:[#allocation8 + $0x84] sm:$0xff]
        %v691 = vld [vmem:[#allocation8 + $0x8c] sm:$0xf]
        %v692 = vld [vmem:[#allocation8 + $0x90] sm:$0xff]
        %v693 = vld [vmem:[#allocation8 + $0x98] sm:$0xf]
        %v694 = vld [vmem:[#allocation8 + $0x9c] sm:$0xff]
        %v695 = vld [vmem:[#allocation8 + $0xa4] sm:$0xf]
        %v696 = vld [vmem:[#allocation8 + $0xa8] sm:$0xff]
        %v697 = vld [vmem:[#allocation8 + $0xb0] sm:$0xf]
        %v698 = vld [vmem:[#allocation8 + $0xb4] sm:$0xff]
        %v699 = vld [vmem:[#allocation8 + $0xbc] sm:$0xf]
        %v700 = vld [vmem:[%s4] sm:$0x7]
        %v702 = vlaneseq
        %v703 = vshrl.u32 %v702, 7
        %v704 = vsub.s32 0, %v703
        %v705 = vrot.slane %v700, %v704
        %v706 = vlaneseq
        %v707 = vshrl.u32 %v706, 7
        %v708 = vsub.s32 1, %v707
        %v709 = vrot.slane %v700, %v708
        %v710 = vlaneseq
        %v711 = vshrl.u32 %v710, 7
        %v712 = vsub.s32 2, %v711
        %v713 = vrot.slane %v700, %v712
        %v749 = vunpack.c.l.b16 %v668
        %v750 = vunpack.c.h.b16 %v668
        %v751 = vunpack.c.l.b16 %v669
        %v752 = vunpack.c.l.b16 %v670
        %v753 = vunpack.c.h.b16 %v670
        %v754 = vunpack.c.l.b16 %v671
        %v755 = vunpack.c.l.b16 %v672
        %v756 = vunpack.c.h.b16 %v672
        %v757 = vunpack.c.l.b16 %v673
        %v758 = vunpack.c.l.b16 %v674
        %v759 = vunpack.c.h.b16 %v674
        %v760 = vunpack.c.l.b16 %v675
        %v761 = vunpack.c.l.b16 %v676
        %v762 = vunpack.c.h.b16 %v676
        %v763 = vunpack.c.l.b16 %v677
        %v764 = vunpack.c.l.b16 %v678
        %v765 = vunpack.c.h.b16 %v678
        %v766 = vunpack.c.l.b16 %v679
        %v767 = vunpack.c.l.b16 %v680
        %v768 = vunpack.c.h.b16 %v680
        %v769 = vunpack.c.l.b16 %v681
        %v770 = vunpack.c.l.b16 %v682
        %v771 = vunpack.c.h.b16 %v682
        %v772 = vunpack.c.l.b16 %v683
        %v773 = vunpack.c.l.b16 %v684
        %v774 = vunpack.c.h.b16 %v684
        %v775 = vunpack.c.l.b16 %v685
        %v776 = vunpack.c.l.b16 %v686
        %v777 = vunpack.c.h.b16 %v686
        %v778 = vunpack.c.l.b16 %v687
        %v779 = vunpack.c.l.b16 %v688
        %v780 = vunpack.c.h.b16 %v688
        %v781 = vunpack.c.l.b16 %v689
        %v782 = vunpack.c.l.b16 %v690
        %v783 = vunpack.c.h.b16 %v690
        %v784 = vunpack.c.l.b16 %v691
        %v785 = vunpack.c.l.b16 %v692
        %v786 = vunpack.c.h.b16 %v692
        %v787 = vunpack.c.l.b16 %v693
        %v788 = vunpack.c.l.b16 %v694
        %v789 = vunpack.c.h.b16 %v694
        %v790 = vunpack.c.l.b16 %v695
        %v791 = vunpack.c.l.b16 %v696
        %v792 = vunpack.c.h.b16 %v696
        %v793 = vunpack.c.l.b16 %v697
        %v794 = vunpack.c.l.b16 %v698
        %v795 = vunpack.c.h.b16 %v698
        %v796 = vunpack.c.l.b16 %v699
        %v797 = vpack.c.b16 %v752, %v749
        %v798 = vpack.c.b16 %v753, %v750
        %v799 = vpack.c.b16 %v754, %v751
        %v800 = vpack.c.b16 %v758, %v755
        %v801 = vpack.c.b16 %v759, %v756
        %v802 = vpack.c.b16 %v760, %v757
        %v803 = vpack.c.b16 %v764, %v761
        %v804 = vpack.c.b16 %v765, %v762
        %v805 = vpack.c.b16 %v766, %v763
        %v806 = vpack.c.b16 %v770, %v767
        %v807 = vpack.c.b16 %v771, %v768
        %v808 = vpack.c.b16 %v772, %v769
        %v809 = vpack.c.b16 %v776, %v773
        %v810 = vpack.c.b16 %v777, %v774
        %v811 = vpack.c.b16 %v778, %v775
        %v812 = vpack.c.b16 %v782, %v779
        %v813 = vpack.c.b16 %v783, %v780
        %v814 = vpack.c.b16 %v784, %v781
        %v815 = vpack.c.b16 %v788, %v785
        %v816 = vpack.c.b16 %v789, %v786
        %v817 = vpack.c.b16 %v790, %v787
        %v818 = vpack.c.b16 %v794, %v791
        %v819 = vpack.c.b16 %v795, %v792
        %v820 = vpack.c.b16 %v796, %v793
        %845 = vmatprep.subr.bf16.mxu0 %v798
        %846 = vmatpush1.bf16.msra.mxu0 %v797
        %847 = vmatprep.subr.bf16.mxu0 %v801
        %848 = vmatpush1.bf16.msra.mxu0 %v800
        %849 = vmatprep.subr.bf16.mxu0 %v804
        %850 = vmatpush1.bf16.msra.mxu0 %v803
        %851 = vmatprep.subr.bf16.mxu0 %v807
        %852 = vmatpush1.bf16.msra.mxu0 %v806
        %853 = vmatprep.subr.bf16.mxu0 %v810
        %854 = vmatpush1.bf16.msra.mxu0 %v809
        %855 = vmatprep.subr.bf16.mxu0 %v813
        %856 = vmatpush1.bf16.msra.mxu0 %v812
        %857 = vmatprep.subr.bf16.mxu0 %v816
        %858 = vmatpush1.bf16.msra.mxu0 %v815
        %859 = vmatprep.subr.bf16.mxu0 %v819
        %860 = vmatpush1.bf16.msra.mxu0 %v818
        %861 = vmatprep.subr.bf16.mxu0 0
        %862 = vmatpush1.bf16.msra.mxu0 0
        %863 = vmatprep.subr.bf16.mxu0 0
        %864 = vmatpush1.bf16.msra.mxu0 0
        %865 = vmatprep.subr.bf16.mxu0 0
        %866 = vmatpush1.bf16.msra.mxu0 0
        %867 = vmatprep.subr.bf16.mxu0 0
        %868 = vmatpush1.bf16.msra.mxu0 0
        %869 = vmatprep.subr.bf16.mxu0 0
        %870 = vmatpush1.bf16.msra.mxu0 0
        %871 = vmatprep.subr.bf16.mxu0 0
        %872 = vmatpush1.bf16.msra.mxu0 0
        %873 = vmatprep.subr.bf16.mxu0 0
        %874 = vmatpush1.bf16.msra.mxu0 0
        %875 = vmatprep.subr.bf16.mxu0 0
        %876 = vmatpush1.bf16.msra.mxu0 0
        %877 = vmatprep.mubr.bf16.mxu0 0
        %878 = vmatmul.mubr.bf16.gmra.mrb[0].mxu0 %v667
        %v879 = vpop.f32.mrb[0].mxu0
        %v880 = vadd.f32 %v705, %v879
        %v881 = vpop.f32.mrb[0].mxu0
        %v882 = vadd.f32 %v709, %v881
        %v883 = vpop.f32.mrb[0].mxu0
        %v884 = vpop.f32.mrb[0].mxu0
        %885 = vdwg.mxu0
        %886 = vmatprep.subr.bf16.mxu0 0
        %887 = vmatpush1.bf16.msra.mxu0 %v799
        %888 = vmatprep.subr.bf16.mxu0 0
        %889 = vmatpush1.bf16.msra.mxu0 %v802
        %890 = vmatprep.subr.bf16.mxu0 0
        %891 = vmatpush1.bf16.msra.mxu0 %v805
        %892 = vmatprep.subr.bf16.mxu0 0
        %893 = vmatpush1.bf16.msra.mxu0 %v808
        %894 = vmatprep.subr.bf16.mxu0 0
        %895 = vmatpush1.bf16.msra.mxu0 %v811
        %896 = vmatprep.subr.bf16.mxu0 0
        %897 = vmatpush1.bf16.msra.mxu0 %v814
        %898 = vmatprep.subr.bf16.mxu0 0
        %899 = vmatpush1.bf16.msra.mxu0 %v817
        %900 = vmatprep.subr.bf16.mxu0 0
        %901 = vmatpush1.bf16.msra.mxu0 %v820
        %902 = vmatprep.subr.bf16.mxu0 0
        %903 = vmatpush1.bf16.msra.mxu0 0
        %904 = vmatprep.subr.bf16.mxu0 0
        %905 = vmatpush1.bf16.msra.mxu0 0
        %906 = vmatprep.subr.bf16.mxu0 0
        %907 = vmatpush1.bf16.msra.mxu0 0
        %908 = vmatprep.subr.bf16.mxu0 0
        %909 = vmatpush1.bf16.msra.mxu0 0
        %910 = vmatprep.subr.bf16.mxu0 0
        %911 = vmatpush1.bf16.msra.mxu0 0
        %912 = vmatprep.subr.bf16.mxu0 0
        %913 = vmatpush1.bf16.msra.mxu0 0
        %914 = vmatprep.subr.bf16.mxu0 0
        %915 = vmatpush1.bf16.msra.mxu0 0
        %916 = vmatprep.subr.bf16.mxu0 0
        %917 = vmatpush1.bf16.msra.mxu0 0
        %918 = vmatprep.mubr.bf16.mxu0 0
        %919 = vmatmul.mubr.bf16.gmra.mrb[0].mxu0 %v667
        %v920 = vpop.f32.mrb[0].mxu0
        %v921 = vadd.f32 %v713, %v920
        %v922 = vpop.f32.mrb[0].mxu0
        %v923 = vpop.f32.mrb[0].mxu0
        %v924 = vpop.f32.mrb[0].mxu0
        %925 = vdwg.mxu0
        %v926 = vld [vmem:[#allocation10] sm:$0xf]
        %v927 = vld [vmem:[#allocation10 + $0x4] sm:$0xf]
        %v928 = vld [vmem:[#allocation10 + $0x8] sm:$0xf]
        %v929 = vld [vmem:[#allocation10 + $0xc] sm:$0xf]
        %v930 = vld [vmem:[#allocation10 + $0x10] sm:$0xf]
        %v931 = vld [vmem:[#allocation10 + $0x14] sm:$0xf]
        %v932 = vld [vmem:[#allocation10 + $0x18] sm:$0xf]
        %v933 = vld [vmem:[#allocation10 + $0x1c] sm:$0xf]
        %v934 = vld [vmem:[#allocation10 + $0x20] sm:$0xf]
        %v935 = vld [vmem:[#allocation10 + $0x24] sm:$0xf]
        %v936 = vld [vmem:[#allocation10 + $0x28] sm:$0xf]
        %v937 = vld [vmem:[#allocation10 + $0x2c] sm:$0xf]
        %v938 = vld [vmem:[#allocation10 + $0x30] sm:$0xf]
        %v939 = vld [vmem:[#allocation10 + $0x34] sm:$0xf]
        %v940 = vld [vmem:[#allocation10 + $0x38] sm:$0xf]
        %v941 = vld [vmem:[#allocation10 + $0x3c] sm:$0xf]
        %v942 = vpack.c.bf16 %v880, %v880
        %v943 = vpack.c.bf16 %v882, %v882
        %v944 = vpack.c.bf16 %v921, %v921
        %vm945 = vcmask 261120
        %v947 = vsel %vm945, %v942, 0
        %v950 = vsel %vm945, %v943, 0
        %952 = vmatprep.subr.bf16.mxu0 0
        %953 = vmatpush1.bf16.xpose.msra.mxu0 %v950
        %954 = vmatprep.subr.bf16.mxu0 0
        %955 = vmatpush1.bf16.xpose.msra.mxu0 0
        %956 = vmatprep.subr.bf16.mxu0 0
        %957 = vmatpush1.bf16.xpose.msra.mxu0 0
        %958 = vmatprep.subr.bf16.mxu0 0
        %959 = vmatpush1.bf16.xpose.msra.mxu0 0
        %960 = vmatprep.subr.bf16.mxu0 0
        %961 = vmatpush1.bf16.xpose.msra.mxu0 0
        %962 = vmatprep.subr.bf16.mxu0 0
        %963 = vmatpush1.bf16.xpose.msra.mxu0 0
        %964 = vmatprep.subr.bf16.mxu0 0
        %965 = vmatpush1.bf16.xpose.msra.mxu0 0
        %966 = vmatprep.subr.bf16.mxu0 0
        %967 = vmatpush1.bf16.xpose.msra.mxu0 0
        %968 = vmatprep.subr.bf16.mxu0 0
        %969 = vmatpush1.bf16.xpose.msra.mxu0 0
        %970 = vmatprep.subr.bf16.mxu0 0
        %971 = vmatpush1.bf16.xpose.msra.mxu0 0
        %972 = vmatprep.subr.bf16.mxu0 0
        %973 = vmatpush1.bf16.xpose.msra.mxu0 0
        %974 = vmatprep.subr.bf16.mxu0 0
        %975 = vmatpush1.bf16.xpose.msra.mxu0 0
        %976 = vmatprep.subr.bf16.mxu0 0
        %977 = vmatpush1.bf16.xpose.msra.mxu0 0
        %978 = vmatprep.subr.bf16.mxu0 0
        %979 = vmatpush1.bf16.xpose.msra.mxu0 0
        %980 = vmatprep.subr.bf16.mxu0 0
        %981 = vmatpush1.bf16.xpose.msra.mxu0 0
        %982 = vmatprep.subr.bf16.mxu0 0
        %983 = vmatpush1.bf16.xpose.msra.mxu0 0
        %984 = vmatprep.mubr.bf16.mxu0 0
        %985 = vmatmul.mubr.bf16.gmra.mrb[0].mxu0 %v947
        %v986 = vpop.f32.mrb[0].mxu0
        %v987 = vadd.f32 %v663, %v986
        %v988 = vpop.f32.mrb[0].mxu0
        %v989 = vpop.f32.mrb[0].mxu0
        %v990 = vpop.f32.mrb[0].mxu0
        %991 = vdwg.mxu0
        %vm992 = vcmask 64512
        %v993 = vsel %vm992, %v987, -inf
        %994 = vmax.xlane.f32.xlu0 %v993
        %v995 = vpop.xlane.xlu0 %994
        %v996 = vsub.f32 %v987, %v995
        %v997 = vmul.f32 %v996, 1.442695
        %v998 = vpow.pop %v997
        %v999 = vsel %vm992, %v998, 0.0
        %1000 = vadd.xlane.f32.xlu0 %v999
        %v1001 = vpop.xlane.xlu0 %1000
        %v1002 = vrcp.pop %v1001
        %v1003 = vmul.f32 %v998, %v1002
        %v1004 = vpack.c.bf16 %v1003, %v1003
        %v1006 = vsel %vm992, %v1004, 0
        %vm1008 = vcmask 1043456
        %v1010 = vsel %vm1008, %v944, 0
        %1012 = vmatprep.subr.bf16.mxu0 0
        %1013 = vmatpush1.bf16.msra.mxu0 %v1010
        %1014 = vmatprep.subr.bf16.mxu0 0
        %1015 = vmatpush1.bf16.msra.mxu0 0
        %1016 = vmatprep.subr.bf16.mxu0 0
        %1017 = vmatpush1.bf16.msra.mxu0 0
        %1018 = vmatprep.subr.bf16.mxu0 0
        %1019 = vmatpush1.bf16.msra.mxu0 0
        %1020 = vmatprep.subr.bf16.mxu0 0
        %1021 = vmatpush1.bf16.msra.mxu0 0
        %1022 = vmatprep.subr.bf16.mxu0 0
        %1023 = vmatpush1.bf16.msra.mxu0 0
        %1024 = vmatprep.subr.bf16.mxu0 0
        %1025 = vmatpush1.bf16.msra.mxu0 0
        %1026 = vmatprep.subr.bf16.mxu0 0
        %1027 = vmatpush1.bf16.msra.mxu0 0
        %1028 = vmatprep.subr.bf16.mxu0 0
        %1029 = vmatpush1.bf16.msra.mxu0 0
        %1030 = vmatprep.subr.bf16.mxu0 0
        %1031 = vmatpush1.bf16.msra.mxu0 0
        %1032 = vmatprep.subr.bf16.mxu0 0
        %1033 = vmatpush1.bf16.msra.mxu0 0
        %1034 = vmatprep.subr.bf16.mxu0 0
        %1035 = vmatpush1.bf16.msra.mxu0 0
        %1036 = vmatprep.subr.bf16.mxu0 0
        %1037 = vmatpush1.bf16.msra.mxu0 0
        %1038 = vmatprep.subr.bf16.mxu0 0
        %1039 = vmatpush1.bf16.msra.mxu0 0
        %1040 = vmatprep.subr.bf16.mxu0 0
        %1041 = vmatpush1.bf16.msra.mxu0 0
        %1042 = vmatprep.subr.bf16.mxu0 0
        %1043 = vmatpush1.bf16.msra.mxu0 0
        %1044 = vmatprep.mubr.bf16.mxu0 0
        %1045 = vmatmul.mubr.bf16.gmra.mrb[0].mxu0 %v1006
        %v1046 = vpop.f32.mrb[0].mxu0
        %v1047 = vadd.f32 0.0, %v1046
        %v1048 = vpop.f32.mrb[0].mxu0
        %v1049 = vpop.f32.mrb[0].mxu0
        %v1050 = vpop.f32.mrb[0].mxu0
        %1051 = vdwg.mxu0
        %v1052 = vpack.c.bf16 %v1047, %v1047
        %1054 = vrot.lane.b32.xlu0 %v942, 96
        %v1055 = vpop.permute.xlu0 %1054
        %1057 = vrot.lane.b32.xlu0 %v943, 96
        %v1058 = vpop.permute.xlu0 %1057
        %v1060 = vsel %vm945, %v1055, 0
        %v1063 = vsel %vm945, %v1058, 0
        %1065 = vmatprep.subr.bf16.mxu0 0
        %1066 = vmatpush1.bf16.xpose.msra.mxu0 %v1063
        %1067 = vmatprep.subr.bf16.mxu0 0
        %1068 = vmatpush1.bf16.xpose.msra.mxu0 0
        %1069 = vmatprep.subr.bf16.mxu0 0
        %1070 = vmatpush1.bf16.xpose.msra.mxu0 0
        %1071 = vmatprep.subr.bf16.mxu0 0
        %1072 = vmatpush1.bf16.xpose.msra.mxu0 0
        %1073 = vmatprep.subr.bf16.mxu0 0
        %1074 = vmatpush1.bf16.xpose.msra.mxu0 0
        %1075 = vmatprep.subr.bf16.mxu0 0
        %1076 = vmatpush1.bf16.xpose.msra.mxu0 0
        %1077 = vmatprep.subr.bf16.mxu0 0
        %1078 = vmatpush1.bf16.xpose.msra.mxu0 0
        %1079 = vmatprep.subr.bf16.mxu0 0
        %1080 = vmatpush1.bf16.xpose.msra.mxu0 0
        %1081 = vmatprep.subr.bf16.mxu0 0
        %1082 = vmatpush1.bf16.xpose.msra.mxu0 0
        %1083 = vmatprep.subr.bf16.mxu0 0
        %1084 = vmatpush1.bf16.xpose.msra.mxu0 0
        %1085 = vmatprep.subr.bf16.mxu0 0
        %1086 = vmatpush1.bf16.xpose.msra.mxu0 0
        %1087 = vmatprep.subr.bf16.mxu0 0
        %1088 = vmatpush1.bf16.xpose.msra.mxu0 0
        %1089 = vmatprep.subr.bf16.mxu0 0
        %1090 = vmatpush1.bf16.xpose.msra.mxu0 0
        %1091 = vmatprep.subr.bf16.mxu0 0
        %1092 = vmatpush1.bf16.xpose.msra.mxu0 0
        %1093 = vmatprep.subr.bf16.mxu0 0
        %1094 = vmatpush1.bf16.xpose.msra.mxu0 0
        %1095 = vmatprep.subr.bf16.mxu0 0
        %1096 = vmatpush1.bf16.xpose.msra.mxu0 0
        %1097 = vmatprep.mubr.bf16.mxu0 0
        %1098 = vmatmul.mubr.bf16.gmra.mrb[0].mxu0 %v1060
        %v1099 = vpop.f32.mrb[0].mxu0
        %v1100 = vadd.f32 %v663, %v1099
        %v1101 = vpop.f32.mrb[0].mxu0
        %v1102 = vpop.f32.mrb[0].mxu0
        %v1103 = vpop.f32.mrb[0].mxu0
        %1104 = vdwg.mxu0
        %v1105 = vsel %vm992, %v1100, -inf
        %1106 = vmax.xlane.f32.xlu0 %v1105
        %v1107 = vpop.xlane.xlu0 %1106
        %v1108 = vsub.f32 %v1100, %v1107
        %v1109 = vmul.f32 %v1108, 1.442695
        %v1110 = vpow.pop %v1109
        %v1111 = vsel %vm992, %v1110, 0.0
        %1112 = vadd.xlane.f32.xlu0 %v1111
        %v1113 = vpop.xlane.xlu0 %1112
        %v1114 = vrcp.pop %v1113
        %v1115 = vmul.f32 %v1110, %v1114
        %v1116 = vpack.c.bf16 %v1115, %v1115
        %1118 = vrot.lane.b32.xlu0 %v944, 96
        %v1119 = vpop.permute.xlu0 %1118
        %v1121 = vsel %vm992, %v1116, 0
        %v1124 = vsel %vm1008, %v1119, 0
        %1126 = vmatprep.subr.bf16.mxu0 0
        %1127 = vmatpush1.bf16.msra.mxu0 %v1124
        %1128 = vmatprep.subr.bf16.mxu0 0
        %1129 = vmatpush1.bf16.msra.mxu0 0
        %1130 = vmatprep.subr.bf16.mxu0 0
        %1131 = vmatpush1.bf16.msra.mxu0 0
        %1132 = vmatprep.subr.bf16.mxu0 0
        %1133 = vmatpush1.bf16.msra.mxu0 0
        %1134 = vmatprep.subr.bf16.mxu0 0
        %1135 = vmatpush1.bf16.msra.mxu0 0
        %1136 = vmatprep.subr.bf16.mxu0 0
        %1137 = vmatpush1.bf16.msra.mxu0 0
        %1138 = vmatprep.subr.bf16.mxu0 0
        %1139 = vmatpush1.bf16.msra.mxu0 0
        %1140 = vmatprep.subr.bf16.mxu0 0
        %1141 = vmatpush1.bf16.msra.mxu0 0
        %1142 = vmatprep.subr.bf16.mxu0 0
        %1143 = vmatpush1.bf16.msra.mxu0 0
        %1144 = vmatprep.subr.bf16.mxu0 0
        %1145 = vmatpush1.bf16.msra.mxu0 0
        %1146 = vmatprep.subr.bf16.mxu0 0
        %1147 = vmatpush1.bf16.msra.mxu0 0
        %1148 = vmatprep.subr.bf16.mxu0 0
        %1149 = vmatpush1.bf16.msra.mxu0 0
        %1150 = vmatprep.subr.bf16.mxu0 0
        %1151 = vmatpush1.bf16.msra.mxu0 0
        %1152 = vmatprep.subr.bf16.mxu0 0
        %1153 = vmatpush1.bf16.msra.mxu0 0
        %1154 = vmatprep.subr.bf16.mxu0 0
        %1155 = vmatpush1.bf16.msra.mxu0 0
        %1156 = vmatprep.subr.bf16.mxu0 0
        %1157 = vmatpush1.bf16.msra.mxu0 0
        %1158 = vmatprep.mubr.bf16.mxu0 0
        %1159 = vmatmul.mubr.bf16.gmra.mrb[0].mxu0 %v1121
        %v1160 = vpop.f32.mrb[0].mxu0
        %v1161 = vadd.f32 0.0, %v1160
        %v1162 = vpop.f32.mrb[0].mxu0
        %v1163 = vpop.f32.mrb[0].mxu0
        %v1164 = vpop.f32.mrb[0].mxu0
        %1165 = vdwg.mxu0
        %v1166 = vpack.c.bf16 %v1161, %v1161
        %v1171 = vunpack.c.l.b16 %v930
        %v1172 = vunpack.c.l.b16 %v931
        %v1173 = vunpack.c.l.b16 %v932
        %v1174 = vunpack.c.l.b16 %v933
        %v1175 = vpack.c.b16 %v1172, %v1171
        %v1176 = vpack.c.b16 %v1174, %v1173
        %v1180 = vsel %vm945, %v1166, 0
        %1182 = vmatprep.subr.bf16.mxu0 0
        %1183 = vmatpush1.bf16.msra.mxu0 %v1175
        %1184 = vmatprep.subr.bf16.mxu0 0
        %1185 = vmatpush1.bf16.msra.mxu0 %v1176
        %1186 = vmatprep.subr.bf16.mxu0 0
        %1187 = vmatpush1.bf16.msra.mxu0 0
        %1188 = vmatprep.subr.bf16.mxu0 0
        %1189 = vmatpush1.bf16.msra.mxu0 0
        %1190 = vmatprep.subr.bf16.mxu0 0
        %1191 = vmatpush1.bf16.msra.mxu0 0
        %1192 = vmatprep.subr.bf16.mxu0 0
        %1193 = vmatpush1.bf16.msra.mxu0 0
        %1194 = vmatprep.subr.bf16.mxu0 0
        %1195 = vmatpush1.bf16.msra.mxu0 0
        %1196 = vmatprep.subr.bf16.mxu0 0
        %1197 = vmatpush1.bf16.msra.mxu0 0
        %1198 = vmatprep.subr.bf16.mxu0 0
        %1199 = vmatpush1.bf16.msra.mxu0 0
        %1200 = vmatprep.subr.bf16.mxu0 0
        %1201 = vmatpush1.bf16.msra.mxu0 0
        %1202 = vmatprep.subr.bf16.mxu0 0
        %1203 = vmatpush1.bf16.msra.mxu0 0
        %1204 = vmatprep.subr.bf16.mxu0 0
        %1205 = vmatpush1.bf16.msra.mxu0 0
        %1206 = vmatprep.subr.bf16.mxu0 0
        %1207 = vmatpush1.bf16.msra.mxu0 0
        %1208 = vmatprep.subr.bf16.mxu0 0
        %1209 = vmatpush1.bf16.msra.mxu0 0
        %1210 = vmatprep.subr.bf16.mxu0 0
        %1211 = vmatpush1.bf16.msra.mxu0 0
        %1212 = vmatprep.subr.bf16.mxu0 0
        %1213 = vmatpush1.bf16.msra.mxu0 0
        %1214 = vmatprep.mubr.bf16.mxu0 0
        %1215 = vmatmul.mubr.bf16.gmra.mrb[0].mxu0 %v1180
        %v1216 = vpop.f32.mrb[0].mxu0
        %v1217 = vadd.f32 0.0, %v1216
        %v1218 = vpop.f32.mrb[0].mxu0
        %v1219 = vpop.f32.mrb[0].mxu0
        %v1220 = vpop.f32.mrb[0].mxu0
        %1221 = vdwg.mxu0
        %v1226 = vunpack.c.l.b16 %v926
        %v1227 = vunpack.c.l.b16 %v927
        %v1228 = vunpack.c.l.b16 %v928
        %v1229 = vunpack.c.l.b16 %v929
        %v1230 = vpack.c.b16 %v1227, %v1226
        %v1231 = vpack.c.b16 %v1229, %v1228
        %v1235 = vsel %vm945, %v1052, 0
        %1237 = vmatprep.subr.bf16.mxu0 0
        %1238 = vmatpush1.bf16.msra.mxu0 %v1230
        %1239 = vmatprep.subr.bf16.mxu0 0
        %1240 = vmatpush1.bf16.msra.mxu0 %v1231
        %1241 = vmatprep.subr.bf16.mxu0 0
        %1242 = vmatpush1.bf16.msra.mxu0 0
        %1243 = vmatprep.subr.bf16.mxu0 0
        %1244 = vmatpush1.bf16.msra.mxu0 0
        %1245 = vmatprep.subr.bf16.mxu0 0
        %1246 = vmatpush1.bf16.msra.mxu0 0
        %1247 = vmatprep.subr.bf16.mxu0 0
        %1248 = vmatpush1.bf16.msra.mxu0 0
        %1249 = vmatprep.subr.bf16.mxu0 0
        %1250 = vmatpush1.bf16.msra.mxu0 0
        %1251 = vmatprep.subr.bf16.mxu0 0
        %1252 = vmatpush1.bf16.msra.mxu0 0
        %1253 = vmatprep.subr.bf16.mxu0 0
        %1254 = vmatpush1.bf16.msra.mxu0 0
        %1255 = vmatprep.subr.bf16.mxu0 0
        %1256 = vmatpush1.bf16.msra.mxu0 0
        %1257 = vmatprep.subr.bf16.mxu0 0
        %1258 = vmatpush1.bf16.msra.mxu0 0
        %1259 = vmatprep.subr.bf16.mxu0 0
        %1260 = vmatpush1.bf16.msra.mxu0 0
        %1261 = vmatprep.subr.bf16.mxu0 0
        %1262 = vmatpush1.bf16.msra.mxu0 0
        %1263 = vmatprep.subr.bf16.mxu0 0
        %1264 = vmatpush1.bf16.msra.mxu0 0
        %1265 = vmatprep.subr.bf16.mxu0 0
        %1266 = vmatpush1.bf16.msra.mxu0 0
        %1267 = vmatprep.subr.bf16.mxu0 0
        %1268 = vmatpush1.bf16.msra.mxu0 0
        %1269 = vmatprep.mubr.bf16.mxu0 0
        %1270 = vmatmul.mubr.bf16.gmra.mrb[0].mxu0 %v1235
        %v1271 = vpop.f32.mrb[0].mxu0
        %v1272 = vadd.f32 %v1217, %v1271
        %v1273 = vpop.f32.mrb[0].mxu0
        %v1274 = vpop.f32.mrb[0].mxu0
        %v1275 = vpop.f32.mrb[0].mxu0
        %1276 = vdwg.mxu0
        %1277 = vrot.lane.b32.xlu0 %v942, 64
        %v1278 = vpop.permute.xlu0 %1277
        %1279 = vrot.lane.b32.xlu0 %v943, 64
        %v1280 = vpop.permute.xlu0 %1279
        %v1282 = vsel %vm945, %v1278, 0
        %v1285 = vsel %vm945, %v1280, 0
        %1287 = vmatprep.subr.bf16.mxu0 0
        %1288 = vmatpush1.bf16.xpose.msra.mxu0 %v1285
        %1289 = vmatprep.subr.bf16.mxu0 0
        %1290 = vmatpush1.bf16.xpose.msra.mxu0 0
        %1291 = vmatprep.subr.bf16.mxu0 0
        %1292 = vmatpush1.bf16.xpose.msra.mxu0 0
        %1293 = vmatprep.subr.bf16.mxu0 0
        %1294 = vmatpush1.bf16.xpose.msra.mxu0 0
        %1295 = vmatprep.subr.bf16.mxu0 0
        %1296 = vmatpush1.bf16.xpose.msra.mxu0 0
        %1297 = vmatprep.subr.bf16.mxu0 0
        %1298 = vmatpush1.bf16.xpose.msra.mxu0 0
        %1299 = vmatprep.subr.bf16.mxu0 0
        %1300 = vmatpush1.bf16.xpose.msra.mxu0 0
        %1301 = vmatprep.subr.bf16.mxu0 0
        %1302 = vmatpush1.bf16.xpose.msra.mxu0 0
        %1303 = vmatprep.subr.bf16.mxu0 0
        %1304 = vmatpush1.bf16.xpose.msra.mxu0 0
        %1305 = vmatprep.subr.bf16.mxu0 0
        %1306 = vmatpush1.bf16.xpose.msra.mxu0 0
        %1307 = vmatprep.subr.bf16.mxu0 0
        %1308 = vmatpush1.bf16.xpose.msra.mxu0 0
        %1309 = vmatprep.subr.bf16.mxu0 0
        %1310 = vmatpush1.bf16.xpose.msra.mxu0 0
        %1311 = vmatprep.subr.bf16.mxu0 0
        %1312 = vmatpush1.bf16.xpose.msra.mxu0 0
        %1313 = vmatprep.subr.bf16.mxu0 0
        %1314 = vmatpush1.bf16.xpose.msra.mxu0 0
        %1315 = vmatprep.subr.bf16.mxu0 0
        %1316 = vmatpush1.bf16.xpose.msra.mxu0 0
        %1317 = vmatprep.subr.bf16.mxu0 0
        %1318 = vmatpush1.bf16.xpose.msra.mxu0 0
        %1319 = vmatprep.mubr.bf16.mxu0 0
        %1320 = vmatmul.mubr.bf16.gmra.mrb[0].mxu0 %v1282
        %v1321 = vpop.f32.mrb[0].mxu0
        %v1322 = vadd.f32 %v663, %v1321
        %v1323 = vpop.f32.mrb[0].mxu0
        %v1324 = vpop.f32.mrb[0].mxu0
        %v1325 = vpop.f32.mrb[0].mxu0
        %1326 = vdwg.mxu0
        %v1327 = vsel %vm992, %v1322, -inf
        %1328 = vmax.xlane.f32.xlu0 %v1327
        %v1329 = vpop.xlane.xlu0 %1328
        %v1330 = vsub.f32 %v1322, %v1329
        %v1331 = vmul.f32 %v1330, 1.442695
        %v1332 = vpow.pop %v1331
        %v1333 = vsel %vm992, %v1332, 0.0
        %1334 = vadd.xlane.f32.xlu0 %v1333
        %v1335 = vpop.xlane.xlu0 %1334
        %v1336 = vrcp.pop %v1335
        %v1337 = vmul.f32 %v1332, %v1336
        %v1338 = vpack.c.bf16 %v1337, %v1337
        %1339 = vrot.lane.b32.xlu0 %v944, 64
        %v1340 = vpop.permute.xlu0 %1339
        %v1342 = vsel %vm992, %v1338, 0
        %v1345 = vsel %vm1008, %v1340, 0
        %1347 = vmatprep.subr.bf16.mxu0 0
        %1348 = vmatpush1.bf16.msra.mxu0 %v1345
        %1349 = vmatprep.subr.bf16.mxu0 0
        %1350 = vmatpush1.bf16.msra.mxu0 0
        %1351 = vmatprep.subr.bf16.mxu0 0
        %1352 = vmatpush1.bf16.msra.mxu0 0
        %1353 = vmatprep.subr.bf16.mxu0 0
        %1354 = vmatpush1.bf16.msra.mxu0 0
        %1355 = vmatprep.subr.bf16.mxu0 0
        %1356 = vmatpush1.bf16.msra.mxu0 0
        %1357 = vmatprep.subr.bf16.mxu0 0
        %1358 = vmatpush1.bf16.msra.mxu0 0
        %1359 = vmatprep.subr.bf16.mxu0 0
        %1360 = vmatpush1.bf16.msra.mxu0 0
        %1361 = vmatprep.subr.bf16.mxu0 0
        %1362 = vmatpush1.bf16.msra.mxu0 0
        %1363 = vmatprep.subr.bf16.mxu0 0
        %1364 = vmatpush1.bf16.msra.mxu0 0
        %1365 = vmatprep.subr.bf16.mxu0 0
        %1366 = vmatpush1.bf16.msra.mxu0 0
        %1367 = vmatprep.subr.bf16.mxu0 0
        %1368 = vmatpush1.bf16.msra.mxu0 0
        %1369 = vmatprep.subr.bf16.mxu0 0
        %1370 = vmatpush1.bf16.msra.mxu0 0
        %1371 = vmatprep.subr.bf16.mxu0 0
        %1372 = vmatpush1.bf16.msra.mxu0 0
        %1373 = vmatprep.subr.bf16.mxu0 0
        %1374 = vmatpush1.bf16.msra.mxu0 0
        %1375 = vmatprep.subr.bf16.mxu0 0
        %1376 = vmatpush1.bf16.msra.mxu0 0
        %1377 = vmatprep.subr.bf16.mxu0 0
        %1378 = vmatpush1.bf16.msra.mxu0 0
        %1379 = vmatprep.mubr.bf16.mxu0 0
        %1380 = vmatmul.mubr.bf16.gmra.mrb[0].mxu0 %v1342
        %v1381 = vpop.f32.mrb[0].mxu0
        %v1382 = vadd.f32 0.0, %v1381
        %v1383 = vpop.f32.mrb[0].mxu0
        %v1384 = vpop.f32.mrb[0].mxu0
        %v1385 = vpop.f32.mrb[0].mxu0
        %1386 = vdwg.mxu0
        %v1387 = vpack.c.bf16 %v1382, %v1382
        %v1392 = vunpack.c.l.b16 %v934
        %v1393 = vunpack.c.l.b16 %v935
        %v1394 = vunpack.c.l.b16 %v936
        %v1395 = vunpack.c.l.b16 %v937
        %v1396 = vpack.c.b16 %v1393, %v1392
        %v1397 = vpack.c.b16 %v1395, %v1394
        %v1401 = vsel %vm945, %v1387, 0
        %1403 = vmatprep.subr.bf16.mxu0 0
        %1404 = vmatpush1.bf16.msra.mxu0 %v1396
        %1405 = vmatprep.subr.bf16.mxu0 0
        %1406 = vmatpush1.bf16.msra.mxu0 %v1397
        %1407 = vmatprep.subr.bf16.mxu0 0
        %1408 = vmatpush1.bf16.msra.mxu0 0
        %1409 = vmatprep.subr.bf16.mxu0 0
        %1410 = vmatpush1.bf16.msra.mxu0 0
        %1411 = vmatprep.subr.bf16.mxu0 0
        %1412 = vmatpush1.bf16.msra.mxu0 0
        %1413 = vmatprep.subr.bf16.mxu0 0
        %1414 = vmatpush1.bf16.msra.mxu0 0
        %1415 = vmatprep.subr.bf16.mxu0 0
        %1416 = vmatpush1.bf16.msra.mxu0 0
        %1417 = vmatprep.subr.bf16.mxu0 0
        %1418 = vmatpush1.bf16.msra.mxu0 0
        %1419 = vmatprep.subr.bf16.mxu0 0
        %1420 = vmatpush1.bf16.msra.mxu0 0
        %1421 = vmatprep.subr.bf16.mxu0 0
        %1422 = vmatpush1.bf16.msra.mxu0 0
        %1423 = vmatprep.subr.bf16.mxu0 0
        %1424 = vmatpush1.bf16.msra.mxu0 0
        %1425 = vmatprep.subr.bf16.mxu0 0
        %1426 = vmatpush1.bf16.msra.mxu0 0
        %1427 = vmatprep.subr.bf16.mxu0 0
        %1428 = vmatpush1.bf16.msra.mxu0 0
        %1429 = vmatprep.subr.bf16.mxu0 0
        %1430 = vmatpush1.bf16.msra.mxu0 0
        %1431 = vmatprep.subr.bf16.mxu0 0
        %1432 = vmatpush1.bf16.msra.mxu0 0
        %1433 = vmatprep.subr.bf16.mxu0 0
        %1434 = vmatpush1.bf16.msra.mxu0 0
        %1435 = vmatprep.mubr.bf16.mxu0 0
        %1436 = vmatmul.mubr.bf16.gmra.mrb[0].mxu0 %v1401
        %v1437 = vpop.f32.mrb[0].mxu0
        %v1438 = vadd.f32 0.0, %v1437
        %v1439 = vpop.f32.mrb[0].mxu0
        %v1440 = vpop.f32.mrb[0].mxu0
        %v1441 = vpop.f32.mrb[0].mxu0
        %1442 = vdwg.mxu0
        %v1443 = vadd.f32 %v1272, %v1438
        %1444 = vrot.lane.b32.xlu0 %v942, 32
        %v1445 = vpop.permute.xlu0 %1444
        %1446 = vrot.lane.b32.xlu0 %v943, 32
        %v1447 = vpop.permute.xlu0 %1446
        %v1449 = vsel %vm945, %v1445, 0
        %v1452 = vsel %vm945, %v1447, 0
        %1454 = vmatprep.subr.bf16.mxu0 0
        %1455 = vmatpush1.bf16.xpose.msra.mxu0 %v1452
        %1456 = vmatprep.subr.bf16.mxu0 0
        %1457 = vmatpush1.bf16.xpose.msra.mxu0 0
        %1458 = vmatprep.subr.bf16.mxu0 0
        %1459 = vmatpush1.bf16.xpose.msra.mxu0 0
        %1460 = vmatprep.subr.bf16.mxu0 0
        %1461 = vmatpush1.bf16.xpose.msra.mxu0 0
        %1462 = vmatprep.subr.bf16.mxu0 0
        %1463 = vmatpush1.bf16.xpose.msra.mxu0 0
        %1464 = vmatprep.subr.bf16.mxu0 0
        %1465 = vmatpush1.bf16.xpose.msra.mxu0 0
        %1466 = vmatprep.subr.bf16.mxu0 0
        %1467 = vmatpush1.bf16.xpose.msra.mxu0 0
        %1468 = vmatprep.subr.bf16.mxu0 0
        %1469 = vmatpush1.bf16.xpose.msra.mxu0 0
        %1470 = vmatprep.subr.bf16.mxu0 0
        %1471 = vmatpush1.bf16.xpose.msra.mxu0 0
        %1472 = vmatprep.subr.bf16.mxu0 0
        %1473 = vmatpush1.bf16.xpose.msra.mxu0 0
        %1474 = vmatprep.subr.bf16.mxu0 0
        %1475 = vmatpush1.bf16.xpose.msra.mxu0 0
        %1476 = vmatprep.subr.bf16.mxu0 0
        %1477 = vmatpush1.bf16.xpose.msra.mxu0 0
        %1478 = vmatprep.subr.bf16.mxu0 0
        %1479 = vmatpush1.bf16.xpose.msra.mxu0 0
        %1480 = vmatprep.subr.bf16.mxu0 0
        %1481 = vmatpush1.bf16.xpose.msra.mxu0 0
        %1482 = vmatprep.subr.bf16.mxu0 0
        %1483 = vmatpush1.bf16.xpose.msra.mxu0 0
        %1484 = vmatprep.subr.bf16.mxu0 0
        %1485 = vmatpush1.bf16.xpose.msra.mxu0 0
        %1486 = vmatprep.mubr.bf16.mxu0 0
        %1487 = vmatmul.mubr.bf16.gmra.mrb[0].mxu0 %v1449
        %v1488 = vpop.f32.mrb[0].mxu0
        %v1489 = vadd.f32 %v663, %v1488
        %v1490 = vpop.f32.mrb[0].mxu0
        %v1491 = vpop.f32.mrb[0].mxu0
        %v1492 = vpop.f32.mrb[0].mxu0
        %1493 = vdwg.mxu0
        %v1494 = vsel %vm992, %v1489, -inf
        %1495 = vmax.xlane.f32.xlu0 %v1494
        %v1496 = vpop.xlane.xlu0 %1495
        %v1497 = vsub.f32 %v1489, %v1496
        %v1498 = vmul.f32 %v1497, 1.442695
        %v1499 = vpow.pop %v1498
        %v1500 = vsel %vm992, %v1499, 0.0
        %1501 = vadd.xlane.f32.xlu0 %v1500
        %v1502 = vpop.xlane.xlu0 %1501
        %v1503 = vrcp.pop %v1502
        %v1504 = vmul.f32 %v1499, %v1503
        %v1505 = vpack.c.bf16 %v1504, %v1504
        %1506 = vrot.lane.b32.xlu0 %v944, 32
        %v1507 = vpop.permute.xlu0 %1506
        %v1509 = vsel %vm992, %v1505, 0
        %v1512 = vsel %vm1008, %v1507, 0
        %1514 = vmatprep.subr.bf16.mxu0 0
        %1515 = vmatpush1.bf16.msra.mxu0 %v1512
        %1516 = vmatprep.subr.bf16.mxu0 0
        %1517 = vmatpush1.bf16.msra.mxu0 0
        %1518 = vmatprep.subr.bf16.mxu0 0
        %1519 = vmatpush1.bf16.msra.mxu0 0
        %1520 = vmatprep.subr.bf16.mxu0 0
        %1521 = vmatpush1.bf16.msra.mxu0 0
        %1522 = vmatprep.subr.bf16.mxu0 0
        %1523 = vmatpush1.bf16.msra.mxu0 0
        %1524 = vmatprep.subr.bf16.mxu0 0
        %1525 = vmatpush1.bf16.msra.mxu0 0
        %1526 = vmatprep.subr.bf16.mxu0 0
        %1527 = vmatpush1.bf16.msra.mxu0 0
        %1528 = vmatprep.subr.bf16.mxu0 0
        %1529 = vmatpush1.bf16.msra.mxu0 0
        %1530 = vmatprep.subr.bf16.mxu0 0
        %1531 = vmatpush1.bf16.msra.mxu0 0
        %1532 = vmatprep.subr.bf16.mxu0 0
        %1533 = vmatpush1.bf16.msra.mxu0 0
        %1534 = vmatprep.subr.bf16.mxu0 0
        %1535 = vmatpush1.bf16.msra.mxu0 0
        %1536 = vmatprep.subr.bf16.mxu0 0
        %1537 = vmatpush1.bf16.msra.mxu0 0
        %1538 = vmatprep.subr.bf16.mxu0 0
        %1539 = vmatpush1.bf16.msra.mxu0 0
        %1540 = vmatprep.subr.bf16.mxu0 0
        %1541 = vmatpush1.bf16.msra.mxu0 0
        %1542 = vmatprep.subr.bf16.mxu0 0
        %1543 = vmatpush1.bf16.msra.mxu0 0
        %1544 = vmatprep.subr.bf16.mxu0 0
        %1545 = vmatpush1.bf16.msra.mxu0 0
        %1546 = vmatprep.mubr.bf16.mxu0 0
        %1547 = vmatmul.mubr.bf16.gmra.mrb[0].mxu0 %v1509
        %v1548 = vpop.f32.mrb[0].mxu0
        %v1549 = vadd.f32 0.0, %v1548
        %v1550 = vpop.f32.mrb[0].mxu0
        %v1551 = vpop.f32.mrb[0].mxu0
        %v1552 = vpop.f32.mrb[0].mxu0
        %1553 = vdwg.mxu0
        %v1554 = vpack.c.bf16 %v1549, %v1549
        %v1559 = vunpack.c.l.b16 %v938
        %v1560 = vunpack.c.l.b16 %v939
        %v1561 = vunpack.c.l.b16 %v940
        %v1562 = vunpack.c.l.b16 %v941
        %v1563 = vpack.c.b16 %v1560, %v1559
        %v1564 = vpack.c.b16 %v1562, %v1561
        %v1568 = vsel %vm945, %v1554, 0
        %1570 = vmatprep.subr.bf16.mxu0 0
        %1571 = vmatpush1.bf16.msra.mxu0 %v1563
        %1572 = vmatprep.subr.bf16.mxu0 0
        %1573 = vmatpush1.bf16.msra.mxu0 %v1564
        %1574 = vmatprep.subr.bf16.mxu0 0
        %1575 = vmatpush1.bf16.msra.mxu0 0
        %1576 = vmatprep.subr.bf16.mxu0 0
        %1577 = vmatpush1.bf16.msra.mxu0 0
        %1578 = vmatprep.subr.bf16.mxu0 0
        %1579 = vmatpush1.bf16.msra.mxu0 0
        %1580 = vmatprep.subr.bf16.mxu0 0
        %1581 = vmatpush1.bf16.msra.mxu0 0
        %1582 = vmatprep.subr.bf16.mxu0 0
        %1583 = vmatpush1.bf16.msra.mxu0 0
        %1584 = vmatprep.subr.bf16.mxu0 0
        %1585 = vmatpush1.bf16.msra.mxu0 0
        %1586 = vmatprep.subr.bf16.mxu0 0
        %1587 = vmatpush1.bf16.msra.mxu0 0
        %1588 = vmatprep.subr.bf16.mxu0 0
        %1589 = vmatpush1.bf16.msra.mxu0 0
        %1590 = vmatprep.subr.bf16.mxu0 0
        %1591 = vmatpush1.bf16.msra.mxu0 0
        %1592 = vmatprep.subr.bf16.mxu0 0
        %1593 = vmatpush1.bf16.msra.mxu0 0
        %1594 = vmatprep.subr.bf16.mxu0 0
        %1595 = vmatpush1.bf16.msra.mxu0 0
        %1596 = vmatprep.subr.bf16.mxu0 0
        %1597 = vmatpush1.bf16.msra.mxu0 0
        %1598 = vmatprep.subr.bf16.mxu0 0
        %1599 = vmatpush1.bf16.msra.mxu0 0
        %1600 = vmatprep.subr.bf16.mxu0 0
        %1601 = vmatpush1.bf16.msra.mxu0 0
        %1602 = vmatprep.mubr.bf16.mxu0 0
        %1603 = vmatmul.mubr.bf16.gmra.mrb[0].mxu0 %v1568
        %v1604 = vpop.f32.mrb[0].mxu0
        %v1605 = vadd.f32 0.0, %v1604
        %v1606 = vpop.f32.mrb[0].mxu0
        %v1607 = vpop.f32.mrb[0].mxu0
        %v1608 = vpop.f32.mrb[0].mxu0
        %1609 = vdwg.mxu0
        %v1610 = vadd.f32 %v1443, %v1605
        %v1611 = vld [vmem:[%s6] sm:$0x1]
        %v1613 = vlaneseq
        %v1614 = vshrl.u32 %v1613, 7
        %v1615 = vsub.s32 0, %v1614
        %v1616 = vrot.slane %v1611, %v1615
        %v1618 = vadd.f32 %v1610, %v1616
        %v1619 = vadd.f32 %v666, %v1618
        %v1620 = vld [vmem:[%s7] sm:$0x1]
        %v1621 = vld [vmem:[%s8] sm:$0x1]
        %1622 = vadd.xlane.f32.xlu0 %v1619
        %v1623 = vpop.xlane.xlu0 %1622
        %v1624 = vrcp.pop 128.0
        %v1625 = vmul.f32 %v1623, %v1624
        %v1626 = vsub.f32 %v1619, %v1625
        %v1627 = vmul.f32 %v1626, %v1626
        %1628 = vadd.xlane.f32.xlu0 %v1627
        %v1629 = vpop.xlane.xlu0 %1628
        %v1630 = vmul.f32 %v1629, %v1624
        %v1631 = vadd.f32 %v1630, 1e-05
        %v1632 = vrsqrt.pop %v1631
        %v1633 = vmul.f32 %v1626, %v1632
        %v1635 = vlaneseq
        %v1636 = vshrl.u32 %v1635, 7
        %v1637 = vsub.s32 0, %v1636
        %v1638 = vrot.slane %v1620, %v1637
        %v1640 = vmul.f32 %v1633, %v1638
        %v1642 = vlaneseq
        %v1643 = vshrl.u32 %v1642, 7
        %v1644 = vsub.s32 0, %v1643
        %v1645 = vrot.slane %v1621, %v1644
        %v1647 = vadd.f32 %v1640, %v1645
        %v1648 = vpack.c.bf16 %v1647, %v1647
        %v1649 = vld [vmem:[#allocation11] sm:$0xff]
        %v1650 = vld [vmem:[#allocation11 + $0x8] sm:$0xff]
        %v1651 = vld [vmem:[#allocation11 + $0x10] sm:$0xff]
        %v1652 = vld [vmem:[#allocation11 + $0x18] sm:$0xff]
        %v1653 = vld [vmem:[#allocation11 + $0x20] sm:$0xff]
        %v1654 = vld [vmem:[#allocation11 + $0x28] sm:$0xff]
        %v1655 = vld [vmem:[#allocation11 + $0x30] sm:$0xff]
        %v1656 = vld [vmem:[#allocation11 + $0x38] sm:$0xff]
        %v1657 = vld [vmem:[#allocation11 + $0x40] sm:$0xff]
        %v1658 = vld [vmem:[#allocation11 + $0x48] sm:$0xff]
        %v1659 = vld [vmem:[#allocation11 + $0x50] sm:$0xff]
        %v1660 = vld [vmem:[#allocation11 + $0x58] sm:$0xff]
        %v1661 = vld [vmem:[#allocation11 + $0x60] sm:$0xff]
        %v1662 = vld [vmem:[#allocation11 + $0x68] sm:$0xff]
        %v1663 = vld [vmem:[#allocation11 + $0x70] sm:$0xff]
        %v1664 = vld [vmem:[#allocation11 + $0x78] sm:$0xff]
        %v1665 = vld [vmem:[%s10] sm:$0x3]
        %v1667 = vlaneseq
        %v1668 = vshrl.u32 %v1667, 7
        %v1669 = vsub.s32 0, %v1668
        %v1670 = vrot.slane %v1665, %v1669
        %v1671 = vlaneseq
        %v1672 = vshrl.u32 %v1671, 7
        %v1673 = vsub.s32 1, %v1672
        %v1674 = vrot.slane %v1665, %v1673
        %v1693 = vunpack.c.l.b16 %v1649
        %v1694 = vunpack.c.h.b16 %v1649
        %v1695 = vunpack.c.l.b16 %v1650
        %v1696 = vunpack.c.h.b16 %v1650
        %v1697 = vunpack.c.l.b16 %v1651
        %v1698 = vunpack.c.h.b16 %v1651
        %v1699 = vunpack.c.l.b16 %v1652
        %v1700 = vunpack.c.h.b16 %v1652
        %v1701 = vunpack.c.l.b16 %v1653
        %v1702 = vunpack.c.h.b16 %v1653
        %v1703 = vunpack.c.l.b16 %v1654
        %v1704 = vunpack.c.h.b16 %v1654
        %v1705 = vunpack.c.l.b16 %v1655
        %v1706 = vunpack.c.h.b16 %v1655
        %v1707 = vunpack.c.l.b16 %v1656
        %v1708 = vunpack.c.h.b16 %v1656
        %v1709 = vunpack.c.l.b16 %v1657
        %v1710 = vunpack.c.h.b16 %v1657
        %v1711 = vunpack.c.l.b16 %v1658
        %v1712 = vunpack.c.h.b16 %v1658
        %v1713 = vunpack.c.l.b16 %v1659
        %v1714 = vunpack.c.h.b16 %v1659
        %v1715 = vunpack.c.l.b16 %v1660
        %v1716 = vunpack.c.h.b16 %v1660
        %v1717 = vunpack.c.l.b16 %v1661
        %v1718 = vunpack.c.h.b16 %v1661
        %v1719 = vunpack.c.l.b16 %v1662
        %v1720 = vunpack.c.h.b16 %v1662
        %v1721 = vunpack.c.l.b16 %v1663
        %v1722 = vunpack.c.h.b16 %v1663
        %v1723 = vunpack.c.l.b16 %v1664
        %v1724 = vunpack.c.h.b16 %v1664
        %v1725 = vpack.c.b16 %v1695, %v1693
        %v1726 = vpack.c.b16 %v1696, %v1694
        %v1727 = vpack.c.b16 %v1699, %v1697
        %v1728 = vpack.c.b16 %v1700, %v1698
        %v1729 = vpack.c.b16 %v1703, %v1701
        %v1730 = vpack.c.b16 %v1704, %v1702
        %v1731 = vpack.c.b16 %v1707, %v1705
        %v1732 = vpack.c.b16 %v1708, %v1706
        %v1733 = vpack.c.b16 %v1711, %v1709
        %v1734 = vpack.c.b16 %v1712, %v1710
        %v1735 = vpack.c.b16 %v1715, %v1713
        %v1736 = vpack.c.b16 %v1716, %v1714
        %v1737 = vpack.c.b16 %v1719, %v1717
        %v1738 = vpack.c.b16 %v1720, %v1718
        %v1739 = vpack.c.b16 %v1723, %v1721
        %v1740 = vpack.c.b16 %v1724, %v1722
        %1757 = vmatprep.subr.bf16.mxu0 %v1726
        %1758 = vmatpush1.bf16.msra.mxu0 %v1725
        %1759 = vmatprep.subr.bf16.mxu0 %v1728
        %1760 = vmatpush1.bf16.msra.mxu0 %v1727
        %1761 = vmatprep.subr.bf16.mxu0 %v1730
        %1762 = vmatpush1.bf16.msra.mxu0 %v1729
        %1763 = vmatprep.subr.bf16.mxu0 %v1732
        %1764 = vmatpush1.bf16.msra.mxu0 %v1731
        %1765 = vmatprep.subr.bf16.mxu0 %v1734
        %1766 = vmatpush1.bf16.msra.mxu0 %v1733
        %1767 = vmatprep.subr.bf16.mxu0 %v1736
        %1768 = vmatpush1.bf16.msra.mxu0 %v1735
        %1769 = vmatprep.subr.bf16.mxu0 %v1738
        %1770 = vmatpush1.bf16.msra.mxu0 %v1737
        %1771 = vmatprep.subr.bf16.mxu0 %v1740
        %1772 = vmatpush1.bf16.msra.mxu0 %v1739
        %1773 = vmatprep.subr.bf16.mxu0 0
        %1774 = vmatpush1.bf16.msra.mxu0 0
        %1775 = vmatprep.subr.bf16.mxu0 0
        %1776 = vmatpush1.bf16.msra.mxu0 0
        %1777 = vmatprep.subr.bf16.mxu0 0
        %1778 = vmatpush1.bf16.msra.mxu0 0
        %1779 = vmatprep.subr.bf16.mxu0 0
        %1780 = vmatpush1.bf16.msra.mxu0 0
        %1781 = vmatprep.subr.bf16.mxu0 0
        %1782 = vmatpush1.bf16.msra.mxu0 0
        %1783 = vmatprep.subr.bf16.mxu0 0
        %1784 = vmatpush1.bf16.msra.mxu0 0
        %1785 = vmatprep.subr.bf16.mxu0 0
        %1786 = vmatpush1.bf16.msra.mxu0 0
        %1787 = vmatprep.subr.bf16.mxu0 0
        %1788 = vmatpush1.bf16.msra.mxu0 0
        %1789 = vmatprep.mubr.bf16.mxu0 0
        %1790 = vmatmul.mubr.bf16.gmra.mrb[0].mxu0 %v1648
        %v1791 = vpop.f32.mrb[0].mxu0
        %v1792 = vadd.f32 %v1670, %v1791
        %v1793 = vpop.f32.mrb[0].mxu0
        %v1794 = vadd.f32 %v1674, %v1793
        %v1795 = vpop.f32.mrb[0].mxu0
        %v1796 = vpop.f32.mrb[0].mxu0
        %1797 = vdwg.mxu0
        %v1798 = vmax.f32 %v1792, 0.0
        %v1799 = vmax.f32 %v1794, 0.0
        %v1800 = vpack.c.bf16 %v1798, %v1798
        %v1801 = vpack.c.bf16 %v1799, %v1799
        %v1802 = vld [vmem:[#allocation13] sm:$0xf]
        %v1803 = vld [vmem:[#allocation13 + $0x4] sm:$0xf]
        %v1804 = vld [vmem:[#allocation13 + $0x8] sm:$0xf]
        %v1805 = vld [vmem:[#allocation13 + $0xc] sm:$0xf]
        %v1806 = vld [vmem:[#allocation13 + $0x10] sm:$0xf]
        %v1807 = vld [vmem:[#allocation13 + $0x14] sm:$0xf]
        %v1808 = vld [vmem:[#allocation13 + $0x18] sm:$0xf]
        %v1809 = vld [vmem:[#allocation13 + $0x1c] sm:$0xf]
        %v1810 = vld [vmem:[#allocation13 + $0x20] sm:$0xf]
        %v1811 = vld [vmem:[#allocation13 + $0x24] sm:$0xf]
        %v1812 = vld [vmem:[#allocation13 + $0x28] sm:$0xf]
        %v1813 = vld [vmem:[#allocation13 + $0x2c] sm:$0xf]
        %v1814 = vld [vmem:[#allocation13 + $0x30] sm:$0xf]
        %v1815 = vld [vmem:[#allocation13 + $0x34] sm:$0xf]
        %v1816 = vld [vmem:[#allocation13 + $0x38] sm:$0xf]
        %v1817 = vld [vmem:[#allocation13 + $0x3c] sm:$0xf]
        %v1818 = vld [vmem:[#allocation13 + $0x40] sm:$0xf]
        %v1819 = vld [vmem:[#allocation13 + $0x44] sm:$0xf]
        %v1820 = vld [vmem:[#allocation13 + $0x48] sm:$0xf]
        %v1821 = vld [vmem:[#allocation13 + $0x4c] sm:$0xf]
        %v1822 = vld [vmem:[#allocation13 + $0x50] sm:$0xf]
        %v1823 = vld [vmem:[#allocation13 + $0x54] sm:$0xf]
        %v1824 = vld [vmem:[#allocation13 + $0x58] sm:$0xf]
        %v1825 = vld [vmem:[#allocation13 + $0x5c] sm:$0xf]
        %v1826 = vld [vmem:[#allocation13 + $0x60] sm:$0xf]
        %v1827 = vld [vmem:[#allocation13 + $0x64] sm:$0xf]
        %v1828 = vld [vmem:[#allocation13 + $0x68] sm:$0xf]
        %v1829 = vld [vmem:[#allocation13 + $0x6c] sm:$0xf]
        %v1830 = vld [vmem:[#allocation13 + $0x70] sm:$0xf]
        %v1831 = vld [vmem:[#allocation13 + $0x74] sm:$0xf]
        %v1832 = vld [vmem:[#allocation13 + $0x78] sm:$0xf]
        %v1833 = vld [vmem:[#allocation13 + $0x7c] sm:$0xf]
        %v1834 = vld [vmem:[%s12] sm:$0x1]
        %v1836 = vlaneseq
        %v1837 = vshrl.u32 %v1836, 7
        %v1838 = vsub.s32 0, %v1837
        %v1839 = vrot.slane %v1834, %v1838
        %v1873 = vunpack.c.l.b16 %v1802
        %v1874 = vunpack.c.l.b16 %v1803
        %v1875 = vunpack.c.l.b16 %v1804
        %v1876 = vunpack.c.l.b16 %v1805
        %v1877 = vunpack.c.l.b16 %v1806
        %v1878 = vunpack.c.l.b16 %v1807
        %v1879 = vunpack.c.l.b16 %v1808
        %v1880 = vunpack.c.l.b16 %v1809
        %v1881 = vunpack.c.l.b16 %v1810
        %v1882 = vunpack.c.l.b16 %v1811
        %v1883 = vunpack.c.l.b16 %v1812
        %v1884 = vunpack.c.l.b16 %v1813
        %v1885 = vunpack.c.l.b16 %v1814
        %v1886 = vunpack.c.l.b16 %v1815
        %v1887 = vunpack.c.l.b16 %v1816
        %v1888 = vunpack.c.l.b16 %v1817
        %v1889 = vunpack.c.l.b16 %v1818
        %v1890 = vunpack.c.l.b16 %v1819
        %v1891 = vunpack.c.l.b16 %v1820
        %v1892 = vunpack.c.l.b16 %v1821
        %v1893 = vunpack.c.l.b16 %v1822
        %v1894 = vunpack.c.l.b16 %v1823
        %v1895 = vunpack.c.l.b16 %v1824
        %v1896 = vunpack.c.l.b16 %v1825
        %v1897 = vunpack.c.l.b16 %v1826
        %v1898 = vunpack.c.l.b16 %v1827
        %v1899 = vunpack.c.l.b16 %v1828
        %v1900 = vunpack.c.l.b16 %v1829
        %v1901 = vunpack.c.l.b16 %v1830
        %v1902 = vunpack.c.l.b16 %v1831
        %v1903 = vunpack.c.l.b16 %v1832
        %v1904 = vunpack.c.l.b16 %v1833
        %v1905 = vpack.c.b16 %v1874, %v1873
        %v1906 = vpack.c.b16 %v1876, %v1875
        %v1907 = vpack.c.b16 %v1878, %v1877
        %v1908 = vpack.c.b16 %v1880, %v1879
        %v1909 = vpack.c.b16 %v1882, %v1881
        %v1910 = vpack.c.b16 %v1884, %v1883
        %v1911 = vpack.c.b16 %v1886, %v1885
        %v1912 = vpack.c.b16 %v1888, %v1887
        %v1913 = vpack.c.b16 %v1890, %v1889
        %v1914 = vpack.c.b16 %v1892, %v1891
        %v1915 = vpack.c.b16 %v1894, %v1893
        %v1916 = vpack.c.b16 %v1896, %v1895
        %v1917 = vpack.c.b16 %v1898, %v1897
        %v1918 = vpack.c.b16 %v1900, %v1899
        %v1919 = vpack.c.b16 %v1902, %v1901
        %v1920 = vpack.c.b16 %v1904, %v1903
        %1937 = vmatprep.subr.bf16.mxu0 0
        %1938 = vmatpush1.bf16.msra.mxu0 %v1905
        %1939 = vmatprep.subr.bf16.mxu0 0
        %1940 = vmatpush1.bf16.msra.mxu0 %v1906
        %1941 = vmatprep.subr.bf16.mxu0 0
        %1942 = vmatpush1.bf16.msra.mxu0 %v1907
        %1943 = vmatprep.subr.bf16.mxu0 0
        %1944 = vmatpush1.bf16.msra.mxu0 %v1908
        %1945 = vmatprep.subr.bf16.mxu0 0
        %1946 = vmatpush1.bf16.msra.mxu0 %v1909
        %1947 = vmatprep.subr.bf16.mxu0 0
        %1948 = vmatpush1.bf16.msra.mxu0 %v1910
        %1949 = vmatprep.subr.bf16.mxu0 0
        %1950 = vmatpush1.bf16.msra.mxu0 %v1911
        %1951 = vmatprep.subr.bf16.mxu0 0
        %1952 = vmatpush1.bf16.msra.mxu0 %v1912
        %1953 = vmatprep.subr.bf16.mxu0 0
        %1954 = vmatpush1.bf16.msra.mxu0 %v1913
        %1955 = vmatprep.subr.bf16.mxu0 0
        %1956 = vmatpush1.bf16.msra.mxu0 %v1914
        %1957 = vmatprep.subr.bf16.mxu0 0
        %1958 = vmatpush1.bf16.msra.mxu0 %v1915
        %1959 = vmatprep.subr.bf16.mxu0 0
        %1960 = vmatpush1.bf16.msra.mxu0 %v1916
        %1961 = vmatprep.subr.bf16.mxu0 0
        %1962 = vmatpush1.bf16.msra.mxu0 %v1917
        %1963 = vmatprep.subr.bf16.mxu0 0
        %1964 = vmatpush1.bf16.msra.mxu0 %v1918
        %1965 = vmatprep.subr.bf16.mxu0 0
        %1966 = vmatpush1.bf16.msra.mxu0 %v1919
        %1967 = vmatprep.subr.bf16.mxu0 0
        %1968 = vmatpush1.bf16.msra.mxu0 %v1920
        %1969 = vmatprep.mubr.bf16.mxu0 %v1801
        %1970 = vmatmul.mubr.bf16.gmra.mrb[0].mxu0 %v1800
        %v1971 = vpop.f32.mrb[0].mxu0
        %v1972 = vadd.f32 %v1839, %v1971
        %v1973 = vpop.f32.mrb[0].mxu0
        %v1974 = vpop.f32.mrb[0].mxu0
        %v1975 = vpop.f32.mrb[0].mxu0
        %1976 = vdwg.mxu0
        %v1977 = vadd.f32 %v1647, %v1972
        %v1978 = vld [vmem:[%s13] sm:$0x1]
        %v1979 = vld [vmem:[%s14] sm:$0x1]
        %1980 = vadd.xlane.f32.xlu0 %v1977
        %v1981 = vpop.xlane.xlu0 %1980
        %v1982 = vmul.f32 %v1981, %v1624
        %v1983 = vsub.f32 %v1977, %v1982
        %v1984 = vmul.f32 %v1983, %v1983
        %1985 = vadd.xlane.f32.xlu0 %v1984
        %v1986 = vpop.xlane.xlu0 %1985
        %v1987 = vmul.f32 %v1986, %v1624
        %v1988 = vadd.f32 %v1987, 1e-05
        %v1989 = vrsqrt.pop %v1988
        %v1990 = vmul.f32 %v1983, %v1989
        %v1992 = vlaneseq
        %v1993 = vshrl.u32 %v1992, 7
        %v1994 = vsub.s32 0, %v1993
        %v1995 = vrot.slane %v1978, %v1994
        %v1997 = vmul.f32 %v1990, %v1995
        %v1999 = vlaneseq
        %v2000 = vshrl.u32 %v1999, 7
        %v2001 = vsub.s32 0, %v2000
        %v2002 = vrot.slane %v1979, %v2001
        %v2004 = vadd.f32 %v1997, %v2002
        %v2005 = vpack.c.bf16 %v2004, %v2004
        %s2006 = scalar_lea.vmem [#allocation8], 192
        %v2007 = vld [vmem:[%s2006] sm:$0xff]
        %v2008 = vld [vmem:[%s2006 + $0x8] sm:$0xf]
        %v2009 = vld [vmem:[%s2006 + $0xc] sm:$0xff]
        %v2010 = vld [vmem:[%s2006 + $0x14] sm:$0xf]
        %v2011 = vld [vmem:[%s2006 + $0x18] sm:$0xff]
        %v2012 = vld [vmem:[%s2006 + $0x20] sm:$0xf]
        %v2013 = vld [vmem:[%s2006 + $0x24] sm:$0xff]
        %v2014 = vld [vmem:[%s2006 + $0x2c] sm:$0xf]
        %v2015 = vld [vmem:[%s2006 + $0x30] sm:$0xff]
        %v2016 = vld [vmem:[%s2006 + $0x38] sm:$0xf]
        %v2017 = vld [vmem:[%s2006 + $0x3c] sm:$0xff]
        %v2018 = vld [vmem:[%s2006 + $0x44] sm:$0xf]
        %v2019 = vld [vmem:[%s2006 + $0x48] sm:$0xff]
        %v2020 = vld [vmem:[%s2006 + $0x50] sm:$0xf]
        %v2021 = vld [vmem:[%s2006 + $0x54] sm:$0xff]
        %v2022 = vld [vmem:[%s2006 + $0x5c] sm:$0xf]
        %v2023 = vld [vmem:[%s2006 + $0x60] sm:$0xff]
        %v2024 = vld [vmem:[%s2006 + $0x68] sm:$0xf]
        %v2025 = vld [vmem:[%s2006 + $0x6c] sm:$0xff]
        %v2026 = vld [vmem:[%s2006 + $0x74] sm:$0xf]
        %v2027 = vld [vmem:[%s2006 + $0x78] sm:$0xff]
        %v2028 = vld [vmem:[%s2006 + $0x80] sm:$0xf]
        %v2029 = vld [vmem:[%s2006 + $0x84] sm:$0xff]
        %v2030 = vld [vmem:[%s2006 + $0x8c] sm:$0xf]
        %v2031 = vld [vmem:[%s2006 + $0x90] sm:$0xff]
        %v2032 = vld [vmem:[%s2006 + $0x98] sm:$0xf]
        %v2033 = vld [vmem:[%s2006 + $0x9c] sm:$0xff]
        %v2034 = vld [vmem:[%s2006 + $0xa4] sm:$0xf]
        %v2035 = vld [vmem:[%s2006 + $0xa8] sm:$0xff]
        %v2036 = vld [vmem:[%s2006 + $0xb0] sm:$0xf]
        %v2037 = vld [vmem:[%s2006 + $0xb4] sm:$0xff]
        %v2038 = vld [vmem:[%s2006 + $0xbc] sm:$0xf]
        %s2039 = scalar_lea.vmem %s4, 3
        %v2040 = vld [vmem:[%s2039] sm:$0x7]
        %v2042 = vlaneseq
        %v2043 = vshrl.u32 %v2042, 7
        %v2044 = vsub.s32 0, %v2043
        %v2045 = vrot.slane %v2040, %v2044
        %v2046 = vlaneseq
        %v2047 = vshrl.u32 %v2046, 7
        %v2048 = vsub.s32 1, %v2047
        %v2049 = vrot.slane %v2040, %v2048
        %v2050 = vlaneseq
        %v2051 = vshrl.u32 %v2050, 7
        %v2052 = vsub.s32 2, %v2051
        %v2053 = vrot.slane %v2040, %v2052
        %v2089 = vunpack.c.l.b16 %v2007
        %v2090 = vunpack.c.h.b16 %v2007
        %v2091 = vunpack.c.l.b16 %v2008
        %v2092 = vunpack.c.l.b16 %v2009
        %v2093 = vunpack.c.h.b16 %v2009
        %v2094 = vunpack.c.l.b16 %v2010
        %v2095 = vunpack.c.l.b16 %v2011
        %v2096 = vunpack.c.h.b16 %v2011
        %v2097 = vunpack.c.l.b16 %v2012
        %v2098 = vunpack.c.l.b16 %v2013
        %v2099 = vunpack.c.h.b16 %v2013
        %v2100 = vunpack.c.l.b16 %v2014
        %v2101 = vunpack.c.l.b16 %v2015
        %v2102 = vunpack.c.h.b16 %v2015
        %v2103 = vunpack.c.l.b16 %v2016
        %v2104 = vunpack.c.l.b16 %v2017
        %v2105 = vunpack.c.h.b16 %v2017
        %v2106 = vunpack.c.l.b16 %v2018
        %v2107 = vunpack.c.l.b16 %v2019
        %v2108 = vunpack.c.h.b16 %v2019
        %v2109 = vunpack.c.l.b16 %v2020
        %v2110 = vunpack.c.l.b16 %v2021
        %v2111 = vunpack.c.h.b16 %v2021
        %v2112 = vunpack.c.l.b16 %v2022
        %v2113 = vunpack.c.l.b16 %v2023
        %v2114 = vunpack.c.h.b16 %v2023
        %v2115 = vunpack.c.l.b16 %v2024
        %v2116 = vunpack.c.l.b16 %v2025
        %v2117 = vunpack.c.h.b16 %v2025
        %v2118 = vunpack.c.l.b16 %v2026
        %v2119 = vunpack.c.l.b16 %v2027
        %v2120 = vunpack.c.h.b16 %v2027
        %v2121 = vunpack.c.l.b16 %v2028
        %v2122 = vunpack.c.l.b16 %v2029
        %v2123 = vunpack.c.h.b16 %v2029
        %v2124 = vunpack.c.l.b16 %v2030
        %v2125 = vunpack.c.l.b16 %v2031
        %v2126 = vunpack.c.h.b16 %v2031
        %v2127 = vunpack.c.l.b16 %v2032
        %v2128 = vunpack.c.l.b16 %v2033
        %v2129 = vunpack.c.h.b16 %v2033
        %v2130 = vunpack.c.l.b16 %v2034
        %v2131 = vunpack.c.l.b16 %v2035
        %v2132 = vunpack.c.h.b16 %v2035
        %v2133 = vunpack.c.l.b16 %v2036
        %v2134 = vunpack.c.l.b16 %v2037
        %v2135 = vunpack.c.h.b16 %v2037
        %v2136 = vunpack.c.l.b16 %v2038
        %v2137 = vpack.c.b16 %v2092, %v2089
        %v2138 = vpack.c.b16 %v2093, %v2090
        %v2139 = vpack.c.b16 %v2094, %v2091
        %v2140 = vpack.c.b16 %v2098, %v2095
        %v2141 = vpack.c.b16 %v2099, %v2096
        %v2142 = vpack.c.b16 %v2100, %v2097
        %v2143 = vpack.c.b16 %v2104, %v2101
        %v2144 = vpack.c.b16 %v2105, %v2102
        %v2145 = vpack.c.b16 %v2106, %v2103
        %v2146 = vpack.c.b16 %v2110, %v2107
        %v2147 = vpack.c.b16 %v2111, %v2108
        %v2148 = vpack.c.b16 %v2112, %v2109
        %v2149 = vpack.c.b16 %v2116, %v2113
        %v2150 = vpack.c.b16 %v2117, %v2114
        %v2151 = vpack.c.b16 %v2118, %v2115
        %v2152 = vpack.c.b16 %v2122, %v2119
        %v2153 = vpack.c.b16 %v2123, %v2120
        %v2154 = vpack.c.b16 %v2124, %v2121
        %v2155 = vpack.c.b16 %v2128, %v2125
        %v2156 = vpack.c.b16 %v2129, %v2126
        %v2157 = vpack.c.b16 %v2130, %v2127
        %v2158 = vpack.c.b16 %v2134, %v2131
        %v2159 = vpack.c.b16 %v2135, %v2132
        %v2160 = vpack.c.b16 %v2136, %v2133
        %2185 = vmatprep.subr.bf16.mxu0 %v2138
        %2186 = vmatpush1.bf16.msra.mxu0 %v2137
        %2187 = vmatprep.subr.bf16.mxu0 %v2141
        %2188 = vmatpush1.bf16.msra.mxu0 %v2140
        %2189 = vmatprep.subr.bf16.mxu0 %v2144
        %2190 = vmatpush1.bf16.msra.mxu0 %v2143
        %2191 = vmatprep.subr.bf16.mxu0 %v2147
        %2192 = vmatpush1.bf16.msra.mxu0 %v2146
        %2193 = vmatprep.subr.bf16.mxu0 %v2150
        %2194 = vmatpush1.bf16.msra.mxu0 %v2149
        %2195 = vmatprep.subr.bf16.mxu0 %v2153
        %2196 = vmatpush1.bf16.msra.mxu0 %v2152
        %2197 = vmatprep.subr.bf16.mxu0 %v2156
        %2198 = vmatpush1.bf16.msra.mxu0 %v2155
        %2199 = vmatprep.subr.bf16.mxu0 %v2159
        %2200 = vmatpush1.bf16.msra.mxu0 %v2158
        %2201 = vmatprep.subr.bf16.mxu0 0
        %2202 = vmatpush1.bf16.msra.mxu0 0
        %2203 = vmatprep.subr.bf16.mxu0 0
        %2204 = vmatpush1.bf16.msra.mxu0 0
        %2205 = vmatprep.subr.bf16.mxu0 0
        %2206 = vmatpush1.bf16.msra.mxu0 0
        %2207 = vmatprep.subr.bf16.mxu0 0
        %2208 = vmatpush1.bf16.msra.mxu0 0
        %2209 = vmatprep.subr.bf16.mxu0 0
        %2210 = vmatpush1.bf16.msra.mxu0 0
        %2211 = vmatprep.subr.bf16.mxu0 0
        %2212 = vmatpush1.bf16.msra.mxu0 0
        %2213 = vmatprep.subr.bf16.mxu0 0
        %2214 = vmatpush1.bf16.msra.mxu0 0
        %2215 = vmatprep.subr.bf16.mxu0 0
        %2216 = vmatpush1.bf16.msra.mxu0 0
        %2217 = vmatprep.mubr.bf16.mxu0 0
        %2218 = vmatmul.mubr.bf16.gmra.mrb[0].mxu0 %v2005
        %v2219 = vpop.f32.mrb[0].mxu0
        %v2220 = vadd.f32 %v2045, %v2219
        %v2221 = vpop.f32.mrb[0].mxu0
        %v2222 = vadd.f32 %v2049, %v2221
        %v2223 = vpop.f32.mrb[0].mxu0
        %v2224 = vpop.f32.mrb[0].mxu0
        %2225 = vdwg.mxu0
        %2226 = vmatprep.subr.bf16.mxu0 0
        %2227 = vmatpush1.bf16.msra.mxu0 %v2139
        %2228 = vmatprep.subr.bf16.mxu0 0
        %2229 = vmatpush1.bf16.msra.mxu0 %v2142
        %2230 = vmatprep.subr.bf16.mxu0 0
        %2231 = vmatpush1.bf16.msra.mxu0 %v2145
        %2232 = vmatprep.subr.bf16.mxu0 0
        %2233 = vmatpush1.bf16.msra.mxu0 %v2148
        %2234 = vmatprep.subr.bf16.mxu0 0
        %2235 = vmatpush1.bf16.msra.mxu0 %v2151
        %2236 = vmatprep.subr.bf16.mxu0 0
        %2237 = vmatpush1.bf16.msra.mxu0 %v2154
        %2238 = vmatprep.subr.bf16.mxu0 0
        %2239 = vmatpush1.bf16.msra.mxu0 %v2157
        %2240 = vmatprep.subr.bf16.mxu0 0
        %2241 = vmatpush1.bf16.msra.mxu0 %v2160
        %2242 = vmatprep.subr.bf16.mxu0 0
        %2243 = vmatpush1.bf16.msra.mxu0 0
        %2244 = vmatprep.subr.bf16.mxu0 0
        %2245 = vmatpush1.bf16.msra.mxu0 0
        %2246 = vmatprep.subr.bf16.mxu0 0
        %2247 = vmatpush1.bf16.msra.mxu0 0
        %2248 = vmatprep.subr.bf16.mxu0 0
        %2249 = vmatpush1.bf16.msra.mxu0 0
        %2250 = vmatprep.subr.bf16.mxu0 0
        %2251 = vmatpush1.bf16.msra.mxu0 0
        %2252 = vmatprep.subr.bf16.mxu0 0
        %2253 = vmatpush1.bf16.msra.mxu0 0
        %2254 = vmatprep.subr.bf16.mxu0 0
        %2255 = vmatpush1.bf16.msra.mxu0 0
        %2256 = vmatprep.subr.bf16.mxu0 0
        %2257 = vmatpush1.bf16.msra.mxu0 0
        %2258 = vmatprep.mubr.bf16.mxu0 0
        %2259 = vmatmul.mubr.bf16.gmra.mrb[0].mxu0 %v2005
        %v2260 = vpop.f32.mrb[0].mxu0
        %v2261 = vadd.f32 %v2053, %v2260
        %v2262 = vpop.f32.mrb[0].mxu0
        %v2263 = vpop.f32.mrb[0].mxu0
        %v2264 = vpop.f32.mrb[0].mxu0
        %2265 = vdwg.mxu0
        %s2266 = scalar_lea.vmem [#allocation10], 64
        %v2267 = vld [vmem:[%s2266] sm:$0xf]
        %v2268 = vld [vmem:[%s2266 + $0x4] sm:$0xf]
        %v2269 = vld [vmem:[%s2266 + $0x8] sm:$0xf]
        %v2270 = vld [vmem:[%s2266 + $0xc] sm:$0xf]
        %v2271 = vld [vmem:[%s2266 + $0x10] sm:$0xf]
        %v2272 = vld [vmem:[%s2266 + $0x14] sm:$0xf]
        %v2273 = vld [vmem:[%s2266 + $0x18] sm:$0xf]
        %v2274 = vld [vmem:[%s2266 + $0x1c] sm:$0xf]
        %v2275 = vld [vmem:[%s2266 + $0x20] sm:$0xf]
        %v2276 = vld [vmem:[%s2266 + $0x24] sm:$0xf]
        %v2277 = vld [vmem:[%s2266 + $0x28] sm:$0xf]
        %v2278 = vld [vmem:[%s2266 + $0x2c] sm:$0xf]
        %v2279 = vld [vmem:[%s2266 + $0x30] sm:$0xf]
        %v2280 = vld [vmem:[%s2266 + $0x34] sm:$0xf]
        %v2281 = vld [vmem:[%s2266 + $0x38] sm:$0xf]
        %v2282 = vld [vmem:[%s2266 + $0x3c] sm:$0xf]
        %v2283 = vpack.c.bf16 %v2220, %v2220
        %v2284 = vpack.c.bf16 %v2222, %v2222
        %v2285 = vpack.c.bf16 %v2261, %v2261
        %v2287 = vsel %vm945, %v2283, 0
        %v2290 = vsel %vm945, %v2284, 0
        %2292 = vmatprep.subr.bf16.mxu0 0
        %2293 = vmatpush1.bf16.xpose.msra.mxu0 %v2290
        %2294 = vmatprep.subr.bf16.mxu0 0
        %2295 = vmatpush1.bf16.xpose.msra.mxu0 0
        %2296 = vmatprep.subr.bf16.mxu0 0
        %2297 = vmatpush1.bf16.xpose.msra.mxu0 0
        %2298 = vmatprep.subr.bf16.mxu0 0
        %2299 = vmatpush1.bf16.xpose.msra.mxu0 0
        %2300 = vmatprep.subr.bf16.mxu0 0
        %2301 = vmatpush1.bf16.xpose.msra.mxu0 0
        %2302 = vmatprep.subr.bf16.mxu0 0
        %2303 = vmatpush1.bf16.xpose.msra.mxu0 0
        %2304 = vmatprep.subr.bf16.mxu0 0
        %2305 = vmatpush1.bf16.xpose.msra.mxu0 0
        %2306 = vmatprep.subr.bf16.mxu0 0
        %2307 = vmatpush1.bf16.xpose.msra.mxu0 0
        %2308 = vmatprep.subr.bf16.mxu0 0
        %2309 = vmatpush1.bf16.xpose.msra.mxu0 0
        %2310 = vmatprep.subr.bf16.mxu0 0
        %2311 = vmatpush1.bf16.xpose.msra.mxu0 0
        %2312 = vmatprep.subr.bf16.mxu0 0
        %2313 = vmatpush1.bf16.xpose.msra.mxu0 0
        %2314 = vmatprep.subr.bf16.mxu0 0
        %2315 = vmatpush1.bf16.xpose.msra.mxu0 0
        %2316 = vmatprep.subr.bf16.mxu0 0
        %2317 = vmatpush1.bf16.xpose.msra.mxu0 0
        %2318 = vmatprep.subr.bf16.mxu0 0
        %2319 = vmatpush1.bf16.xpose.msra.mxu0 0
        %2320 = vmatprep.subr.bf16.mxu0 0
        %2321 = vmatpush1.bf16.xpose.msra.mxu0 0
        %2322 = vmatprep.subr.bf16.mxu0 0
        %2323 = vmatpush1.bf16.xpose.msra.mxu0 0
        %2324 = vmatprep.mubr.bf16.mxu0 0
        %2325 = vmatmul.mubr.bf16.gmra.mrb[0].mxu0 %v2287
        %v2326 = vpop.f32.mrb[0].mxu0
        %v2327 = vadd.f32 %v663, %v2326
        %v2328 = vpop.f32.mrb[0].mxu0
        %v2329 = vpop.f32.mrb[0].mxu0
        %v2330 = vpop.f32.mrb[0].mxu0
        %2331 = vdwg.mxu0
        %v2332 = vsel %vm992, %v2327, -inf
        %2333 = vmax.xlane.f32.xlu0 %v2332
        %v2334 = vpop.xlane.xlu0 %2333
        %v2335 = vsub.f32 %v2327, %v2334
        %v2336 = vmul.f32 %v2335, 1.442695
        %v2337 = vpow.pop %v2336
        %v2338 = vsel %vm992, %v2337, 0.0
        %2339 = vadd.xlane.f32.xlu0 %v2338
        %v2340 = vpop.xlane.xlu0 %2339
        %v2341 = vrcp.pop %v2340
        %v2342 = vmul.f32 %v2337, %v2341
        %v2343 = vpack.c.bf16 %v2342, %v2342
        %v2345 = vsel %vm992, %v2343, 0
        %v2348 = vsel %vm1008, %v2285, 0
        %2350 = vmatprep.subr.bf16.mxu0 0
        %2351 = vmatpush1.bf16.msra.mxu0 %v2348
        %2352 = vmatprep.subr.bf16.mxu0 0
        %2353 = vmatpush1.bf16.msra.mxu0 0
        %2354 = vmatprep.subr.bf16.mxu0 0
        %2355 = vmatpush1.bf16.msra.mxu0 0
        %2356 = vmatprep.subr.bf16.mxu0 0
        %2357 = vmatpush1.bf16.msra.mxu0 0
        %2358 = vmatprep.subr.bf16.mxu0 0
        %2359 = vmatpush1.bf16.msra.mxu0 0
        %2360 = vmatprep.subr.bf16.mxu0 0
        %2361 = vmatpush1.bf16.msra.mxu0 0
        %2362 = vmatprep.subr.bf16.mxu0 0
        %2363 = vmatpush1.bf16.msra.mxu0 0
        %2364 = vmatprep.subr.bf16.mxu0 0
        %2365 = vmatpush1.bf16.msra.mxu0 0
        %2366 = vmatprep.subr.bf16.mxu0 0
        %2367 = vmatpush1.bf16.msra.mxu0 0
        %2368 = vmatprep.subr.bf16.mxu0 0
        %2369 = vmatpush1.bf16.msra.mxu0 0
        %2370 = vmatprep.subr.bf16.mxu0 0
        %2371 = vmatpush1.bf16.msra.mxu0 0
        %2372 = vmatprep.subr.bf16.mxu0 0
        %2373 = vmatpush1.bf16.msra.mxu0 0
        %2374 = vmatprep.subr.bf16.mxu0 0
        %2375 = vmatpush1.bf16.msra.mxu0 0
        %2376 = vmatprep.subr.bf16.mxu0 0
        %2377 = vmatpush1.bf16.msra.mxu0 0
        %2378 = vmatprep.subr.bf16.mxu0 0
        %2379 = vmatpush1.bf16.msra.mxu0 0
        %2380 = vmatprep.subr.bf16.mxu0 0
        %2381 = vmatpush1.bf16.msra.mxu0 0
        %2382 = vmatprep.mubr.bf16.mxu0 0
        %2383 = vmatmul.mubr.bf16.gmra.mrb[0].mxu0 %v2345
        %v2384 = vpop.f32.mrb[0].mxu0
        %v2385 = vadd.f32 0.0, %v2384
        %v2386 = vpop.f32.mrb[0].mxu0
        %v2387 = vpop.f32.mrb[0].mxu0
        %v2388 = vpop.f32.mrb[0].mxu0
        %2389 = vdwg.mxu0
        %v2390 = vpack.c.bf16 %v2385, %v2385
        %2392 = vrot.lane.b32.xlu0 %v2283, 96
        %v2393 = vpop.permute.xlu0 %2392
        %2395 = vrot.lane.b32.xlu0 %v2284, 96
        %v2396 = vpop.permute.xlu0 %2395
        %v2398 = vsel %vm945, %v2393, 0
        %v2401 = vsel %vm945, %v2396, 0
        %2403 = vmatprep.subr.bf16.mxu0 0
        %2404 = vmatpush1.bf16.xpose.msra.mxu0 %v2401
        %2405 = vmatprep.subr.bf16.mxu0 0
        %2406 = vmatpush1.bf16.xpose.msra.mxu0 0
        %2407 = vmatprep.subr.bf16.mxu0 0
        %2408 = vmatpush1.bf16.xpose.msra.mxu0 0
        %2409 = vmatprep.subr.bf16.mxu0 0
        %2410 = vmatpush1.bf16.xpose.msra.mxu0 0
        %2411 = vmatprep.subr.bf16.mxu0 0
        %2412 = vmatpush1.bf16.xpose.msra.mxu0 0
        %2413 = vmatprep.subr.bf16.mxu0 0
        %2414 = vmatpush1.bf16.xpose.msra.mxu0 0
        %2415 = vmatprep.subr.bf16.mxu0 0
        %2416 = vmatpush1.bf16.xpose.msra.mxu0 0
        %2417 = vmatprep.subr.bf16.mxu0 0
        %2418 = vmatpush1.bf16.xpose.msra.mxu0 0
        %2419 = vmatprep.subr.bf16.mxu0 0
        %2420 = vmatpush1.bf16.xpose.msra.mxu0 0
        %2421 = vmatprep.subr.bf16.mxu0 0
        %2422 = vmatpush1.bf16.xpose.msra.mxu0 0
        %2423 = vmatprep.subr.bf16.mxu0 0
        %2424 = vmatpush1.bf16.xpose.msra.mxu0 0
        %2425 = vmatprep.subr.bf16.mxu0 0
        %2426 = vmatpush1.bf16.xpose.msra.mxu0 0
        %2427 = vmatprep.subr.bf16.mxu0 0
        %2428 = vmatpush1.bf16.xpose.msra.mxu0 0
        %2429 = vmatprep.subr.bf16.mxu0 0
        %2430 = vmatpush1.bf16.xpose.msra.mxu0 0
        %2431 = vmatprep.subr.bf16.mxu0 0
        %2432 = vmatpush1.bf16.xpose.msra.mxu0 0
        %2433 = vmatprep.subr.bf16.mxu0 0
        %2434 = vmatpush1.bf16.xpose.msra.mxu0 0
        %2435 = vmatprep.mubr.bf16.mxu0 0
        %2436 = vmatmul.mubr.bf16.gmra.mrb[0].mxu0 %v2398
        %v2437 = vpop.f32.mrb[0].mxu0
        %v2438 = vadd.f32 %v663, %v2437
        %v2439 = vpop.f32.mrb[0].mxu0
        %v2440 = vpop.f32.mrb[0].mxu0
        %v2441 = vpop.f32.mrb[0].mxu0
        %2442 = vdwg.mxu0
        %v2443 = vsel %vm992, %v2438, -inf
        %2444 = vmax.xlane.f32.xlu0 %v2443
        %v2445 = vpop.xlane.xlu0 %2444
        %v2446 = vsub.f32 %v2438, %v2445
        %v2447 = vmul.f32 %v2446, 1.442695
        %v2448 = vpow.pop %v2447
        %v2449 = vsel %vm992, %v2448, 0.0
        %2450 = vadd.xlane.f32.xlu0 %v2449
        %v2451 = vpop.xlane.xlu0 %2450
        %v2452 = vrcp.pop %v2451
        %v2453 = vmul.f32 %v2448, %v2452
        %v2454 = vpack.c.bf16 %v2453, %v2453
        %2456 = vrot.lane.b32.xlu0 %v2285, 96
        %v2457 = vpop.permute.xlu0 %2456
        %v2459 = vsel %vm992, %v2454, 0
        %v2462 = vsel %vm1008, %v2457, 0
        %2464 = vmatprep.subr.bf16.mxu0 0
        %2465 = vmatpush1.bf16.msra.mxu0 %v2462
        %2466 = vmatprep.subr.bf16.mxu0 0
        %2467 = vmatpush1.bf16.msra.mxu0 0
        %2468 = vmatprep.subr.bf16.mxu0 0
        %2469 = vmatpush1.bf16.msra.mxu0 0
        %2470 = vmatprep.subr.bf16.mxu0 0
        %2471 = vmatpush1.bf16.msra.mxu0 0
        %2472 = vmatprep.subr.bf16.mxu0 0
        %2473 = vmatpush1.bf16.msra.mxu0 0
        %2474 = vmatprep.subr.bf16.mxu0 0
        %2475 = vmatpush1.bf16.msra.mxu0 0
        %2476 = vmatprep.subr.bf16.mxu0 0
        %2477 = vmatpush1.bf16.msra.mxu0 0
        %2478 = vmatprep.subr.bf16.mxu0 0
        %2479 = vmatpush1.bf16.msra.mxu0 0
        %2480 = vmatprep.subr.bf16.mxu0 0
        %2481 = vmatpush1.bf16.msra.mxu0 0
        %2482 = vmatprep.subr.bf16.mxu0 0
        %2483 = vmatpush1.bf16.msra.mxu0 0
        %2484 = vmatprep.subr.bf16.mxu0 0
        %2485 = vmatpush1.bf16.msra.mxu0 0
        %2486 = vmatprep.subr.bf16.mxu0 0
        %2487 = vmatpush1.bf16.msra.mxu0 0
        %2488 = vmatprep.subr.bf16.mxu0 0
        %2489 = vmatpush1.bf16.msra.mxu0 0
        %2490 = vmatprep.subr.bf16.mxu0 0
        %2491 = vmatpush1.bf16.msra.mxu0 0
        %2492 = vmatprep.subr.bf16.mxu0 0
        %2493 = vmatpush1.bf16.msra.mxu0 0
        %2494 = vmatprep.subr.bf16.mxu0 0
        %2495 = vmatpush1.bf16.msra.mxu0 0
        %2496 = vmatprep.mubr.bf16.mxu0 0
        %2497 = vmatmul.mubr.bf16.gmra.mrb[0].mxu0 %v2459
        %v2498 = vpop.f32.mrb[0].mxu0
        %v2499 = vadd.f32 0.0, %v2498
        %v2500 = vpop.f32.mrb[0].mxu0
        %v2501 = vpop.f32.mrb[0].mxu0
        %v2502 = vpop.f32.mrb[0].mxu0
        %2503 = vdwg.mxu0
        %v2504 = vpack.c.bf16 %v2499, %v2499
        %v2509 = vunpack.c.l.b16 %v2271
        %v2510 = vunpack.c.l.b16 %v2272
        %v2511 = vunpack.c.l.b16 %v2273
        %v2512 = vunpack.c.l.b16 %v2274
        %v2513 = vpack.c.b16 %v2510, %v2509
        %v2514 = vpack.c.b16 %v2512, %v2511
        %v2518 = vsel %vm945, %v2504, 0
        %2520 = vmatprep.subr.bf16.mxu0 0
        %2521 = vmatpush1.bf16.msra.mxu0 %v2513
        %2522 = vmatprep.subr.bf16.mxu0 0
        %2523 = vmatpush1.bf16.msra.mxu0 %v2514
        %2524 = vmatprep.subr.bf16.mxu0 0
        %2525 = vmatpush1.bf16.msra.mxu0 0
        %2526 = vmatprep.subr.bf16.mxu0 0
        %2527 = vmatpush1.bf16.msra.mxu0 0
        %2528 = vmatprep.subr.bf16.mxu0 0
        %2529 = vmatpush1.bf16.msra.mxu0 0
        %2530 = vmatprep.subr.bf16.mxu0 0
        %2531 = vmatpush1.bf16.msra.mxu0 0
        %2532 = vmatprep.subr.bf16.mxu0 0
        %2533 = vmatpush1.bf16.msra.mxu0 0
        %2534 = vmatprep.subr.bf16.mxu0 0
        %2535 = vmatpush1.bf16.msra.mxu0 0
        %2536 = vmatprep.subr.bf16.mxu0 0
        %2537 = vmatpush1.bf16.msra.mxu0 0
        %2538 = vmatprep.subr.bf16.mxu0 0
        %2539 = vmatpush1.bf16.msra.mxu0 0
        %2540 = vmatprep.subr.bf16.mxu0 0
        %2541 = vmatpush1.bf16.msra.mxu0 0
        %2542 = vmatprep.subr.bf16.mxu0 0
        %2543 = vmatpush1.bf16.msra.mxu0 0
        %2544 = vmatprep.subr.bf16.mxu0 0
        %2545 = vmatpush1.bf16.msra.mxu0 0
        %2546 = vmatprep.subr.bf16.mxu0 0
        %2547 = vmatpush1.bf16.msra.mxu0 0
        %2548 = vmatprep.subr.bf16.mxu0 0
        %2549 = vmatpush1.bf16.msra.mxu0 0
        %2550 = vmatprep.subr.bf16.mxu0 0
        %2551 = vmatpush1.bf16.msra.mxu0 0
        %2552 = vmatprep.mubr.bf16.mxu0 0
        %2553 = vmatmul.mubr.bf16.gmra.mrb[0].mxu0 %v2518
        %v2554 = vpop.f32.mrb[0].mxu0
        %v2555 = vadd.f32 0.0, %v2554
        %v2556 = vpop.f32.mrb[0].mxu0
        %v2557 = vpop.f32.mrb[0].mxu0
        %v2558 = vpop.f32.mrb[0].mxu0
        %2559 = vdwg.mxu0
        %v2564 = vunpack.c.l.b16 %v2267
        %v2565 = vunpack.c.l.b16 %v2268
        %v2566 = vunpack.c.l.b16 %v2269
        %v2567 = vunpack.c.l.b16 %v2270
        %v2568 = vpack.c.b16 %v2565, %v2564
        %v2569 = vpack.c.b16 %v2567, %v2566
        %v2573 = vsel %vm945, %v2390, 0
        %2575 = vmatprep.subr.bf16.mxu0 0
        %2576 = vmatpush1.bf16.msra.mxu0 %v2568
        %2577 = vmatprep.subr.bf16.mxu0 0
        %2578 = vmatpush1.bf16.msra.mxu0 %v2569
        %2579 = vmatprep.subr.bf16.mxu0 0
        %2580 = vmatpush1.bf16.msra.mxu0 0
        %2581 = vmatprep.subr.bf16.mxu0 0
        %2582 = vmatpush1.bf16.msra.mxu0 0
        %2583 = vmatprep.subr.bf16.mxu0 0
        %2584 = vmatpush1.bf16.msra.mxu0 0
        %2585 = vmatprep.subr.bf16.mxu0 0
        %2586 = vmatpush1.bf16.msra.mxu0 0
        %2587 = vmatprep.subr.bf16.mxu0 0
        %2588 = vmatpush1.bf16.msra.mxu0 0
        %2589 = vmatprep.subr.bf16.mxu0 0
        %2590 = vmatpush1.bf16.msra.mxu0 0
        %2591 = vmatprep.subr.bf16.mxu0 0
        %2592 = vmatpush1.bf16.msra.mxu0 0
        %2593 = vmatprep.subr.bf16.mxu0 0
        %2594 = vmatpush1.bf16.msra.mxu0 0
        %2595 = vmatprep.subr.bf16.mxu0 0
        %2596 = vmatpush1.bf16.msra.mxu0 0
        %2597 = vmatprep.subr.bf16.mxu0 0
        %2598 = vmatpush1.bf16.msra.mxu0 0
        %2599 = vmatprep.subr.bf16.mxu0 0
        %2600 = vmatpush1.bf16.msra.mxu0 0
        %2601 = vmatprep.subr.bf16.mxu0 0
        %2602 = vmatpush1.bf16.msra.mxu0 0
        %2603 = vmatprep.subr.bf16.mxu0 0
        %2604 = vmatpush1.bf16.msra.mxu0 0
        %2605 = vmatprep.subr.bf16.mxu0 0
        %2606 = vmatpush1.bf16.msra.mxu0 0
        %2607 = vmatprep.mubr.bf16.mxu0 0
        %2608 = vmatmul.mubr.bf16.gmra.mrb[0].mxu0 %v2573
        %v2609 = vpop.f32.mrb[0].mxu0
        %v2610 = vadd.f32 %v2555, %v2609
        %v2611 = vpop.f32.mrb[0].mxu0
        %v2612 = vpop.f32.mrb[0].mxu0
        %v2613 = vpop.f32.mrb[0].mxu0
        %2614 = vdwg.mxu0
        %2615 = vrot.lane.b32.xlu0 %v2283, 64
        %v2616 = vpop.permute.xlu0 %2615
        %2617 = vrot.lane.b32.xlu0 %v2284, 64
        %v2618 = vpop.permute.xlu0 %2617
        %v2620 = vsel %vm945, %v2616, 0
        %v2623 = vsel %vm945, %v2618, 0
        %2625 = vmatprep.subr.bf16.mxu0 0
        %2626 = vmatpush1.bf16.xpose.msra.mxu0 %v2623
        %2627 = vmatprep.subr.bf16.mxu0 0
        %2628 = vmatpush1.bf16.xpose.msra.mxu0 0
        %2629 = vmatprep.subr.bf16.mxu0 0
        %2630 = vmatpush1.bf16.xpose.msra.mxu0 0
        %2631 = vmatprep.subr.bf16.mxu0 0
        %2632 = vmatpush1.bf16.xpose.msra.mxu0 0
        %2633 = vmatprep.subr.bf16.mxu0 0
        %2634 = vmatpush1.bf16.xpose.msra.mxu0 0
        %2635 = vmatprep.subr.bf16.mxu0 0
        %2636 = vmatpush1.bf16.xpose.msra.mxu0 0
        %2637 = vmatprep.subr.bf16.mxu0 0
        %2638 = vmatpush1.bf16.xpose.msra.mxu0 0
        %2639 = vmatprep.subr.bf16.mxu0 0
        %2640 = vmatpush1.bf16.xpose.msra.mxu0 0
        %2641 = vmatprep.subr.bf16.mxu0 0
        %2642 = vmatpush1.bf16.xpose.msra.mxu0 0
        %2643 = vmatprep.subr.bf16.mxu0 0
        %2644 = vmatpush1.bf16.xpose.msra.mxu0 0
        %2645 = vmatprep.subr.bf16.mxu0 0
        %2646 = vmatpush1.bf16.xpose.msra.mxu0 0
        %2647 = vmatprep.subr.bf16.mxu0 0
        %2648 = vmatpush1.bf16.xpose.msra.mxu0 0
        %2649 = vmatprep.subr.bf16.mxu0 0
        %2650 = vmatpush1.bf16.xpose.msra.mxu0 0
        %2651 = vmatprep.subr.bf16.mxu0 0
        %2652 = vmatpush1.bf16.xpose.msra.mxu0 0
        %2653 = vmatprep.subr.bf16.mxu0 0
        %2654 = vmatpush1.bf16.xpose.msra.mxu0 0
        %2655 = vmatprep.subr.bf16.mxu0 0
        %2656 = vmatpush1.bf16.xpose.msra.mxu0 0
        %2657 = vmatprep.mubr.bf16.mxu0 0
        %2658 = vmatmul.mubr.bf16.gmra.mrb[0].mxu0 %v2620
        %v2659 = vpop.f32.mrb[0].mxu0
        %v2660 = vadd.f32 %v663, %v2659
        %v2661 = vpop.f32.mrb[0].mxu0
        %v2662 = vpop.f32.mrb[0].mxu0
        %v2663 = vpop.f32.mrb[0].mxu0
        %2664 = vdwg.mxu0
        %v2665 = vsel %vm992, %v2660, -inf
        %2666 = vmax.xlane.f32.xlu0 %v2665
        %v2667 = vpop.xlane.xlu0 %2666
        %v2668 = vsub.f32 %v2660, %v2667
        %v2669 = vmul.f32 %v2668, 1.442695
        %v2670 = vpow.pop %v2669
        %v2671 = vsel %vm992, %v2670, 0.0
        %2672 = vadd.xlane.f32.xlu0 %v2671
        %v2673 = vpop.xlane.xlu0 %2672
        %v2674 = vrcp.pop %v2673
        %v2675 = vmul.f32 %v2670, %v2674
        %v2676 = vpack.c.bf16 %v2675, %v2675
        %2677 = vrot.lane.b32.xlu0 %v2285, 64
        %v2678 = vpop.permute.xlu0 %2677
        %v2680 = vsel %vm992, %v2676, 0
        %v2683 = vsel %vm1008, %v2678, 0
        %2685 = vmatprep.subr.bf16.mxu0 0
        %2686 = vmatpush1.bf16.msra.mxu0 %v2683
        %2687 = vmatprep.subr.bf16.mxu0 0
        %2688 = vmatpush1.bf16.msra.mxu0 0
        %2689 = vmatprep.subr.bf16.mxu0 0
        %2690 = vmatpush1.bf16.msra.mxu0 0
        %2691 = vmatprep.subr.bf16.mxu0 0
        %2692 = vmatpush1.bf16.msra.mxu0 0
        %2693 = vmatprep.subr.bf16.mxu0 0
        %2694 = vmatpush1.bf16.msra.mxu0 0
        %2695 = vmatprep.subr.bf16.mxu0 0
        %2696 = vmatpush1.bf16.msra.mxu0 0
        %2697 = vmatprep.subr.bf16.mxu0 0
        %2698 = vmatpush1.bf16.msra.mxu0 0
        %2699 = vmatprep.subr.bf16.mxu0 0
        %2700 = vmatpush1.bf16.msra.mxu0 0
        %2701 = vmatprep.subr.bf16.mxu0 0
        %2702 = vmatpush1.bf16.msra.mxu0 0
        %2703 = vmatprep.subr.bf16.mxu0 0
        %2704 = vmatpush1.bf16.msra.mxu0 0
        %2705 = vmatprep.subr.bf16.mxu0 0
        %2706 = vmatpush1.bf16.msra.mxu0 0
        %2707 = vmatprep.subr.bf16.mxu0 0
        %2708 = vmatpush1.bf16.msra.mxu0 0
        %2709 = vmatprep.subr.bf16.mxu0 0
        %2710 = vmatpush1.bf16.msra.mxu0 0
        %2711 = vmatprep.subr.bf16.mxu0 0
        %2712 = vmatpush1.bf16.msra.mxu0 0
        %2713 = vmatprep.subr.bf16.mxu0 0
        %2714 = vmatpush1.bf16.msra.mxu0 0
        %2715 = vmatprep.subr.bf16.mxu0 0
        %2716 = vmatpush1.bf16.msra.mxu0 0
        %2717 = vmatprep.mubr.bf16.mxu0 0
        %2718 = vmatmul.mubr.bf16.gmra.mrb[0].mxu0 %v2680
        %v2719 = vpop.f32.mrb[0].mxu0
        %v2720 = vadd.f32 0.0, %v2719
        %v2721 = vpop.f32.mrb[0].mxu0
        %v2722 = vpop.f32.mrb[0].mxu0
        %v2723 = vpop.f32.mrb[0].mxu0
        %2724 = vdwg.mxu0
        %v2725 = vpack.c.bf16 %v2720, %v2720
        %v2730 = vunpack.c.l.b16 %v2275
        %v2731 = vunpack.c.l.b16 %v2276
        %v2732 = vunpack.c.l.b16 %v2277
        %v2733 = vunpack.c.l.b16 %v2278
        %v2734 = vpack.c.b16 %v2731, %v2730
        %v2735 = vpack.c.b16 %v2733, %v2732
        %v2739 = vsel %vm945, %v2725, 0
        %2741 = vmatprep.subr.bf16.mxu0 0
        %2742 = vmatpush1.bf16.msra.mxu0 %v2734
        %2743 = vmatprep.subr.bf16.mxu0 0
        %2744 = vmatpush1.bf16.msra.mxu0 %v2735
        %2745 = vmatprep.subr.bf16.mxu0 0
        %2746 = vmatpush1.bf16.msra.mxu0 0
        %2747 = vmatprep.subr.bf16.mxu0 0
        %2748 = vmatpush1.bf16.msra.mxu0 0
        %2749 = vmatprep.subr.bf16.mxu0 0
        %2750 = vmatpush1.bf16.msra.mxu0 0
        %2751 = vmatprep.subr.bf16.mxu0 0
        %2752 = vmatpush1.bf16.msra.mxu0 0
        %2753 = vmatprep.subr.bf16.mxu0 0
        %2754 = vmatpush1.bf16.msra.mxu0 0
        %2755 = vmatprep.subr.bf16.mxu0 0
        %2756 = vmatpush1.bf16.msra.mxu0 0
        %2757 = vmatprep.subr.bf16.mxu0 0
        %2758 = vmatpush1.bf16.msra.mxu0 0
        %2759 = vmatprep.subr.bf16.mxu0 0
        %2760 = vmatpush1.bf16.msra.mxu0 0
        %2761 = vmatprep.subr.bf16.mxu0 0
        %2762 = vmatpush1.bf16.msra.mxu0 0
        %2763 = vmatprep.subr.bf16.mxu0 0
        %2764 = vmatpush1.bf16.msra.mxu0 0
        %2765 = vmatprep.subr.bf16.mxu0 0
        %2766 = vmatpush1.bf16.msra.mxu0 0
        %2767 = vmatprep.subr.bf16.mxu0 0
        %2768 = vmatpush1.bf16.msra.mxu0 0
        %2769 = vmatprep.subr.bf16.mxu0 0
        %2770 = vmatpush1.bf16.msra.mxu0 0
        %2771 = vmatprep.subr.bf16.mxu0 0
        %2772 = vmatpush1.bf16.msra.mxu0 0
        %2773 = vmatprep.mubr.bf16.mxu0 0
        %2774 = vmatmul.mubr.bf16.gmra.mrb[0].mxu0 %v2739
        %v2775 = vpop.f32.mrb[0].mxu0
        %v2776 = vadd.f32 0.0, %v2775
        %v2777 = vpop.f32.mrb[0].mxu0
        %v2778 = vpop.f32.mrb[0].mxu0
        %v2779 = vpop.f32.mrb[0].mxu0
        %2780 = vdwg.mxu0
        %v2781 = vadd.f32 %v2610, %v2776
        %2782 = vrot.lane.b32.xlu0 %v2283, 32
        %v2783 = vpop.permute.xlu0 %2782
        %2784 = vrot.lane.b32.xlu0 %v2284, 32
        %v2785 = vpop.permute.xlu0 %2784
        %v2787 = vsel %vm945, %v2783, 0
        %v2790 = vsel %vm945, %v2785, 0
        %2792 = vmatprep.subr.bf16.mxu0 0
        %2793 = vmatpush1.bf16.xpose.msra.mxu0 %v2790
        %2794 = vmatprep.subr.bf16.mxu0 0
        %2795 = vmatpush1.bf16.xpose.msra.mxu0 0
        %2796 = vmatprep.subr.bf16.mxu0 0
        %2797 = vmatpush1.bf16.xpose.msra.mxu0 0
        %2798 = vmatprep.subr.bf16.mxu0 0
        %2799 = vmatpush1.bf16.xpose.msra.mxu0 0
        %2800 = vmatprep.subr.bf16.mxu0 0
        %2801 = vmatpush1.bf16.xpose.msra.mxu0 0
        %2802 = vmatprep.subr.bf16.mxu0 0
        %2803 = vmatpush1.bf16.xpose.msra.mxu0 0
        %2804 = vmatprep.subr.bf16.mxu0 0
        %2805 = vmatpush1.bf16.xpose.msra.mxu0 0
        %2806 = vmatprep.subr.bf16.mxu0 0
        %2807 = vmatpush1.bf16.xpose.msra.mxu0 0
        %2808 = vmatprep.subr.bf16.mxu0 0
        %2809 = vmatpush1.bf16.xpose.msra.mxu0 0
        %2810 = vmatprep.subr.bf16.mxu0 0
        %2811 = vmatpush1.bf16.xpose.msra.mxu0 0
        %2812 = vmatprep.subr.bf16.mxu0 0
        %2813 = vmatpush1.bf16.xpose.msra.mxu0 0
        %2814 = vmatprep.subr.bf16.mxu0 0
        %2815 = vmatpush1.bf16.xpose.msra.mxu0 0
        %2816 = vmatprep.subr.bf16.mxu0 0
        %2817 = vmatpush1.bf16.xpose.msra.mxu0 0
        %2818 = vmatprep.subr.bf16.mxu0 0
        %2819 = vmatpush1.bf16.xpose.msra.mxu0 0
        %2820 = vmatprep.subr.bf16.mxu0 0
        %2821 = vmatpush1.bf16.xpose.msra.mxu0 0
        %2822 = vmatprep.subr.bf16.mxu0 0
        %2823 = vmatpush1.bf16.xpose.msra.mxu0 0
        %2824 = vmatprep.mubr.bf16.mxu0 0
        %2825 = vmatmul.mubr.bf16.gmra.mrb[0].mxu0 %v2787
        %v2826 = vpop.f32.mrb[0].mxu0
        %v2827 = vadd.f32 %v663, %v2826
        %v2828 = vpop.f32.mrb[0].mxu0
        %v2829 = vpop.f32.mrb[0].mxu0
        %v2830 = vpop.f32.mrb[0].mxu0
        %2831 = vdwg.mxu0
        %v2832 = vsel %vm992, %v2827, -inf
        %2833 = vmax.xlane.f32.xlu0 %v2832
        %v2834 = vpop.xlane.xlu0 %2833
        %v2835 = vsub.f32 %v2827, %v2834
        %v2836 = vmul.f32 %v2835, 1.442695
        %v2837 = vpow.pop %v2836
        %v2838 = vsel %vm992, %v2837, 0.0
        %2839 = vadd.xlane.f32.xlu0 %v2838
        %v2840 = vpop.xlane.xlu0 %2839
        %v2841 = vrcp.pop %v2840
        %v2842 = vmul.f32 %v2837, %v2841
        %v2843 = vpack.c.bf16 %v2842, %v2842
        %2844 = vrot.lane.b32.xlu0 %v2285, 32
        %v2845 = vpop.permute.xlu0 %2844
        %v2847 = vsel %vm992, %v2843, 0
        %v2850 = vsel %vm1008, %v2845, 0
        %2852 = vmatprep.subr.bf16.mxu0 0
        %2853 = vmatpush1.bf16.msra.mxu0 %v2850
        %2854 = vmatprep.subr.bf16.mxu0 0
        %2855 = vmatpush1.bf16.msra.mxu0 0
        %2856 = vmatprep.subr.bf16.mxu0 0
        %2857 = vmatpush1.bf16.msra.mxu0 0
        %2858 = vmatprep.subr.bf16.mxu0 0
        %2859 = vmatpush1.bf16.msra.mxu0 0
        %2860 = vmatprep.subr.bf16.mxu0 0
        %2861 = vmatpush1.bf16.msra.mxu0 0
        %2862 = vmatprep.subr.bf16.mxu0 0
        %2863 = vmatpush1.bf16.msra.mxu0 0
        %2864 = vmatprep.subr.bf16.mxu0 0
        %2865 = vmatpush1.bf16.msra.mxu0 0
        %2866 = vmatprep.subr.bf16.mxu0 0
        %2867 = vmatpush1.bf16.msra.mxu0 0
        %2868 = vmatprep.subr.bf16.mxu0 0
        %2869 = vmatpush1.bf16.msra.mxu0 0
        %2870 = vmatprep.subr.bf16.mxu0 0
        %2871 = vmatpush1.bf16.msra.mxu0 0
        %2872 = vmatprep.subr.bf16.mxu0 0
        %2873 = vmatpush1.bf16.msra.mxu0 0
        %2874 = vmatprep.subr.bf16.mxu0 0
        %2875 = vmatpush1.bf16.msra.mxu0 0
        %2876 = vmatprep.subr.bf16.mxu0 0
        %2877 = vmatpush1.bf16.msra.mxu0 0
        %2878 = vmatprep.subr.bf16.mxu0 0
        %2879 = vmatpush1.bf16.msra.mxu0 0
        %2880 = vmatprep.subr.bf16.mxu0 0
        %2881 = vmatpush1.bf16.msra.mxu0 0
        %2882 = vmatprep.subr.bf16.mxu0 0
        %2883 = vmatpush1.bf16.msra.mxu0 0
        %2884 = vmatprep.mubr.bf16.mxu0 0
        %2885 = vmatmul.mubr.bf16.gmra.mrb[0].mxu0 %v2847
        %v2886 = vpop.f32.mrb[0].mxu0
        %v2887 = vadd.f32 0.0, %v2886
        %v2888 = vpop.f32.mrb[0].mxu0
        %v2889 = vpop.f32.mrb[0].mxu0
        %v2890 = vpop.f32.mrb[0].mxu0
        %2891 = vdwg.mxu0
        %v2892 = vpack.c.bf16 %v2887, %v2887
        %v2897 = vunpack.c.l.b16 %v2279
        %v2898 = vunpack.c.l.b16 %v2280
        %v2899 = vunpack.c.l.b16 %v2281
        %v2900 = vunpack.c.l.b16 %v2282
        %v2901 = vpack.c.b16 %v2898, %v2897
        %v2902 = vpack.c.b16 %v2900, %v2899
        %v2906 = vsel %vm945, %v2892, 0
        %2908 = vmatprep.subr.bf16.mxu0 0
        %2909 = vmatpush1.bf16.msra.mxu0 %v2901
        %2910 = vmatprep.subr.bf16.mxu0 0
        %2911 = vmatpush1.bf16.msra.mxu0 %v2902
        %2912 = vmatprep.subr.bf16.mxu0 0
        %2913 = vmatpush1.bf16.msra.mxu0 0
        %2914 = vmatprep.subr.bf16.mxu0 0
        %2915 = vmatpush1.bf16.msra.mxu0 0
        %2916 = vmatprep.subr.bf16.mxu0 0
        %2917 = vmatpush1.bf16.msra.mxu0 0
        %2918 = vmatprep.subr.bf16.mxu0 0
        %2919 = vmatpush1.bf16.msra.mxu0 0
        %2920 = vmatprep.subr.bf16.mxu0 0
        %2921 = vmatpush1.bf16.msra.mxu0 0
        %2922 = vmatprep.subr.bf16.mxu0 0
        %2923 = vmatpush1.bf16.msra.mxu0 0
        %2924 = vmatprep.subr.bf16.mxu0 0
        %2925 = vmatpush1.bf16.msra.mxu0 0
        %2926 = vmatprep.subr.bf16.mxu0 0
        %2927 = vmatpush1.bf16.msra.mxu0 0
        %2928 = vmatprep.subr.bf16.mxu0 0
        %2929 = vmatpush1.bf16.msra.mxu0 0
        %2930 = vmatprep.subr.bf16.mxu0 0
        %2931 = vmatpush1.bf16.msra.mxu0 0
        %2932 = vmatprep.subr.bf16.mxu0 0
        %2933 = vmatpush1.bf16.msra.mxu0 0
        %2934 = vmatprep.subr.bf16.mxu0 0
        %2935 = vmatpush1.bf16.msra.mxu0 0
        %2936 = vmatprep.subr.bf16.mxu0 0
        %2937 = vmatpush1.bf16.msra.mxu0 0
        %2938 = vmatprep.subr.bf16.mxu0 0
        %2939 = vmatpush1.bf16.msra.mxu0 0
        %2940 = vmatprep.mubr.bf16.mxu0 0
        %2941 = vmatmul.mubr.bf16.gmra.mrb[0].mxu0 %v2906
        %v2942 = vpop.f32.mrb[0].mxu0
        %v2943 = vadd.f32 0.0, %v2942
        %v2944 = vpop.f32.mrb[0].mxu0
        %v2945 = vpop.f32.mrb[0].mxu0
        %v2946 = vpop.f32.mrb[0].mxu0
        %2947 = vdwg.mxu0
        %v2948 = vadd.f32 %v2781, %v2943
        %s2949 = scalar_lea.vmem %s6, 1
        %v2950 = vld [vmem:[%s2949] sm:$0x1]
        %v2952 = vlaneseq
        %v2953 = vshrl.u32 %v2952, 7
        %v2954 = vsub.s32 0, %v2953
        %v2955 = vrot.slane %v2950, %v2954
        %v2957 = vadd.f32 %v2948, %v2955
        %v2958 = vadd.f32 %v2004, %v2957
        %s2959 = scalar_lea.vmem %s7, 1
        %v2960 = vld [vmem:[%s2959] sm:$0x1]
        %s2961 = scalar_lea.vmem %s8, 1
        %v2962 = vld [vmem:[%s2961] sm:$0x1]
        %2963 = vadd.xlane.f32.xlu0 %v2958
        %v2964 = vpop.xlane.xlu0 %2963
        %v2965 = vmul.f32 %v2964, %v1624
        %v2966 = vsub.f32 %v2958, %v2965
        %v2967 = vmul.f32 %v2966, %v2966
        %2968 = vadd.xlane.f32.xlu0 %v2967
        %v2969 = vpop.xlane.xlu0 %2968
        %v2970 = vmul.f32 %v2969, %v1624
        %v2971 = vadd.f32 %v2970, 1e-05
        %v2972 = vrsqrt.pop %v2971
        %v2973 = vmul.f32 %v2966, %v2972
        %v2975 = vlaneseq
        %v2976 = vshrl.u32 %v2975, 7
        %v2977 = vsub.s32 0, %v2976
        %v2978 = vrot.slane %v2960, %v2977
        %v2980 = vmul.f32 %v2973, %v2978
        %v2982 = vlaneseq
        %v2983 = vshrl.u32 %v2982, 7
        %v2984 = vsub.s32 0, %v2983
        %v2985 = vrot.slane %v2962, %v2984
        %v2987 = vadd.f32 %v2980, %v2985
        %v2988 = vpack.c.bf16 %v2987, %v2987
        %s2989 = scalar_lea.vmem [#allocation11], 128
        %v2990 = vld [vmem:[%s2989] sm:$0xff]
        %v2991 = vld [vmem:[%s2989 + $0x8] sm:$0xff]
        %v2992 = vld [vmem:[%s2989 + $0x10] sm:$0xff]
        %v2993 = vld [vmem:[%s2989 + $0x18] sm:$0xff]
        %v2994 = vld [vmem:[%s2989 + $0x20] sm:$0xff]
        %v2995 = vld [vmem:[%s2989 + $0x28] sm:$0xff]
        %v2996 = vld [vmem:[%s2989 + $0x30] sm:$0xff]
        %v2997 = vld [vmem:[%s2989 + $0x38] sm:$0xff]
        %v2998 = vld [vmem:[%s2989 + $0x40] sm:$0xff]
        %v2999 = vld [vmem:[%s2989 + $0x48] sm:$0xff]
        %v3000 = vld [vmem:[%s2989 + $0x50] sm:$0xff]
        %v3001 = vld [vmem:[%s2989 + $0x58] sm:$0xff]
        %v3002 = vld [vmem:[%s2989 + $0x60] sm:$0xff]
        %v3003 = vld [vmem:[%s2989 + $0x68] sm:$0xff]
        %v3004 = vld [vmem:[%s2989 + $0x70] sm:$0xff]
        %v3005 = vld [vmem:[%s2989 + $0x78] sm:$0xff]
        %s3006 = scalar_lea.vmem %s10, 2
        %v3007 = vld [vmem:[%s3006] sm:$0x3]
        %v3009 = vlaneseq
        %v3010 = vshrl.u32 %v3009, 7
        %v3011 = vsub.s32 0, %v3010
        %v3012 = vrot.slane %v3007, %v3011
        %v3013 = vlaneseq
        %v3014 = vshrl.u32 %v3013, 7
        %v3015 = vsub.s32 1, %v3014
        %v3016 = vrot.slane %v3007, %v3015
        %v3035 = vunpack.c.l.b16 %v2990
        %v3036 = vunpack.c.h.b16 %v2990
        %v3037 = vunpack.c.l.b16 %v2991
        %v3038 = vunpack.c.h.b16 %v2991
        %v3039 = vunpack.c.l.b16 %v2992
        %v3040 = vunpack.c.h.b16 %v2992
        %v3041 = vunpack.c.l.b16 %v2993
        %v3042 = vunpack.c.h.b16 %v2993
        %v3043 = vunpack.c.l.b16 %v2994
        %v3044 = vunpack.c.h.b16 %v2994
        %v3045 = vunpack.c.l.b16 %v2995
        %v3046 = vunpack.c.h.b16 %v2995
        %v3047 = vunpack.c.l.b16 %v2996
        %v3048 = vunpack.c.h.b16 %v2996
        %v3049 = vunpack.c.l.b16 %v2997
        %v3050 = vunpack.c.h.b16 %v2997
        %v3051 = vunpack.c.l.b16 %v2998
        %v3052 = vunpack.c.h.b16 %v2998
        %v3053 = vunpack.c.l.b16 %v2999
        %v3054 = vunpack.c.h.b16 %v2999
        %v3055 = vunpack.c.l.b16 %v3000
        %v3056 = vunpack.c.h.b16 %v3000
        %v3057 = vunpack.c.l.b16 %v3001
        %v3058 = vunpack.c.h.b16 %v3001
        %v3059 = vunpack.c.l.b16 %v3002
        %v3060 = vunpack.c.h.b16 %v3002
        %v3061 = vunpack.c.l.b16 %v3003
        %v3062 = vunpack.c.h.b16 %v3003
        %v3063 = vunpack.c.l.b16 %v3004
        %v3064 = vunpack.c.h.b16 %v3004
        %v3065 = vunpack.c.l.b16 %v3005
        %v3066 = vunpack.c.h.b16 %v3005
        %v3067 = vpack.c.b16 %v3037, %v3035
        %v3068 = vpack.c.b16 %v3038, %v3036
        %v3069 = vpack.c.b16 %v3041, %v3039
        %v3070 = vpack.c.b16 %v3042, %v3040
        %v3071 = vpack.c.b16 %v3045, %v3043
        %v3072 = vpack.c.b16 %v3046, %v3044
        %v3073 = vpack.c.b16 %v3049, %v3047
        %v3074 = vpack.c.b16 %v3050, %v3048
        %v3075 = vpack.c.b16 %v3053, %v3051
        %v3076 = vpack.c.b16 %v3054, %v3052
        %v3077 = vpack.c.b16 %v3057, %v3055
        %v3078 = vpack.c.b16 %v3058, %v3056
        %v3079 = vpack.c.b16 %v3061, %v3059
        %v3080 = vpack.c.b16 %v3062, %v3060
        %v3081 = vpack.c.b16 %v3065, %v3063
        %v3082 = vpack.c.b16 %v3066, %v3064
        %3099 = vmatprep.subr.bf16.mxu0 %v3068
        %3100 = vmatpush1.bf16.msra.mxu0 %v3067
        %3101 = vmatprep.subr.bf16.mxu0 %v3070
        %3102 = vmatpush1.bf16.msra.mxu0 %v3069
        %3103 = vmatprep.subr.bf16.mxu0 %v3072
        %3104 = vmatpush1.bf16.msra.mxu0 %v3071
        %3105 = vmatprep.subr.bf16.mxu0 %v3074
        %3106 = vmatpush1.bf16.msra.mxu0 %v3073
        %3107 = vmatprep.subr.bf16.mxu0 %v3076
        %3108 = vmatpush1.bf16.msra.mxu0 %v3075
        %3109 = vmatprep.subr.bf16.mxu0 %v3078
        %3110 = vmatpush1.bf16.msra.mxu0 %v3077
        %3111 = vmatprep.subr.bf16.mxu0 %v3080
        %3112 = vmatpush1.bf16.msra.mxu0 %v3079
        %3113 = vmatprep.subr.bf16.mxu0 %v3082
        %3114 = vmatpush1.bf16.msra.mxu0 %v3081
        %3115 = vmatprep.subr.bf16.mxu0 0
        %3116 = vmatpush1.bf16.msra.mxu0 0
        %3117 = vmatprep.subr.bf16.mxu0 0
        %3118 = vmatpush1.bf16.msra.mxu0 0
        %3119 = vmatprep.subr.bf16.mxu0 0
        %3120 = vmatpush1.bf16.msra.mxu0 0
        %3121 = vmatprep.subr.bf16.mxu0 0
        %3122 = vmatpush1.bf16.msra.mxu0 0
        %3123 = vmatprep.subr.bf16.mxu0 0
        %3124 = vmatpush1.bf16.msra.mxu0 0
        %3125 = vmatprep.subr.bf16.mxu0 0
        %3126 = vmatpush1.bf16.msra.mxu0 0
        %3127 = vmatprep.subr.bf16.mxu0 0
        %3128 = vmatpush1.bf16.msra.mxu0 0
        %3129 = vmatprep.subr.bf16.mxu0 0
        %3130 = vmatpush1.bf16.msra.mxu0 0
        %3131 = vmatprep.mubr.bf16.mxu0 0
        %3132 = vmatmul.mubr.bf16.gmra.mrb[0].mxu0 %v2988
        %v3133 = vpop.f32.mrb[0].mxu0
        %v3134 = vadd.f32 %v3012, %v3133
        %v3135 = vpop.f32.mrb[0].mxu0
        %v3136 = vadd.f32 %v3016, %v3135
        %v3137 = vpop.f32.mrb[0].mxu0
        %v3138 = vpop.f32.mrb[0].mxu0
        %3139 = vdwg.mxu0
        %v3140 = vmax.f32 %v3134, 0.0
        %v3141 = vmax.f32 %v3136, 0.0
        %v3142 = vpack.c.bf16 %v3140, %v3140
        %v3143 = vpack.c.bf16 %v3141, %v3141
        %s3144 = scalar_lea.vmem [#allocation13], 128
        %v3145 = vld [vmem:[%s3144] sm:$0xf]
        %v3146 = vld [vmem:[%s3144 + $0x4] sm:$0xf]
        %v3147 = vld [vmem:[%s3144 + $0x8] sm:$0xf]
        %v3148 = vld [vmem:[%s3144 + $0xc] sm:$0xf]
        %v3149 = vld [vmem:[%s3144 + $0x10] sm:$0xf]
        %v3150 = vld [vmem:[%s3144 + $0x14] sm:$0xf]
        %v3151 = vld [vmem:[%s3144 + $0x18] sm:$0xf]
        %v3152 = vld [vmem:[%s3144 + $0x1c] sm:$0xf]
        %v3153 = vld [vmem:[%s3144 + $0x20] sm:$0xf]
        %v3154 = vld [vmem:[%s3144 + $0x24] sm:$0xf]
        %v3155 = vld [vmem:[%s3144 + $0x28] sm:$0xf]
        %v3156 = vld [vmem:[%s3144 + $0x2c] sm:$0xf]
        %v3157 = vld [vmem:[%s3144 + $0x30] sm:$0xf]
        %v3158 = vld [vmem:[%s3144 + $0x34] sm:$0xf]
        %v3159 = vld [vmem:[%s3144 + $0x38] sm:$0xf]
        %v3160 = vld [vmem:[%s3144 + $0x3c] sm:$0xf]
        %v3161 = vld [vmem:[%s3144 + $0x40] sm:$0xf]
        %v3162 = vld [vmem:[%s3144 + $0x44] sm:$0xf]
        %v3163 = vld [vmem:[%s3144 + $0x48] sm:$0xf]
        %v3164 = vld [vmem:[%s3144 + $0x4c] sm:$0xf]
        %v3165 = vld [vmem:[%s3144 + $0x50] sm:$0xf]
        %v3166 = vld [vmem:[%s3144 + $0x54] sm:$0xf]
        %v3167 = vld [vmem:[%s3144 + $0x58] sm:$0xf]
        %v3168 = vld [vmem:[%s3144 + $0x5c] sm:$0xf]
        %v3169 = vld [vmem:[%s3144 + $0x60] sm:$0xf]
        %v3170 = vld [vmem:[%s3144 + $0x64] sm:$0xf]
        %v3171 = vld [vmem:[%s3144 + $0x68] sm:$0xf]
        %v3172 = vld [vmem:[%s3144 + $0x6c] sm:$0xf]
        %v3173 = vld [vmem:[%s3144 + $0x70] sm:$0xf]
        %v3174 = vld [vmem:[%s3144 + $0x74] sm:$0xf]
        %v3175 = vld [vmem:[%s3144 + $0x78] sm:$0xf]
        %v3176 = vld [vmem:[%s3144 + $0x7c] sm:$0xf]
        %s3177 = scalar_lea.vmem %s12, 1
        %v3178 = vld [vmem:[%s3177] sm:$0x1]
        %v3180 = vlaneseq
        %v3181 = vshrl.u32 %v3180, 7
        %v3182 = vsub.s32 0, %v3181
        %v3183 = vrot.slane %v3178, %v3182
        %v3217 = vunpack.c.l.b16 %v3145
        %v3218 = vunpack.c.l.b16 %v3146
        %v3219 = vunpack.c.l.b16 %v3147
        %v3220 = vunpack.c.l.b16 %v3148
        %v3221 = vunpack.c.l.b16 %v3149
        %v3222 = vunpack.c.l.b16 %v3150
        %v3223 = vunpack.c.l.b16 %v3151
        %v3224 = vunpack.c.l.b16 %v3152
        %v3225 = vunpack.c.l.b16 %v3153
        %v3226 = vunpack.c.l.b16 %v3154
        %v3227 = vunpack.c.l.b16 %v3155
        %v3228 = vunpack.c.l.b16 %v3156
        %v3229 = vunpack.c.l.b16 %v3157
        %v3230 = vunpack.c.l.b16 %v3158
        %v3231 = vunpack.c.l.b16 %v3159
        %v3232 = vunpack.c.l.b16 %v3160
        %v3233 = vunpack.c.l.b16 %v3161
        %v3234 = vunpack.c.l.b16 %v3162
        %v3235 = vunpack.c.l.b16 %v3163
        %v3236 = vunpack.c.l.b16 %v3164
        %v3237 = vunpack.c.l.b16 %v3165
        %v3238 = vunpack.c.l.b16 %v3166
        %v3239 = vunpack.c.l.b16 %v3167
        %v3240 = vunpack.c.l.b16 %v3168
        %v3241 = vunpack.c.l.b16 %v3169
        %v3242 = vunpack.c.l.b16 %v3170
        %v3243 = vunpack.c.l.b16 %v3171
        %v3244 = vunpack.c.l.b16 %v3172
        %v3245 = vunpack.c.l.b16 %v3173
        %v3246 = vunpack.c.l.b16 %v3174
        %v3247 = vunpack.c.l.b16 %v3175
        %v3248 = vunpack.c.l.b16 %v3176
        %v3249 = vpack.c.b16 %v3218, %v3217
        %v3250 = vpack.c.b16 %v3220, %v3219
        %v3251 = vpack.c.b16 %v3222, %v3221
        %v3252 = vpack.c.b16 %v3224, %v3223
        %v3253 = vpack.c.b16 %v3226, %v3225
        %v3254 = vpack.c.b16 %v3228, %v3227
        %v3255 = vpack.c.b16 %v3230, %v3229
        %v3256 = vpack.c.b16 %v3232, %v3231
        %v3257 = vpack.c.b16 %v3234, %v3233
        %v3258 = vpack.c.b16 %v3236, %v3235
        %v3259 = vpack.c.b16 %v3238, %v3237
        %v3260 = vpack.c.b16 %v3240, %v3239
        %v3261 = vpack.c.b16 %v3242, %v3241
        %v3262 = vpack.c.b16 %v3244, %v3243
        %v3263 = vpack.c.b16 %v3246, %v3245
        %v3264 = vpack.c.b16 %v3248, %v3247
        %3281 = vmatprep.subr.bf16.mxu0 0
        %3282 = vmatpush1.bf16.msra.mxu0 %v3249
        %3283 = vmatprep.subr.bf16.mxu0 0
        %3284 = vmatpush1.bf16.msra.mxu0 %v3250
        %3285 = vmatprep.subr.bf16.mxu0 0
        %3286 = vmatpush1.bf16.msra.mxu0 %v3251
        %3287 = vmatprep.subr.bf16.mxu0 0
        %3288 = vmatpush1.bf16.msra.mxu0 %v3252
        %3289 = vmatprep.subr.bf16.mxu0 0
        %3290 = vmatpush1.bf16.msra.mxu0 %v3253
        %3291 = vmatprep.subr.bf16.mxu0 0
        %3292 = vmatpush1.bf16.msra.mxu0 %v3254
        %3293 = vmatprep.subr.bf16.mxu0 0
        %3294 = vmatpush1.bf16.msra.mxu0 %v3255
        %3295 = vmatprep.subr.bf16.mxu0 0
        %3296 = vmatpush1.bf16.msra.mxu0 %v3256
        %3297 = vmatprep.subr.bf16.mxu0 0
        %3298 = vmatpush1.bf16.msra.mxu0 %v3257
        %3299 = vmatprep.subr.bf16.mxu0 0
        %3300 = vmatpush1.bf16.msra.mxu0 %v3258
        %3301 = vmatprep.subr.bf16.mxu0 0
        %3302 = vmatpush1.bf16.msra.mxu0 %v3259
        %3303 = vmatprep.subr.bf16.mxu0 0
        %3304 = vmatpush1.bf16.msra.mxu0 %v3260
        %3305 = vmatprep.subr.bf16.mxu0 0
        %3306 = vmatpush1.bf16.msra.mxu0 %v3261
        %3307 = vmatprep.subr.bf16.mxu0 0
        %3308 = vmatpush1.bf16.msra.mxu0 %v3262
        %3309 = vmatprep.subr.bf16.mxu0 0
        %3310 = vmatpush1.bf16.msra.mxu0 %v3263
        %3311 = vmatprep.subr.bf16.mxu0 0
        %3312 = vmatpush1.bf16.msra.mxu0 %v3264
        %3313 = vmatprep.mubr.bf16.mxu0 %v3143
        %3314 = vmatmul.mubr.bf16.gmra.mrb[0].mxu0 %v3142
        %v3315 = vpop.f32.mrb[0].mxu0
        %v3316 = vadd.f32 %v3183, %v3315
        %v3317 = vpop.f32.mrb[0].mxu0
        %v3318 = vpop.f32.mrb[0].mxu0
        %v3319 = vpop.f32.mrb[0].mxu0
        %3320 = vdwg.mxu0
        %v3321 = vadd.f32 %v2987, %v3316
        %s3322 = scalar_lea.vmem %s13, 1
        %v3323 = vld [vmem:[%s3322] sm:$0x1]
        %s3324 = scalar_lea.vmem %s14, 1
        %v3325 = vld [vmem:[%s3324] sm:$0x1]
        %3326 = vadd.xlane.f32.xlu0 %v3321
        %v3327 = vpop.xlane.xlu0 %3326
        %v3328 = vmul.f32 %v3327, %v1624
        %v3329 = vsub.f32 %v3321, %v3328
        %v3330 = vmul.f32 %v3329, %v3329
        %3331 = vadd.xlane.f32.xlu0 %v3330
        %v3332 = vpop.xlane.xlu0 %3331
        %v3333 = vmul.f32 %v3332, %v1624
        %v3334 = vadd.f32 %v3333, 1e-05
        %v3335 = vrsqrt.pop %v3334
        %v3336 = vmul.f32 %v3329, %v3335
        %v3338 = vlaneseq
        %v3339 = vshrl.u32 %v3338, 7
        %v3340 = vsub.s32 0, %v3339
        %v3341 = vrot.slane %v3323, %v3340
        %v3343 = vmul.f32 %v3336, %v3341
        %v3345 = vlaneseq
        %v3346 = vshrl.u32 %v3345, 7
        %v3347 = vsub.s32 0, %v3346
        %v3348 = vrot.slane %v3325, %v3347
        %v3350 = vadd.f32 %v3343, %v3348
        %v3351 = vpack.c.bf16 %v3350, %v3350
        %v3352 = vld [vmem:[#allocation14] sm:$0xf]
        %v3353 = vld [vmem:[#allocation14 + $0x4] sm:$0xf]
        %v3354 = vld [vmem:[#allocation14 + $0x8] sm:$0xf]
        %v3355 = vld [vmem:[#allocation14 + $0xc] sm:$0xf]
        %v3356 = vld [vmem:[#allocation14 + $0x10] sm:$0xf]
        %v3357 = vld [vmem:[#allocation14 + $0x14] sm:$0xf]
        %v3358 = vld [vmem:[#allocation14 + $0x18] sm:$0xf]
        %v3359 = vld [vmem:[#allocation14 + $0x1c] sm:$0xf]
        %v3360 = vld [vmem:[#allocation14 + $0x20] sm:$0xf]
        %v3361 = vld [vmem:[#allocation14 + $0x24] sm:$0xf]
        %v3362 = vld [vmem:[#allocation14 + $0x28] sm:$0xf]
        %v3363 = vld [vmem:[#allocation14 + $0x2c] sm:$0xf]
        %v3364 = vld [vmem:[#allocation14 + $0x30] sm:$0xf]
        %v3365 = vld [vmem:[#allocation14 + $0x34] sm:$0xf]
        %v3366 = vld [vmem:[#allocation14 + $0x38] sm:$0xf]
        %v3367 = vld [vmem:[#allocation14 + $0x3c] sm:$0xf]
        %v3368 = vld [vmem:[%s16] sm:$0x1]
        %v3370 = vlaneseq
        %v3371 = vshrl.u32 %v3370, 7
        %v3372 = vsub.s32 0, %v3371
        %v3373 = vrot.slane %v3368, %v3372
        %v3391 = vunpack.c.l.b16 %v3352
        %v3392 = vunpack.c.l.b16 %v3353
        %v3393 = vunpack.c.l.b16 %v3354
        %v3394 = vunpack.c.l.b16 %v3355
        %v3395 = vunpack.c.l.b16 %v3356
        %v3396 = vunpack.c.l.b16 %v3357
        %v3397 = vunpack.c.l.b16 %v3358
        %v3398 = vunpack.c.l.b16 %v3359
        %v3399 = vunpack.c.l.b16 %v3360
        %v3400 = vunpack.c.l.b16 %v3361
        %v3401 = vunpack.c.l.b16 %v3362
        %v3402 = vunpack.c.l.b16 %v3363
        %v3403 = vunpack.c.l.b16 %v3364
        %v3404 = vunpack.c.l.b16 %v3365
        %v3405 = vunpack.c.l.b16 %v3366
        %v3406 = vunpack.c.l.b16 %v3367
        %v3407 = vpack.c.b16 %v3392, %v3391
        %v3408 = vpack.c.b16 %v3394, %v3393
        %v3409 = vpack.c.b16 %v3396, %v3395
        %v3410 = vpack.c.b16 %v3398, %v3397
        %v3411 = vpack.c.b16 %v3400, %v3399
        %v3412 = vpack.c.b16 %v3402, %v3401
        %v3413 = vpack.c.b16 %v3404, %v3403
        %v3414 = vpack.c.b16 %v3406, %v3405
        %3423 = vmatprep.subr.bf16.mxu0 0
        %3424 = vmatpush1.bf16.msra.mxu0 %v3407
        %3425 = vmatprep.subr.bf16.mxu0 0
        %3426 = vmatpush1.bf16.msra.mxu0 %v3408
        %3427 = vmatprep.subr.bf16.mxu0 0
        %3428 = vmatpush1.bf16.msra.mxu0 %v3409
        %3429 = vmatprep.subr.bf16.mxu0 0
        %3430 = vmatpush1.bf16.msra.mxu0 %v3410
        %3431 = vmatprep.subr.bf16.mxu0 0
        %3432 = vmatpush1.bf16.msra.mxu0 %v3411
        %3433 = vmatprep.subr.bf16.mxu0 0
        %3434 = vmatpush1.bf16.msra.mxu0 %v3412
        %3435 = vmatprep.subr.bf16.mxu0 0
        %3436 = vmatpush1.bf16.msra.mxu0 %v3413
        %3437 = vmatprep.subr.bf16.mxu0 0
        %3438 = vmatpush1.bf16.msra.mxu0 %v3414
        %3439 = vmatprep.subr.bf16.mxu0 0
        %3440 = vmatpush1.bf16.msra.mxu0 0
        %3441 = vmatprep.subr.bf16.mxu0 0
        %3442 = vmatpush1.bf16.msra.mxu0 0
        %3443 = vmatprep.subr.bf16.mxu0 0
        %3444 = vmatpush1.bf16.msra.mxu0 0
        %3445 = vmatprep.subr.bf16.mxu0 0
        %3446 = vmatpush1.bf16.msra.mxu0 0
        %3447 = vmatprep.subr.bf16.mxu0 0
        %3448 = vmatpush1.bf16.msra.mxu0 0
        %3449 = vmatprep.subr.bf16.mxu0 0
        %3450 = vmatpush1.bf16.msra.mxu0 0
        %3451 = vmatprep.subr.bf16.mxu0 0
        %3452 = vmatpush1.bf16.msra.mxu0 0
        %3453 = vmatprep.subr.bf16.mxu0 0
        %3454 = vmatpush1.bf16.msra.mxu0 0
        %3455 = vmatprep.mubr.bf16.mxu0 0
        %3456 = vmatmul.mubr.bf16.gmra.mrb[0].mxu0 %v3351
        %v3457 = vpop.f32.mrb[0].mxu0
        %v3458 = vadd.f32 %v3373, %v3457
        %v3459 = vpop.f32.mrb[0].mxu0
        %v3460 = vpop.f32.mrb[0].mxu0
        %v3461 = vpop.f32.mrb[0].mxu0
        %3462 = vdwg.mxu0
        %3463 = vst [vmem:[%s661] sm:$0xff] %v3458
        %s3464 = sand.u32 %s408, 1
        %s3465 = scalar_lea.sflag [#allocation4], %s3464
        %s3466 = sand.u32 %s408, 1
        %s3467 = smul.addr %s3466, 8
        %s3468 = scalar_lea.vmem [#allocation16], %s3467
        // Predicated region
        $region121: #{tpu_custom_call.1} parent=87 // pred_check
          %p3469 = pneg %p418
        $region122: #{tpu_custom_call.1} parent=87 // pred_check_branch
          %3471 = sbr.rel (%p3469) target = $region124
        $region123: #{tpu_custom_call.1} parent=87 // pred_region
          %s3473 = ssub.s32 128, 128
          %3474 = vsyncadd %s3465, %s3473
          %s3475 = smul.addr %s38, 128
          %s3476 = scalar_lea.hbm %s17, %s3475
          %s3478 = sshll.u32 %s3468, 4
          %s3479 = int_to_ptr.vmem [resolvable:$true] %s3478
          %3481 = dma.vmem_to_hbm [thread:$0]  %s3479, 128, %s3476, %s3465
        $region124: #{tpu_custom_call.1} parent=87 // pred_fallthru
          _
      $region88: #{tpu_custom_call.1} parent=5 // pred_fallthru
        _
      %p3482 = scmp.le.s32.totalorder 2, %s33
      // Predicated region
      $region125: #{tpu_custom_call.1} parent=5 // pred_check
        %p3483 = pneg %p3482
      $region126: #{tpu_custom_call.1} parent=5 // pred_check_branch
        %3485 = sbr.rel (%p3483) target = $region128
      $region127: #{tpu_custom_call.1} parent=5 // pred_region
        %s3486 = ssub.s32 %s33, 2
        // Predicated region
        $region129: #{tpu_custom_call.1} parent=127 // pred_check
          %p3487 = pneg %p424
        $region130: #{tpu_custom_call.1} parent=127 // pred_check_branch
          %3489 = sbr.rel (%p3487) target = $region132
        $region131: #{tpu_custom_call.1} parent=127 // pred_region
          %s3490 = sand.u32 %s409, 1
          %s3491 = scalar_lea.sflag [#allocation4], %s3490
          %s3492 = sand.u32 %s409, 1
          %s3493 = smul.addr %s3492, 8
          %s3494 = scalar_lea.vmem [#allocation16], %s3493
          %3495 = dma.done %s3491, 128
        $region132: #{tpu_custom_call.1} parent=127 // pred_fallthru
          _
      $region128: #{tpu_custom_call.1} parent=5 // pred_fallthru
        _
    $region6: #{tpu_custom_call.1} parent=1 // loop_footer
      %s37 = sadd.s32 1, %s33
    $region7: #{tpu_custom_call.1} parent=1 // loop_footer_branch
      %32 = sbr.rel target = $region3
    $region8: #{tpu_custom_call.1} parent=1 // loop_exit
      _
    %3496 = vsyncpa [#allocation3], 1
    %s3497 = scalar_lea.sflag [#allocation3], 1
    %3498 = vsyncpa %s3497, 1
    %3499 = vsyncpa [#allocation6], 1
    %3500 = vsyncpa [#allocation9], 1
    %3501 = vsyncpa [#allocation12], 1
    %3502 = vsyncpa [#allocation15], 1
    %3503 = vsyncpa [#allocation4], 1
    %s3504 = scalar_lea.sflag [#allocation4], 1
    %3505 = vsyncpa %s3504, 1

</llo_original>
